<compile_context>
chip_gen: v7x
topology: tpu7x:2x2x1
jax: 0.10.0
libtpu: 0.0.40
codegen_flags: <defaults>
</compile_context>

<pallas_src>
import functools
import numpy as np
import jax
import jax.numpy as jnp
from jax.experimental import pallas as pl
from jax.experimental.pallas import tpu as pltpu

EPS = 1e-5
NEG_SLOPE = 0.2
VMEM_LIMIT = 32 * 1024 * 1024


# ------------------------------ Pallas kernels -------------------------------

def _make_conv5x5_s2_kernel(ow, with_bn):
    """One grid step = one (image, output row); accumulates all 5x5 taps on the MXU."""
    K = 5

    def _accum(x_refs, w_ref):
        acc = None
        for kh in range(K):
            row_ref = x_refs[kh // 2]       # which 2-row view holds padded row 2*oh+kh
            rr = kh % 2                     # row inside that view
            for kw in range(K):
                ph, dw = kw % 2, kw // 2    # column phase / shift (space-to-depth)
                win = row_ref[rr, ph, dw:dw + ow, :]                 # (OW, Cin)
                part = jnp.dot(win, w_ref[kh, kw],                   # (OW, Cout) f32
                               preferred_element_type=jnp.float32)
                acc = part if acc is None else acc + part
        return acc

    if with_bn:
        def kernel(x0_ref, x1_ref, x2_ref, w_ref, y_ref, sum_ref, sqs_ref):
            y = _accum((x0_ref, x1_ref, x2_ref), w_ref)
            # Conv bias omitted: exactly cancelled by the BN mean subtraction.
            y_ref[...] = y
            sum_ref[...] = jnp.sum(y, axis=0, keepdims=True)
            sqs_ref[...] = jnp.sum(y * y, axis=0, keepdims=True)
    else:
        def kernel(x0_ref, x1_ref, x2_ref, w_ref, b_ref, y_ref):
            y = _accum((x0_ref, x1_ref, x2_ref), w_ref) + b_ref[...]
            y_ref[...] = jnp.where(y > 0.0, y, NEG_SLOPE * y)
    return kernel


def _bn_lrelu_kernel(y_ref, s_ref, t_ref, o_ref):
    z = y_ref[...] * s_ref[...] + t_ref[...]          # folded BN: one FMA per element
    o_ref[...] = jnp.where(z > 0.0, z, NEG_SLOPE * z)


def _mm_bias_lrelu_kernel(x_ref, w_ref, b_ref, o_ref):
    y = jnp.dot(x_ref[...], w_ref[...], preferred_element_type=jnp.float32)
    y = y + b_ref[...]
    o_ref[...] = jnp.where(y > 0.0, y, NEG_SLOPE * y)


# ------------------------------ layer wrappers --------------------------------

def _pick_row_tile(m, target=512):
    if m <= target:
        return m
    for t in range(target, 7, -1):
        if m % t == 0 and t % 8 == 0:
            return t
    return m


def _compiler_params(semantics):
    return pltpu.CompilerParams(dimension_semantics=semantics,
                                vmem_limit_bytes=VMEM_LIMIT)


def _bn_lrelu_apply(y2d, scale, shift):
    """Fused (y*scale + shift) -> LeakyReLU, lane-dense packed when possible."""
    M, C = y2d.shape
    if C <= 128 and 128 % C == 0 and (M * C) % 128 == 0:
        rep = 128 // C
        yv = y2d.reshape((M * C) // 128, 128)           # pure reshape, lane-dense store
        sv = jnp.tile(scale.reshape(1, C), (1, rep)).astype(jnp.float32)
        tv = jnp.tile(shift.reshape(1, C), (1, rep)).astype(jnp.float32)
    else:
        yv = y2d
        sv = scale.reshape(1, C).astype(jnp.float32)
        tv = shift.reshape(1, C).astype(jnp.float32)
    R, Cc = yv.shape
    tr = _pick_row_tile(R)
    out = pl.pallas_call(
        _bn_lrelu_kernel,
        grid=(R // tr,),
        in_specs=[pl.BlockSpec((tr, Cc), lambda i: (i, 0)),
                  pl.BlockSpec((1, Cc), lambda i: (0, 0)),
                  pl.BlockSpec((1, Cc), lambda i: (0, 0))],
        out_specs=pl.BlockSpec((tr, Cc), lambda i: (i, 0)),
        out_shape=jax.ShapeDtypeStruct((R, Cc), jnp.float32),
        compiler_params=_compiler_params(("parallel",)),
    )(yv, sv, tv)
    return out.reshape(M, C)


def _conv5x5_s2_layer(x_nhwc, lp, cfg, matmul_dtype):
    N, H, W, Cin = x_nhwc.shape
    K, s, pad = cfg["K"], cfg["stride"], cfg["pad"]
    assert (K, s, pad) == (5, 2, 2) and H % 2 == 0 and W % 2 == 0
    Cout = lp["W"].shape[0]
    OH, OW = H // 2, W // 2
    Hp, Wp = H + 2 * pad, W + 2 * pad
    Hh, Wh = Hp // 2, Wp // 2                 # Wh == OW + 2

    # Zero-pad + column phase split (space-to-depth along W): no data duplication.
    xpad = jnp.pad(x_nhwc, ((0, 0), (pad, pad), (pad, pad), (0, 0)))
    xprep = xpad.reshape(N, Hp, Wh, 2, Cin).transpose(0, 1, 3, 2, 4)
    xprep = xprep.reshape(N * Hp, 2, Wh, Cin).astype(matmul_dtype)

    wk = jnp.transpose(lp["W"], (2, 3, 1, 0)).astype(matmul_dtype)   # (K, K, Cin, Cout)

    grid = (N, OH)
    # Three shifted 2-row Blocked views of the same prepared input cover the
    # 5-row (plus halo) window each output row needs -> no im2col materialization.
    x_specs = [
        pl.BlockSpec((2, 2, Wh, Cin),
                     lambda n, oh, r=r: (n * Hh + oh + r, 0, 0, 0))
        for r in range(3)
    ]
    w_spec = pl.BlockSpec((K, K, Cin, Cout), lambda n, oh: (0, 0, 0, 0))
    y_spec = pl.BlockSpec((None, OW, Cout), lambda n, oh: (n * OH + oh, 0, 0))
    cparams = _compiler_params(("parallel", "parallel"))

    if cfg["has_bn"]:
        stat_spec = pl.BlockSpec((None, 1, Cout), lambda n, oh: (n * OH + oh, 0, 0))
        y, rsum, rsqs = pl.pallas_call(
            _make_conv5x5_s2_kernel(OW, with_bn=True),
            grid=grid,
            in_specs=x_specs + [w_spec],
            out_specs=(y_spec, stat_spec, stat_spec),
            out_shape=(jax.ShapeDtypeStruct((N * OH, OW, Cout), jnp.float32),
                       jax.ShapeDtypeStruct((N * OH, 1, Cout), jnp.float32),
                       jax.ShapeDtypeStruct((N * OH, 1, Cout), jnp.float32)),
            compiler_params=cparams,
        )(xprep, xprep, xprep, wk)

        cnt = float(N * OH * OW)
        mean = jnp.sum(rsum, axis=(0, 1)) / cnt                           # (Cout,)
        var = jnp.maximum(jnp.sum(rsqs, axis=(0, 1)) / cnt - mean * mean, 0.0)
        scale = lp["gamma"] * jax.lax.rsqrt(var + EPS)
        shift = lp["beta"] - mean * scale
        y = _bn_lrelu_apply(y.reshape(N * OH * OW, Cout), scale, shift)
        return y.reshape(N, OH, OW, Cout)
    else:
        bias = lp["b"].reshape(1, Cout).astype(jnp.float32)
        b_spec = pl.BlockSpec((1, Cout), lambda n, oh: (0, 0))
        y = pl.pallas_call(
            _make_conv5x5_s2_kernel(OW, with_bn=False),
            grid=grid,
            in_specs=x_specs + [w_spec, b_spec],
            out_specs=y_spec,
            out_shape=jax.ShapeDtypeStruct((N * OH, OW, Cout), jnp.float32),
            compiler_params=cparams,
        )(xprep, xprep, xprep, wk, bias)
        return y.reshape(N, OH, OW, Cout)


def _final_conv_layer(x_nhwc, lp, cfg, matmul_dtype):
    # Kernel size == spatial extent, stride 1, pad 0  ->  plain row-tiled matmul.
    N, H, W, Cin = x_nhwc.shape
    K = cfg["K"]
    assert cfg["stride"] == 1 and cfg["pad"] == 0 and K == H and K == W
    Cout = lp["W"].shape[0]
    Kc = H * W * Cin
    xf = x_nhwc.reshape(N, Kc).astype(matmul_dtype)
    wf = jnp.transpose(lp["W"], (2, 3, 1, 0)).reshape(Kc, Cout).astype(matmul_dtype)
    bias = lp["b"].reshape(1, Cout).astype(jnp.float32)
    tm = _pick_row_tile(N)
    y = pl.pallas_call(
        _mm_bias_lrelu_kernel,
        grid=(N // tm,),
        in_specs=[pl.BlockSpec((tm, Kc), lambda i: (i, 0)),
                  pl.BlockSpec((Kc, Cout), lambda i: (0, 0)),
                  pl.BlockSpec((1, Cout), lambda i: (0, 0))],
        out_specs=pl.BlockSpec((tm, Cout), lambda i: (i, 0)),
        out_shape=jax.ShapeDtypeStruct((N, Cout), jnp.float32),
        compiler_params=_compiler_params(("parallel",)),
    )(xf, wf, bias)
    return y.reshape(N, 1, 1, Cout)


def part_encoder_u_forward(params, layer_cfg, x_nchw, matmul_dtype=jnp.float32):
    """PartEncoderU.forward: returns the list e of per-layer activations (NCHW)."""
    n_layers = len(layer_cfg) - 1
    out = jnp.transpose(x_nchw, (0, 2, 3, 1)).astype(jnp.float32)     # NHWC once
    e = []
    for i, (lp, cfg) in enumerate(zip(params, layer_cfg)):
        if i < n_layers:
            out = _conv5x5_s2_layer(out, lp, cfg, matmul_dtype)
        else:
            out = _final_conv_layer(out, lp, cfg, matmul_dtype)
        e.append(jnp.transpose(out, (0, 3, 1, 2)))                    # external NCHW
    return e


# --------------------------- config / params / reference ----------------------

def build_configs(opts):
    L = opts.num_conv_layers
    conv_dims_in = [opts.c_dim]
    conv_dims_out = []
    for i in range(L):
        powers = min(3, i)
        conv_dims_in.append(opts.conv_dim * (2 ** powers))
        conv_dims_out.append(opts.conv_dim * (2 ** powers))
    conv_dims_out.append(opts.part_embed_dim)
    cfgs = []
    for i in range(L + 1):
        if i == L:
            K, s, pad = opts.output_size // (2 ** L), 1, 0
        else:
            K, s, pad = 5, 2, 2
        cfgs.append(dict(K=K, stride=s, pad=pad,
                         cin=conv_dims_in[i], cout=conv_dims_out[i],
                         has_bn=(0 < i < L)))
    return cfgs


def init_params(cfgs, key):
    params = []
    for cfg in cfgs:
        key, kw, kb, kg, kbt = jax.random.split(key, 5)
        p = dict(
            W=0.1 * jax.random.normal(kw, (cfg["cout"], cfg["cin"], cfg["K"], cfg["K"]),
                                      jnp.float32),
            b=0.1 * jax.random.normal(kb, (cfg["cout"],), jnp.float32),
        )
        if cfg["has_bn"]:
            p["gamma"] = 1.0 + 0.1 * jax.random.normal(kg, (cfg["cout"],), jnp.float32)
            p["beta"] = 0.1 * jax.random.normal(kbt, (cfg["cout"],), jnp.float32)
        params.append(p)
    return params


def _ref_forward(params, cfgs, x):
    """NumPy float64 reference with PyTorch semantics (training-mode BatchNorm)."""
    out = np.asarray(x, np.float64)
    e = []
    for p, cfg in zip(params, cfgs):
        W = np.asarray(p["W"], np.float64)
        b = np.asarray(p["b"], np.float64)
        K, s, pad = cfg["K"], cfg["stride"], cfg["pad"]
        N, Cin, H, Wd = out.shape
        Cout = W.shape[0]
        OH = (H + 2 * pad - K) // s + 1
        OW = (Wd + 2 * pad - K) // s + 1
        xp = np.zeros((N, Cin, H + 2 * pad, Wd + 2 * pad))
        xp[:, :, pad:pad + H, pad:pad + Wd] = out
        y = np.zeros((N, Cout, OH, OW))
        for oh in range(OH):
            for ow in range(OW):
                patch = xp[:, :, oh * s:oh * s + K, ow * s:ow * s + K]
                y[:, :, oh, ow] = np.einsum('ncij,ocij->no', patch, W)
        y = y + b[None, :, None, None]
        if cfg["has_bn"]:
            mean = y.mean(axis=(0, 2, 3), keepdims=True)
            var = y.var(axis=(0, 2, 3), keepdims=True)
            g = np.asarray(p["gamma"], np.float64)[None, :, None, None]
            bt = np.asarray(p["beta"], np.float64)[None, :, None, None]
            y = (y - mean) / np.sqrt(var + EPS) * g + bt
        y = np.where(y > 0, y, NEG_SLOPE * y)
        e.append(y)
        out = y
    return e


# ----------------------------------- main --------------------------------------

if __name__ == "__main__":
    class Opts:
        pass

    opts = Opts()
    opts.c_dim = 4
    opts.conv_dim = 4
    opts.num_conv_layers = 2
    opts.part_embed_dim = 8
    opts.output_size = 16      # input spatial size; final conv kernel = 16 / 2**2 = 4

    key = jax.random.PRNGKey(0)
    key, kx = jax.random.split(key)
    x = jax.random.normal(kx, (2, opts.c_dim, opts.output_size, opts.output_size),
                          jnp.float32)

    cfgs = build_configs(opts)
    params = init_params(cfgs, key)

    fwd_f32 = jax.jit(lambda prm, xx: part_encoder_u_forward(prm, cfgs, xx, jnp.float32))
    fwd_bf16 = jax.jit(lambda prm, xx: part_encoder_u_forward(prm, cfgs, xx, jnp.bfloat16))

    outs = fwd_f32(params, x)
    outs = [np.asarray(jax.block_until_ready(o)) for o in outs]

    refs = _ref_forward(params, cfgs, np.asarray(x))
    assert len(outs) == len(refs)
    for o, r in zip(outs, refs):
        np.testing.assert_allclose(o, r, rtol=2e-3, atol=2e-3)

    # bf16 MXU fast path (v6e / v7x): compile + run; f32 accumulation and epilogue.
    outs_bf16 = fwd_bf16(params, x)
    outs_bf16 = [np.asarray(jax.block_until_ready(o)) for o in outs_bf16]
    assert all(np.isfinite(o).all() for o in outs_bf16)
    assert all(o.shape == r.shape for o, r in zip(outs_bf16, refs))

    print("KERNEL_OK")
</pallas_src>

<mosaic_0001>
module attributes {stable_mosaic.version = 11 : i64} {
  func.func @kernel(%arg0: i32, %arg1: i32, %arg2: memref<2x2x10x4xf32, #tpu.memory_space<vmem>>, %arg3: memref<2x2x10x4xf32, #tpu.memory_space<vmem>>, %arg4: memref<2x2x10x4xf32, #tpu.memory_space<vmem>>, %arg5: memref<5x5x4x4xf32, #tpu.memory_space<vmem>>, %arg6: memref<1x4xf32, #tpu.memory_space<vmem>>, %arg7: memref<1x8x4xf32, #tpu.memory_space<vmem>>) attributes {dimension_semantics = [#tpu.dimension_semantics<parallel>, #tpu.dimension_semantics<parallel>], iteration_bounds = array<i64: 2, 8>, scalar_prefetch = 0 : i64, scratch_operands = 0 : i64, tpu.core_type = #tpu.core_type<tc>, window_params = [{transform_indices = @transform_0, window_bounds = array<i64: 2, 2, 10, 4>}, {transform_indices = @transform_1, window_bounds = array<i64: 2, 2, 10, 4>}, {transform_indices = @transform_2, window_bounds = array<i64: 2, 2, 10, 4>}, {pipeline_mode = #tpu.pipeline_mode<synchronous>, transform_indices = @transform_3, window_bounds = array<i64: 5, 5, 4, 4>}, {pipeline_mode = #tpu.pipeline_mode<synchronous>, transform_indices = @transform_4, window_bounds = array<i64: 1, 4>}, {transform_indices = @transform_5, window_bounds = array<i64: 1, 8, 4>}]} {
    %c0 = arith.constant 0 : index
    %c0_0 = arith.constant 0 : index
    %c0_1 = arith.constant 0 : index
    %c0_2 = arith.constant 0 : index
    %0 = vector.load %arg2[%c0, %c0_0, %c0_1, %c0_2] : memref<2x2x10x4xf32, #tpu.memory_space<vmem>>, vector<1x1x8x4xf32>
    %1 = vector.shape_cast %0 : vector<1x1x8x4xf32> to vector<8x4xf32>
    %c0_3 = arith.constant 0 : index
    %c0_4 = arith.constant 0 : index
    %c0_5 = arith.constant 0 : index
    %c0_6 = arith.constant 0 : index
    %2 = vector.load %arg5[%c0_3, %c0_4, %c0_5, %c0_6] : memref<5x5x4x4xf32, #tpu.memory_space<vmem>>, vector<1x1x4x4xf32>
    %3 = vector.shape_cast %2 : vector<1x1x4x4xf32> to vector<4x4xf32>
    %cst = arith.constant dense<0.000000e+00> : vector<8x4xf32>
    %4 = tpu.matmul %1, %3, %cst {dimension_numbers = #tpu.dot_dimension_numbers<[1], [0], [0], [1], [0, 0, 1, 1], [], []>} : vector<8x4xf32>, vector<4x4xf32>, vector<8x4xf32> -> vector<8x4xf32>
    %c0_7 = arith.constant 0 : index
    %c1 = arith.constant 1 : index
    %c0_8 = arith.constant 0 : index
    %c0_9 = arith.constant 0 : index
    %5 = vector.load %arg2[%c0_7, %c1, %c0_8, %c0_9] : memref<2x2x10x4xf32, #tpu.memory_space<vmem>>, vector<1x1x8x4xf32>
    %6 = vector.shape_cast %5 : vector<1x1x8x4xf32> to vector<8x4xf32>
    %c0_10 = arith.constant 0 : index
    %c1_11 = arith.constant 1 : index
    %c0_12 = arith.constant 0 : index
    %c0_13 = arith.constant 0 : index
    %7 = vector.load %arg5[%c0_10, %c1_11, %c0_12, %c0_13] : memref<5x5x4x4xf32, #tpu.memory_space<vmem>>, vector<1x1x4x4xf32>
    %8 = vector.shape_cast %7 : vector<1x1x4x4xf32> to vector<4x4xf32>
    %cst_14 = arith.constant dense<0.000000e+00> : vector<8x4xf32>
    %9 = tpu.matmul %6, %8, %cst_14 {dimension_numbers = #tpu.dot_dimension_numbers<[1], [0], [0], [1], [0, 0, 1, 1], [], []>} : vector<8x4xf32>, vector<4x4xf32>, vector<8x4xf32> -> vector<8x4xf32>
    %10 = arith.addf %4, %9 : vector<8x4xf32>
    %c0_15 = arith.constant 0 : index
    %c0_16 = arith.constant 0 : index
    %c1_17 = arith.constant 1 : index
    %c0_18 = arith.constant 0 : index
    %11 = vector.load %arg2[%c0_15, %c0_16, %c1_17, %c0_18] : memref<2x2x10x4xf32, #tpu.memory_space<vmem>>, vector<1x1x8x4xf32>
    %12 = vector.shape_cast %11 : vector<1x1x8x4xf32> to vector<8x4xf32>
    %c0_19 = arith.constant 0 : index
    %c2 = arith.constant 2 : index
    %c0_20 = arith.constant 0 : index
    %c0_21 = arith.constant 0 : index
    %13 = vector.load %arg5[%c0_19, %c2, %c0_20, %c0_21] : memref<5x5x4x4xf32, #tpu.memory_space<vmem>>, vector<1x1x4x4xf32>
    %14 = vector.shape_cast %13 : vector<1x1x4x4xf32> to vector<4x4xf32>
    %cst_22 = arith.constant dense<0.000000e+00> : vector<8x4xf32>
    %15 = tpu.matmul %12, %14, %cst_22 {dimension_numbers = #tpu.dot_dimension_numbers<[1], [0], [0], [1], [0, 0, 1, 1], [], []>} : vector<8x4xf32>, vector<4x4xf32>, vector<8x4xf32> -> vector<8x4xf32>
    %16 = arith.addf %10, %15 : vector<8x4xf32>
    %c0_23 = arith.constant 0 : index
    %c1_24 = arith.constant 1 : index
    %c1_25 = arith.constant 1 : index
    %c0_26 = arith.constant 0 : index
    %17 = vector.load %arg2[%c0_23, %c1_24, %c1_25, %c0_26] : memref<2x2x10x4xf32, #tpu.memory_space<vmem>>, vector<1x1x8x4xf32>
    %18 = vector.shape_cast %17 : vector<1x1x8x4xf32> to vector<8x4xf32>
    %c0_27 = arith.constant 0 : index
    %c3 = arith.constant 3 : index
    %c0_28 = arith.constant 0 : index
    %c0_29 = arith.constant 0 : index
    %19 = vector.load %arg5[%c0_27, %c3, %c0_28, %c0_29] : memref<5x5x4x4xf32, #tpu.memory_space<vmem>>, vector<1x1x4x4xf32>
    %20 = vector.shape_cast %19 : vector<1x1x4x4xf32> to vector<4x4xf32>
    %cst_30 = arith.constant dense<0.000000e+00> : vector<8x4xf32>
    %21 = tpu.matmul %18, %20, %cst_30 {dimension_numbers = #tpu.dot_dimension_numbers<[1], [0], [0], [1], [0, 0, 1, 1], [], []>} : vector<8x4xf32>, vector<4x4xf32>, vector<8x4xf32> -> vector<8x4xf32>
    %22 = arith.addf %16, %21 : vector<8x4xf32>
    %c0_31 = arith.constant 0 : index
    %c0_32 = arith.constant 0 : index
    %c2_33 = arith.constant 2 : index
    %c0_34 = arith.constant 0 : index
    %23 = vector.load %arg2[%c0_31, %c0_32, %c2_33, %c0_34] : memref<2x2x10x4xf32, #tpu.memory_space<vmem>>, vector<1x1x8x4xf32>
    %24 = vector.shape_cast %23 : vector<1x1x8x4xf32> to vector<8x4xf32>
    %c0_35 = arith.constant 0 : index
    %c4 = arith.constant 4 : index
    %c0_36 = arith.constant 0 : index
    %c0_37 = arith.constant 0 : index
    %25 = vector.load %arg5[%c0_35, %c4, %c0_36, %c0_37] : memref<5x5x4x4xf32, #tpu.memory_space<vmem>>, vector<1x1x4x4xf32>
    %26 = vector.shape_cast %25 : vector<1x1x4x4xf32> to vector<4x4xf32>
    %cst_38 = arith.constant dense<0.000000e+00> : vector<8x4xf32>
    %27 = tpu.matmul %24, %26, %cst_38 {dimension_numbers = #tpu.dot_dimension_numbers<[1], [0], [0], [1], [0, 0, 1, 1], [], []>} : vector<8x4xf32>, vector<4x4xf32>, vector<8x4xf32> -> vector<8x4xf32>
    %28 = arith.addf %22, %27 : vector<8x4xf32>
    %c1_39 = arith.constant 1 : index
    %c0_40 = arith.constant 0 : index
    %c0_41 = arith.constant 0 : index
    %c0_42 = arith.constant 0 : index
    %29 = vector.load %arg2[%c1_39, %c0_40, %c0_41, %c0_42] : memref<2x2x10x4xf32, #tpu.memory_space<vmem>>, vector<1x1x8x4xf32>
    %30 = vector.shape_cast %29 : vector<1x1x8x4xf32> to vector<8x4xf32>
    %c1_43 = arith.constant 1 : index
    %c0_44 = arith.constant 0 : index
    %c0_45 = arith.constant 0 : index
    %c0_46 = arith.constant 0 : index
    %31 = vector.load %arg5[%c1_43, %c0_44, %c0_45, %c0_46] : memref<5x5x4x4xf32, #tpu.memory_space<vmem>>, vector<1x1x4x4xf32>
    %32 = vector.shape_cast %31 : vector<1x1x4x4xf32> to vector<4x4xf32>
    %cst_47 = arith.constant dense<0.000000e+00> : vector<8x4xf32>
    %33 = tpu.matmul %30, %32, %cst_47 {dimension_numbers = #tpu.dot_dimension_numbers<[1], [0], [0], [1], [0, 0, 1, 1], [], []>} : vector<8x4xf32>, vector<4x4xf32>, vector<8x4xf32> -> vector<8x4xf32>
    %34 = arith.addf %28, %33 : vector<8x4xf32>
    %c1_48 = arith.constant 1 : index
    %c1_49 = arith.constant 1 : index
    %c0_50 = arith.constant 0 : index
    %c0_51 = arith.constant 0 : index
    %35 = vector.load %arg2[%c1_48, %c1_49, %c0_50, %c0_51] : memref<2x2x10x4xf32, #tpu.memory_space<vmem>>, vector<1x1x8x4xf32>
    %36 = vector.shape_cast %35 : vector<1x1x8x4xf32> to vector<8x4xf32>
    %c1_52 = arith.constant 1 : index
    %c1_53 = arith.constant 1 : index
    %c0_54 = arith.constant 0 : index
    %c0_55 = arith.constant 0 : index
    %37 = vector.load %arg5[%c1_52, %c1_53, %c0_54, %c0_55] : memref<5x5x4x4xf32, #tpu.memory_space<vmem>>, vector<1x1x4x4xf32>
    %38 = vector.shape_cast %37 : vector<1x1x4x4xf32> to vector<4x4xf32>
    %cst_56 = arith.constant dense<0.000000e+00> : vector<8x4xf32>
    %39 = tpu.matmul %36, %38, %cst_56 {dimension_numbers = #tpu.dot_dimension_numbers<[1], [0], [0], [1], [0, 0, 1, 1], [], []>} : vector<8x4xf32>, vector<4x4xf32>, vector<8x4xf32> -> vector<8x4xf32>
    %40 = arith.addf %34, %39 : vector<8x4xf32>
    %c1_57 = arith.constant 1 : index
    %c0_58 = arith.constant 0 : index
    %c1_59 = arith.constant 1 : index
    %c0_60 = arith.constant 0 : index
    %41 = vector.load %arg2[%c1_57, %c0_58, %c1_59, %c0_60] : memref<2x2x10x4xf32, #tpu.memory_space<vmem>>, vector<1x1x8x4xf32>
    %42 = vector.shape_cast %41 : vector<1x1x8x4xf32> to vector<8x4xf32>
    %c1_61 = arith.constant 1 : index
    %c2_62 = arith.constant 2 : index
    %c0_63 = arith.constant 0 : index
    %c0_64 = arith.constant 0 : index
    %43 = vector.load %arg5[%c1_61, %c2_62, %c0_63, %c0_64] : memref<5x5x4x4xf32, #tpu.memory_space<vmem>>, vector<1x1x4x4xf32>
    %44 = vector.shape_cast %43 : vector<1x1x4x4xf32> to vector<4x4xf32>
    %cst_65 = arith.constant dense<0.000000e+00> : vector<8x4xf32>
    %45 = tpu.matmul %42, %44, %cst_65 {dimension_numbers = #tpu.dot_dimension_numbers<[1], [0], [0], [1], [0, 0, 1, 1], [], []>} : vector<8x4xf32>, vector<4x4xf32>, vector<8x4xf32> -> vector<8x4xf32>
    %46 = arith.addf %40, %45 : vector<8x4xf32>
    %c1_66 = arith.constant 1 : index
    %c1_67 = arith.constant 1 : index
    %c1_68 = arith.constant 1 : index
    %c0_69 = arith.constant 0 : index
    %47 = vector.load %arg2[%c1_66, %c1_67, %c1_68, %c0_69] : memref<2x2x10x4xf32, #tpu.memory_space<vmem>>, vector<1x1x8x4xf32>
    %48 = vector.shape_cast %47 : vector<1x1x8x4xf32> to vector<8x4xf32>
    %c1_70 = arith.constant 1 : index
    %c3_71 = arith.constant 3 : index
    %c0_72 = arith.constant 0 : index
    %c0_73 = arith.constant 0 : index
    %49 = vector.load %arg5[%c1_70, %c3_71, %c0_72, %c0_73] : memref<5x5x4x4xf32, #tpu.memory_space<vmem>>, vector<1x1x4x4xf32>
    %50 = vector.shape_cast %49 : vector<1x1x4x4xf32> to vector<4x4xf32>
    %cst_74 = arith.constant dense<0.000000e+00> : vector<8x4xf32>
    %51 = tpu.matmul %48, %50, %cst_74 {dimension_numbers = #tpu.dot_dimension_numbers<[1], [0], [0], [1], [0, 0, 1, 1], [], []>} : vector<8x4xf32>, vector<4x4xf32>, vector<8x4xf32> -> vector<8x4xf32>
    %52 = arith.addf %46, %51 : vector<8x4xf32>
    %c1_75 = arith.constant 1 : index
    %c0_76 = arith.constant 0 : index
    %c2_77 = arith.constant 2 : index
    %c0_78 = arith.constant 0 : index
    %53 = vector.load %arg2[%c1_75, %c0_76, %c2_77, %c0_78] : memref<2x2x10x4xf32, #tpu.memory_space<vmem>>, vector<1x1x8x4xf32>
    %54 = vector.shape_cast %53 : vector<1x1x8x4xf32> to vector<8x4xf32>
    %c1_79 = arith.constant 1 : index
    %c4_80 = arith.constant 4 : index
    %c0_81 = arith.constant 0 : index
    %c0_82 = arith.constant 0 : index
    %55 = vector.load %arg5[%c1_79, %c4_80, %c0_81, %c0_82] : memref<5x5x4x4xf32, #tpu.memory_space<vmem>>, vector<1x1x4x4xf32>
    %56 = vector.shape_cast %55 : vector<1x1x4x4xf32> to vector<4x4xf32>
    %cst_83 = arith.constant dense<0.000000e+00> : vector<8x4xf32>
    %57 = tpu.matmul %54, %56, %cst_83 {dimension_numbers = #tpu.dot_dimension_numbers<[1], [0], [0], [1], [0, 0, 1, 1], [], []>} : vector<8x4xf32>, vector<4x4xf32>, vector<8x4xf32> -> vector<8x4xf32>
    %58 = arith.addf %52, %57 : vector<8x4xf32>
    %c0_84 = arith.constant 0 : index
    %c0_85 = arith.constant 0 : index
    %c0_86 = arith.constant 0 : index
    %c0_87 = arith.constant 0 : index
    %59 = vector.load %arg3[%c0_84, %c0_85, %c0_86, %c0_87] : memref<2x2x10x4xf32, #tpu.memory_space<vmem>>, vector<1x1x8x4xf32>
    %60 = vector.shape_cast %59 : vector<1x1x8x4xf32> to vector<8x4xf32>
    %c2_88 = arith.constant 2 : index
    %c0_89 = arith.constant 0 : index
    %c0_90 = arith.constant 0 : index
    %c0_91 = arith.constant 0 : index
    %61 = vector.load %arg5[%c2_88, %c0_89, %c0_90, %c0_91] : memref<5x5x4x4xf32, #tpu.memory_space<vmem>>, vector<1x1x4x4xf32>
    %62 = vector.shape_cast %61 : vector<1x1x4x4xf32> to vector<4x4xf32>
    %cst_92 = arith.constant dense<0.000000e+00> : vector<8x4xf32>
    %63 = tpu.matmul %60, %62, %cst_92 {dimension_numbers = #tpu.dot_dimension_numbers<[1], [0], [0], [1], [0, 0, 1, 1], [], []>} : vector<8x4xf32>, vector<4x4xf32>, vector<8x4xf32> -> vector<8x4xf32>
    %64 = arith.addf %58, %63 : vector<8x4xf32>
    %c0_93 = arith.constant 0 : index
    %c1_94 = arith.constant 1 : index
    %c0_95 = arith.constant 0 : index
    %c0_96 = arith.constant 0 : index
    %65 = vector.load %arg3[%c0_93, %c1_94, %c0_95, %c0_96] : memref<2x2x10x4xf32, #tpu.memory_space<vmem>>, vector<1x1x8x4xf32>
    %66 = vector.shape_cast %65 : vector<1x1x8x4xf32> to vector<8x4xf32>
    %c2_97 = arith.constant 2 : index
    %c1_98 = arith.constant 1 : index
    %c0_99 = arith.constant 0 : index
    %c0_100 = arith.constant 0 : index
    %67 = vector.load %arg5[%c2_97, %c1_98, %c0_99, %c0_100] : memref<5x5x4x4xf32, #tpu.memory_space<vmem>>, vector<1x1x4x4xf32>
    %68 = vector.shape_cast %67 : vector<1x1x4x4xf32> to vector<4x4xf32>
    %cst_101 = arith.constant dense<0.000000e+00> : vector<8x4xf32>
    %69 = tpu.matmul %66, %68, %cst_101 {dimension_numbers = #tpu.dot_dimension_numbers<[1], [0], [0], [1], [0, 0, 1, 1], [], []>} : vector<8x4xf32>, vector<4x4xf32>, vector<8x4xf32> -> vector<8x4xf32>
    %70 = arith.addf %64, %69 : vector<8x4xf32>
    %c0_102 = arith.constant 0 : index
    %c0_103 = arith.constant 0 : index
    %c1_104 = arith.constant 1 : index
    %c0_105 = arith.constant 0 : index
    %71 = vector.load %arg3[%c0_102, %c0_103, %c1_104, %c0_105] : memref<2x2x10x4xf32, #tpu.memory_space<vmem>>, vector<1x1x8x4xf32>
    %72 = vector.shape_cast %71 : vector<1x1x8x4xf32> to vector<8x4xf32>
    %c2_106 = arith.constant 2 : index
    %c2_107 = arith.constant 2 : index
    %c0_108 = arith.constant 0 : index
    %c0_109 = arith.constant 0 : index
    %73 = vector.load %arg5[%c2_106, %c2_107, %c0_108, %c0_109] : memref<5x5x4x4xf32, #tpu.memory_space<vmem>>, vector<1x1x4x4xf32>
    %74 = vector.shape_cast %73 : vector<1x1x4x4xf32> to vector<4x4xf32>
    %cst_110 = arith.constant dense<0.000000e+00> : vector<8x4xf32>
    %75 = tpu.matmul %72, %74, %cst_110 {dimension_numbers = #tpu.dot_dimension_numbers<[1], [0], [0], [1], [0, 0, 1, 1], [], []>} : vector<8x4xf32>, vector<4x4xf32>, vector<8x4xf32> -> vector<8x4xf32>
    %76 = arith.addf %70, %75 : vector<8x4xf32>
    %c0_111 = arith.constant 0 : index
    %c1_112 = arith.constant 1 : index
    %c1_113 = arith.constant 1 : index
    %c0_114 = arith.constant 0 : index
    %77 = vector.load %arg3[%c0_111, %c1_112, %c1_113, %c0_114] : memref<2x2x10x4xf32, #tpu.memory_space<vmem>>, vector<1x1x8x4xf32>
    %78 = vector.shape_cast %77 : vector<1x1x8x4xf32> to vector<8x4xf32>
    %c2_115 = arith.constant 2 : index
    %c3_116 = arith.constant 3 : index
    %c0_117 = arith.constant 0 : index
    %c0_118 = arith.constant 0 : index
    %79 = vector.load %arg5[%c2_115, %c3_116, %c0_117, %c0_118] : memref<5x5x4x4xf32, #tpu.memory_space<vmem>>, vector<1x1x4x4xf32>
    %80 = vector.shape_cast %79 : vector<1x1x4x4xf32> to vector<4x4xf32>
    %cst_119 = arith.constant dense<0.000000e+00> : vector<8x4xf32>
    %81 = tpu.matmul %78, %80, %cst_119 {dimension_numbers = #tpu.dot_dimension_numbers<[1], [0], [0], [1], [0, 0, 1, 1], [], []>} : vector<8x4xf32>, vector<4x4xf32>, vector<8x4xf32> -> vector<8x4xf32>
    %82 = arith.addf %76, %81 : vector<8x4xf32>
    %c0_120 = arith.constant 0 : index
    %c0_121 = arith.constant 0 : index
    %c2_122 = arith.constant 2 : index
    %c0_123 = arith.constant 0 : index
    %83 = vector.load %arg3[%c0_120, %c0_121, %c2_122, %c0_123] : memref<2x2x10x4xf32, #tpu.memory_space<vmem>>, vector<1x1x8x4xf32>
    %84 = vector.shape_cast %83 : vector<1x1x8x4xf32> to vector<8x4xf32>
    %c2_124 = arith.constant 2 : index
    %c4_125 = arith.constant 4 : index
    %c0_126 = arith.constant 0 : index
    %c0_127 = arith.constant 0 : index
    %85 = vector.load %arg5[%c2_124, %c4_125, %c0_126, %c0_127] : memref<5x5x4x4xf32, #tpu.memory_space<vmem>>, vector<1x1x4x4xf32>
    %86 = vector.shape_cast %85 : vector<1x1x4x4xf32> to vector<4x4xf32>
    %cst_128 = arith.constant dense<0.000000e+00> : vector<8x4xf32>
    %87 = tpu.matmul %84, %86, %cst_128 {dimension_numbers = #tpu.dot_dimension_numbers<[1], [0], [0], [1], [0, 0, 1, 1], [], []>} : vector<8x4xf32>, vector<4x4xf32>, vector<8x4xf32> -> vector<8x4xf32>
    %88 = arith.addf %82, %87 : vector<8x4xf32>
    %c1_129 = arith.constant 1 : index
    %c0_130 = arith.constant 0 : index
    %c0_131 = arith.constant 0 : index
    %c0_132 = arith.constant 0 : index
    %89 = vector.load %arg3[%c1_129, %c0_130, %c0_131, %c0_132] : memref<2x2x10x4xf32, #tpu.memory_space<vmem>>, vector<1x1x8x4xf32>
    %90 = vector.shape_cast %89 : vector<1x1x8x4xf32> to vector<8x4xf32>
    %c3_133 = arith.constant 3 : index
    %c0_134 = arith.constant 0 : index
    %c0_135 = arith.constant 0 : index
    %c0_136 = arith.constant 0 : index
    %91 = vector.load %arg5[%c3_133, %c0_134, %c0_135, %c0_136] : memref<5x5x4x4xf32, #tpu.memory_space<vmem>>, vector<1x1x4x4xf32>
    %92 = vector.shape_cast %91 : vector<1x1x4x4xf32> to vector<4x4xf32>
    %cst_137 = arith.constant dense<0.000000e+00> : vector<8x4xf32>
    %93 = tpu.matmul %90, %92, %cst_137 {dimension_numbers = #tpu.dot_dimension_numbers<[1], [0], [0], [1], [0, 0, 1, 1], [], []>} : vector<8x4xf32>, vector<4x4xf32>, vector<8x4xf32> -> vector<8x4xf32>
    %94 = arith.addf %88, %93 : vector<8x4xf32>
    %c1_138 = arith.constant 1 : index
    %c1_139 = arith.constant 1 : index
    %c0_140 = arith.constant 0 : index
    %c0_141 = arith.constant 0 : index
    %95 = vector.load %arg3[%c1_138, %c1_139, %c0_140, %c0_141] : memref<2x2x10x4xf32, #tpu.memory_space<vmem>>, vector<1x1x8x4xf32>
    %96 = vector.shape_cast %95 : vector<1x1x8x4xf32> to vector<8x4xf32>
    %c3_142 = arith.constant 3 : index
    %c1_143 = arith.constant 1 : index
    %c0_144 = arith.constant 0 : index
    %c0_145 = arith.constant 0 : index
    %97 = vector.load %arg5[%c3_142, %c1_143, %c0_144, %c0_145] : memref<5x5x4x4xf32, #tpu.memory_space<vmem>>, vector<1x1x4x4xf32>
    %98 = vector.shape_cast %97 : vector<1x1x4x4xf32> to vector<4x4xf32>
    %cst_146 = arith.constant dense<0.000000e+00> : vector<8x4xf32>
    %99 = tpu.matmul %96, %98, %cst_146 {dimension_numbers = #tpu.dot_dimension_numbers<[1], [0], [0], [1], [0, 0, 1, 1], [], []>} : vector<8x4xf32>, vector<4x4xf32>, vector<8x4xf32> -> vector<8x4xf32>
    %100 = arith.addf %94, %99 : vector<8x4xf32>
    %c1_147 = arith.constant 1 : index
    %c0_148 = arith.constant 0 : index
    %c1_149 = arith.constant 1 : index
    %c0_150 = arith.constant 0 : index
    %101 = vector.load %arg3[%c1_147, %c0_148, %c1_149, %c0_150] : memref<2x2x10x4xf32, #tpu.memory_space<vmem>>, vector<1x1x8x4xf32>
    %102 = vector.shape_cast %101 : vector<1x1x8x4xf32> to vector<8x4xf32>
    %c3_151 = arith.constant 3 : index
    %c2_152 = arith.constant 2 : index
    %c0_153 = arith.constant 0 : index
    %c0_154 = arith.constant 0 : index
    %103 = vector.load %arg5[%c3_151, %c2_152, %c0_153, %c0_154] : memref<5x5x4x4xf32, #tpu.memory_space<vmem>>, vector<1x1x4x4xf32>
    %104 = vector.shape_cast %103 : vector<1x1x4x4xf32> to vector<4x4xf32>
    %cst_155 = arith.constant dense<0.000000e+00> : vector<8x4xf32>
    %105 = tpu.matmul %102, %104, %cst_155 {dimension_numbers = #tpu.dot_dimension_numbers<[1], [0], [0], [1], [0, 0, 1, 1], [], []>} : vector<8x4xf32>, vector<4x4xf32>, vector<8x4xf32> -> vector<8x4xf32>
    %106 = arith.addf %100, %105 : vector<8x4xf32>
    %c1_156 = arith.constant 1 : index
    %c1_157 = arith.constant 1 : index
    %c1_158 = arith.constant 1 : index
    %c0_159 = arith.constant 0 : index
    %107 = vector.load %arg3[%c1_156, %c1_157, %c1_158, %c0_159] : memref<2x2x10x4xf32, #tpu.memory_space<vmem>>, vector<1x1x8x4xf32>
    %108 = vector.shape_cast %107 : vector<1x1x8x4xf32> to vector<8x4xf32>
    %c3_160 = arith.constant 3 : index
    %c3_161 = arith.constant 3 : index
    %c0_162 = arith.constant 0 : index
    %c0_163 = arith.constant 0 : index
    %109 = vector.load %arg5[%c3_160, %c3_161, %c0_162, %c0_163] : memref<5x5x4x4xf32, #tpu.memory_space<vmem>>, vector<1x1x4x4xf32>
    %110 = vector.shape_cast %109 : vector<1x1x4x4xf32> to vector<4x4xf32>
    %cst_164 = arith.constant dense<0.000000e+00> : vector<8x4xf32>
    %111 = tpu.matmul %108, %110, %cst_164 {dimension_numbers = #tpu.dot_dimension_numbers<[1], [0], [0], [1], [0, 0, 1, 1], [], []>} : vector<8x4xf32>, vector<4x4xf32>, vector<8x4xf32> -> vector<8x4xf32>
    %112 = arith.addf %106, %111 : vector<8x4xf32>
    %c1_165 = arith.constant 1 : index
    %c0_166 = arith.constant 0 : index
    %c2_167 = arith.constant 2 : index
    %c0_168 = arith.constant 0 : index
    %113 = vector.load %arg3[%c1_165, %c0_166, %c2_167, %c0_168] : memref<2x2x10x4xf32, #tpu.memory_space<vmem>>, vector<1x1x8x4xf32>
    %114 = vector.shape_cast %113 : vector<1x1x8x4xf32> to vector<8x4xf32>
    %c3_169 = arith.constant 3 : index
    %c4_170 = arith.constant 4 : index
    %c0_171 = arith.constant 0 : index
    %c0_172 = arith.constant 0 : index
    %115 = vector.load %arg5[%c3_169, %c4_170, %c0_171, %c0_172] : memref<5x5x4x4xf32, #tpu.memory_space<vmem>>, vector<1x1x4x4xf32>
    %116 = vector.shape_cast %115 : vector<1x1x4x4xf32> to vector<4x4xf32>
    %cst_173 = arith.constant dense<0.000000e+00> : vector<8x4xf32>
    %117 = tpu.matmul %114, %116, %cst_173 {dimension_numbers = #tpu.dot_dimension_numbers<[1], [0], [0], [1], [0, 0, 1, 1], [], []>} : vector<8x4xf32>, vector<4x4xf32>, vector<8x4xf32> -> vector<8x4xf32>
    %118 = arith.addf %112, %117 : vector<8x4xf32>
    %c0_174 = arith.constant 0 : index
    %c0_175 = arith.constant 0 : index
    %c0_176 = arith.constant 0 : index
    %c0_177 = arith.constant 0 : index
    %119 = vector.load %arg4[%c0_174, %c0_175, %c0_176, %c0_177] : memref<2x2x10x4xf32, #tpu.memory_space<vmem>>, vector<1x1x8x4xf32>
    %120 = vector.shape_cast %119 : vector<1x1x8x4xf32> to vector<8x4xf32>
    %c4_178 = arith.constant 4 : index
    %c0_179 = arith.constant 0 : index
    %c0_180 = arith.constant 0 : index
    %c0_181 = arith.constant 0 : index
    %121 = vector.load %arg5[%c4_178, %c0_179, %c0_180, %c0_181] : memref<5x5x4x4xf32, #tpu.memory_space<vmem>>, vector<1x1x4x4xf32>
    %122 = vector.shape_cast %121 : vector<1x1x4x4xf32> to vector<4x4xf32>
    %cst_182 = arith.constant dense<0.000000e+00> : vector<8x4xf32>
    %123 = tpu.matmul %120, %122, %cst_182 {dimension_numbers = #tpu.dot_dimension_numbers<[1], [0], [0], [1], [0, 0, 1, 1], [], []>} : vector<8x4xf32>, vector<4x4xf32>, vector<8x4xf32> -> vector<8x4xf32>
    %124 = arith.addf %118, %123 : vector<8x4xf32>
    %c0_183 = arith.constant 0 : index
    %c1_184 = arith.constant 1 : index
    %c0_185 = arith.constant 0 : index
    %c0_186 = arith.constant 0 : index
    %125 = vector.load %arg4[%c0_183, %c1_184, %c0_185, %c0_186] : memref<2x2x10x4xf32, #tpu.memory_space<vmem>>, vector<1x1x8x4xf32>
    %126 = vector.shape_cast %125 : vector<1x1x8x4xf32> to vector<8x4xf32>
    %c4_187 = arith.constant 4 : index
    %c1_188 = arith.constant 1 : index
    %c0_189 = arith.constant 0 : index
    %c0_190 = arith.constant 0 : index
    %127 = vector.load %arg5[%c4_187, %c1_188, %c0_189, %c0_190] : memref<5x5x4x4xf32, #tpu.memory_space<vmem>>, vector<1x1x4x4xf32>
    %128 = vector.shape_cast %127 : vector<1x1x4x4xf32> to vector<4x4xf32>
    %cst_191 = arith.constant dense<0.000000e+00> : vector<8x4xf32>
    %129 = tpu.matmul %126, %128, %cst_191 {dimension_numbers = #tpu.dot_dimension_numbers<[1], [0], [0], [1], [0, 0, 1, 1], [], []>} : vector<8x4xf32>, vector<4x4xf32>, vector<8x4xf32> -> vector<8x4xf32>
    %130 = arith.addf %124, %129 : vector<8x4xf32>
    %c0_192 = arith.constant 0 : index
    %c0_193 = arith.constant 0 : index
    %c1_194 = arith.constant 1 : index
    %c0_195 = arith.constant 0 : index
    %131 = vector.load %arg4[%c0_192, %c0_193, %c1_194, %c0_195] : memref<2x2x10x4xf32, #tpu.memory_space<vmem>>, vector<1x1x8x4xf32>
    %132 = vector.shape_cast %131 : vector<1x1x8x4xf32> to vector<8x4xf32>
    %c4_196 = arith.constant 4 : index
    %c2_197 = arith.constant 2 : index
    %c0_198 = arith.constant 0 : index
    %c0_199 = arith.constant 0 : index
    %133 = vector.load %arg5[%c4_196, %c2_197, %c0_198, %c0_199] : memref<5x5x4x4xf32, #tpu.memory_space<vmem>>, vector<1x1x4x4xf32>
    %134 = vector.shape_cast %133 : vector<1x1x4x4xf32> to vector<4x4xf32>
    %cst_200 = arith.constant dense<0.000000e+00> : vector<8x4xf32>
    %135 = tpu.matmul %132, %134, %cst_200 {dimension_numbers = #tpu.dot_dimension_numbers<[1], [0], [0], [1], [0, 0, 1, 1], [], []>} : vector<8x4xf32>, vector<4x4xf32>, vector<8x4xf32> -> vector<8x4xf32>
    %136 = arith.addf %130, %135 : vector<8x4xf32>
    %c0_201 = arith.constant 0 : index
    %c1_202 = arith.constant 1 : index
    %c1_203 = arith.constant 1 : index
    %c0_204 = arith.constant 0 : index
    %137 = vector.load %arg4[%c0_201, %c1_202, %c1_203, %c0_204] : memref<2x2x10x4xf32, #tpu.memory_space<vmem>>, vector<1x1x8x4xf32>
    %138 = vector.shape_cast %137 : vector<1x1x8x4xf32> to vector<8x4xf32>
    %c4_205 = arith.constant 4 : index
    %c3_206 = arith.constant 3 : index
    %c0_207 = arith.constant 0 : index
    %c0_208 = arith.constant 0 : index
    %139 = vector.load %arg5[%c4_205, %c3_206, %c0_207, %c0_208] : memref<5x5x4x4xf32, #tpu.memory_space<vmem>>, vector<1x1x4x4xf32>
    %140 = vector.shape_cast %139 : vector<1x1x4x4xf32> to vector<4x4xf32>
    %cst_209 = arith.constant dense<0.000000e+00> : vector<8x4xf32>
    %141 = tpu.matmul %138, %140, %cst_209 {dimension_numbers = #tpu.dot_dimension_numbers<[1], [0], [0], [1], [0, 0, 1, 1], [], []>} : vector<8x4xf32>, vector<4x4xf32>, vector<8x4xf32> -> vector<8x4xf32>
    %142 = arith.addf %136, %141 : vector<8x4xf32>
    %c0_210 = arith.constant 0 : index
    %c0_211 = arith.constant 0 : index
    %c2_212 = arith.constant 2 : index
    %c0_213 = arith.constant 0 : index
    %143 = vector.load %arg4[%c0_210, %c0_211, %c2_212, %c0_213] : memref<2x2x10x4xf32, #tpu.memory_space<vmem>>, vector<1x1x8x4xf32>
    %144 = vector.shape_cast %143 : vector<1x1x8x4xf32> to vector<8x4xf32>
    %c4_214 = arith.constant 4 : index
    %c4_215 = arith.constant 4 : index
    %c0_216 = arith.constant 0 : index
    %c0_217 = arith.constant 0 : index
    %145 = vector.load %arg5[%c4_214, %c4_215, %c0_216, %c0_217] : memref<5x5x4x4xf32, #tpu.memory_space<vmem>>, vector<1x1x4x4xf32>
    %146 = vector.shape_cast %145 : vector<1x1x4x4xf32> to vector<4x4xf32>
    %cst_218 = arith.constant dense<0.000000e+00> : vector<8x4xf32>
    %147 = tpu.matmul %144, %146, %cst_218 {dimension_numbers = #tpu.dot_dimension_numbers<[1], [0], [0], [1], [0, 0, 1, 1], [], []>} : vector<8x4xf32>, vector<4x4xf32>, vector<8x4xf32> -> vector<8x4xf32>
    %148 = arith.addf %142, %147 : vector<8x4xf32>
    %c0_219 = arith.constant 0 : index
    %c0_220 = arith.constant 0 : index
    %149 = vector.load %arg6[%c0_219, %c0_220] : memref<1x4xf32, #tpu.memory_space<vmem>>, vector<1x4xf32>
    %150 = vector.broadcast %149 : vector<1x4xf32> to vector<8x4xf32>
    %151 = arith.addf %148, %150 : vector<8x4xf32>
    %cst_221 = arith.constant 0.000000e+00 : f32
    %152 = vector.broadcast %cst_221 : f32 to vector<8x4xf32>
    %153 = arith.cmpf ogt, %151, %152 : vector<8x4xf32>
    %cst_222 = arith.constant 2.000000e-01 : f32
    %154 = vector.broadcast %cst_222 : f32 to vector<8x4xf32>
    %155 = arith.mulf %154, %151 : vector<8x4xf32>
    %156 = arith.select %153, %151, %155 : vector<8x4xi1>, vector<8x4xf32>
    %c0_223 = arith.constant 0 : index
    %c0_224 = arith.constant 0 : index
    %c0_225 = arith.constant 0 : index
    %157 = vector.load %arg7[%c0_223, %c0_224, %c0_225] : memref<1x8x4xf32, #tpu.memory_space<vmem>>, vector<1x8x4xf32>
    %158 = vector.shape_cast %157 : vector<1x8x4xf32> to vector<8x4xf32>
    %159 = vector.shape_cast %156 : vector<8x4xf32> to vector<1x8x4xf32>
    tpu.vector_store %arg7[%c0_223, %c0_224, %c0_225], %159 {strides = array<i32>} : memref<1x8x4xf32, #tpu.memory_space<vmem>>, vector<1x8x4xf32>,
    return
  }
  func.func @transform_0(%arg0: i32, %arg1: i32) -> (i32, i32, i32, i32) {
    %c10_i32 = arith.constant 10 : i32
    %0 = arith.muli %arg0, %c10_i32 : i32
    %1 = arith.addi %0, %arg1 : i32
    %c0_i32 = arith.constant 0 : i32
    %2 = arith.addi %1, %c0_i32 : i32
    %c0_i32_0 = arith.constant 0 : i32
    %c0_i32_1 = arith.constant 0 : i32
    %c0_i32_2 = arith.constant 0 : i32
    %c0_i32_3 = arith.constant 0 : i32
    return %2, %c0_i32_0, %c0_i32_1, %c0_i32_2 : i32, i32, i32, i32
  }
  func.func @transform_1(%arg0: i32, %arg1: i32) -> (i32, i32, i32, i32) {
    %c10_i32 = arith.constant 10 : i32
    %0 = arith.muli %arg0, %c10_i32 : i32
    %1 = arith.addi %0, %arg1 : i32
    %c1_i32 = arith.constant 1 : i32
    %2 = arith.addi %1, %c1_i32 : i32
    %c0_i32 = arith.constant 0 : i32
    %c0_i32_0 = arith.constant 0 : i32
    %c0_i32_1 = arith.constant 0 : i32
    %c0_i32_2 = arith.constant 0 : i32
    return %2, %c0_i32, %c0_i32_0, %c0_i32_1 : i32, i32, i32, i32
  }
  func.func @transform_2(%arg0: i32, %arg1: i32) -> (i32, i32, i32, i32) {
    %c10_i32 = arith.constant 10 : i32
    %0 = arith.muli %arg0, %c10_i32 : i32
    %1 = arith.addi %0, %arg1 : i32
    %c2_i32 = arith.constant 2 : i32
    %2 = arith.addi %1, %c2_i32 : i32
    %c0_i32 = arith.constant 0 : i32
    %c0_i32_0 = arith.constant 0 : i32
    %c0_i32_1 = arith.constant 0 : i32
    %c0_i32_2 = arith.constant 0 : i32
    return %2, %c0_i32, %c0_i32_0, %c0_i32_1 : i32, i32, i32, i32
  }
  func.func @transform_3(%arg0: i32, %arg1: i32) -> (i32, i32, i32, i32) {
    %c0_i32 = arith.constant 0 : i32
    %c0_i32_0 = arith.constant 0 : i32
    %c0_i32_1 = arith.constant 0 : i32
    %c0_i32_2 = arith.constant 0 : i32
    %c0_i32_3 = arith.constant 0 : i32
    return %c0_i32, %c0_i32_0, %c0_i32_1, %c0_i32_2 : i32, i32, i32, i32
  }
  func.func @transform_4(%arg0: i32, %arg1: i32) -> (i32, i32) {
    %c0_i32 = arith.constant 0 : i32
    %c0_i32_0 = arith.constant 0 : i32
    %c0_i32_1 = arith.constant 0 : i32
    return %c0_i32, %c0_i32_0 : i32, i32
  }
  func.func @transform_5(%arg0: i32, %arg1: i32) -> (i32, i32, i32) {
    %c8_i32 = arith.constant 8 : i32
    %0 = arith.muli %arg0, %c8_i32 : i32
    %1 = arith.addi %0, %arg1 : i32
    %c0_i32 = arith.constant 0 : i32
    %c0_i32_0 = arith.constant 0 : i32
    %c0_i32_1 = arith.constant 0 : i32
    return %1, %c0_i32, %c0_i32_0 : i32, i32, i32
  }
}

module attributes {stable_mosaic.version = 11 : i64} {
  func.func @kernel(%arg0: i32, %arg1: i32, %arg2: memref<2x2x6x4xf32, #tpu.memory_space<vmem>>, %arg3: memref<2x2x6x4xf32, #tpu.memory_space<vmem>>, %arg4: memref<2x2x6x4xf32, #tpu.memory_space<vmem>>, %arg5: memref<5x5x4x8xf32, #tpu.memory_space<vmem>>, %arg6: memref<1x4x8xf32, #tpu.memory_space<vmem>>, %arg7: memref<1x1x8xf32, #tpu.memory_space<vmem>>, %arg8: memref<1x1x8xf32, #tpu.memory_space<vmem>>) attributes {dimension_semantics = [#tpu.dimension_semantics<parallel>, #tpu.dimension_semantics<parallel>], iteration_bounds = array<i64: 2, 4>, scalar_prefetch = 0 : i64, scratch_operands = 0 : i64, tpu.core_type = #tpu.core_type<tc>, window_params = [{transform_indices = @transform_0, window_bounds = array<i64: 2, 2, 6, 4>}, {transform_indices = @transform_1, window_bounds = array<i64: 2, 2, 6, 4>}, {transform_indices = @transform_2, window_bounds = array<i64: 2, 2, 6, 4>}, {pipeline_mode = #tpu.pipeline_mode<synchronous>, transform_indices = @transform_3, window_bounds = array<i64: 5, 5, 4, 8>}, {transform_indices = @transform_4, window_bounds = array<i64: 1, 4, 8>}, {transform_indices = @transform_5, window_bounds = array<i64: 1, 1, 8>}, {transform_indices = @transform_6, window_bounds = array<i64: 1, 1, 8>}]} {
    %c0 = arith.constant 0 : index
    %c0_0 = arith.constant 0 : index
    %c0_1 = arith.constant 0 : index
    %c0_2 = arith.constant 0 : index
    %0 = vector.load %arg2[%c0, %c0_0, %c0_1, %c0_2] : memref<2x2x6x4xf32, #tpu.memory_space<vmem>>, vector<1x1x4x4xf32>
    %1 = vector.shape_cast %0 : vector<1x1x4x4xf32> to vector<4x4xf32>
    %c0_3 = arith.constant 0 : index
    %c0_4 = arith.constant 0 : index
    %c0_5 = arith.constant 0 : index
    %c0_6 = arith.constant 0 : index
    %2 = vector.load %arg5[%c0_3, %c0_4, %c0_5, %c0_6] : memref<5x5x4x8xf32, #tpu.memory_space<vmem>>, vector<1x1x4x8xf32>
    %3 = vector.shape_cast %2 : vector<1x1x4x8xf32> to vector<4x8xf32>
    %cst = arith.constant dense<0.000000e+00> : vector<4x8xf32>
    %4 = tpu.matmul %1, %3, %cst {dimension_numbers = #tpu.dot_dimension_numbers<[1], [0], [0], [1], [0, 0, 1, 1], [], []>} : vector<4x4xf32>, vector<4x8xf32>, vector<4x8xf32> -> vector<4x8xf32>
    %c0_7 = arith.constant 0 : index
    %c1 = arith.constant 1 : index
    %c0_8 = arith.constant 0 : index
    %c0_9 = arith.constant 0 : index
    %5 = vector.load %arg2[%c0_7, %c1, %c0_8, %c0_9] : memref<2x2x6x4xf32, #tpu.memory_space<vmem>>, vector<1x1x4x4xf32>
    %6 = vector.shape_cast %5 : vector<1x1x4x4xf32> to vector<4x4xf32>
    %c0_10 = arith.constant 0 : index
    %c1_11 = arith.constant 1 : index
    %c0_12 = arith.constant 0 : index
    %c0_13 = arith.constant 0 : index
    %7 = vector.load %arg5[%c0_10, %c1_11, %c0_12, %c0_13] : memref<5x5x4x8xf32, #tpu.memory_space<vmem>>, vector<1x1x4x8xf32>
    %8 = vector.shape_cast %7 : vector<1x1x4x8xf32> to vector<4x8xf32>
    %cst_14 = arith.constant dense<0.000000e+00> : vector<4x8xf32>
    %9 = tpu.matmul %6, %8, %cst_14 {dimension_numbers = #tpu.dot_dimension_numbers<[1], [0], [0], [1], [0, 0, 1, 1], [], []>} : vector<4x4xf32>, vector<4x8xf32>, vector<4x8xf32> -> vector<4x8xf32>
    %10 = arith.addf %4, %9 : vector<4x8xf32>
    %c0_15 = arith.constant 0 : index
    %c0_16 = arith.constant 0 : index
    %c1_17 = arith.constant 1 : index
    %c0_18 = arith.constant 0 : index
    %11 = vector.load %arg2[%c0_15, %c0_16, %c1_17, %c0_18] : memref<2x2x6x4xf32, #tpu.memory_space<vmem>>, vector<1x1x4x4xf32>
    %12 = vector.shape_cast %11 : vector<1x1x4x4xf32> to vector<4x4xf32>
    %c0_19 = arith.constant 0 : index
    %c2 = arith.constant 2 : index
    %c0_20 = arith.constant 0 : index
    %c0_21 = arith.constant 0 : index
    %13 = vector.load %arg5[%c0_19, %c2, %c0_20, %c0_21] : memref<5x5x4x8xf32, #tpu.memory_space<vmem>>, vector<1x1x4x8xf32>
    %14 = vector.shape_cast %13 : vector<1x1x4x8xf32> to vector<4x8xf32>
    %cst_22 = arith.constant dense<0.000000e+00> : vector<4x8xf32>
    %15 = tpu.matmul %12, %14, %cst_22 {dimension_numbers = #tpu.dot_dimension_numbers<[1], [0], [0], [1], [0, 0, 1, 1], [], []>} : vector<4x4xf32>, vector<4x8xf32>, vector<4x8xf32> -> vector<4x8xf32>
    %16 = arith.addf %10, %15 : vector<4x8xf32>
    %c0_23 = arith.constant 0 : index
    %c1_24 = arith.constant 1 : index
    %c1_25 = arith.constant 1 : index
    %c0_26 = arith.constant 0 : index
    %17 = vector.load %arg2[%c0_23, %c1_24, %c1_25, %c0_26] : memref<2x2x6x4xf32, #tpu.memory_space<vmem>>, vector<1x1x4x4xf32>
    %18 = vector.shape_cast %17 : vector<1x1x4x4xf32> to vector<4x4xf32>
    %c0_27 = arith.constant 0 : index
    %c3 = arith.constant 3 : index
    %c0_28 = arith.constant 0 : index
    %c0_29 = arith.constant 0 : index
    %19 = vector.load %arg5[%c0_27, %c3, %c0_28, %c0_29] : memref<5x5x4x8xf32, #tpu.memory_space<vmem>>, vector<1x1x4x8xf32>
    %20 = vector.shape_cast %19 : vector<1x1x4x8xf32> to vector<4x8xf32>
    %cst_30 = arith.constant dense<0.000000e+00> : vector<4x8xf32>
    %21 = tpu.matmul %18, %20, %cst_30 {dimension_numbers = #tpu.dot_dimension_numbers<[1], [0], [0], [1], [0, 0, 1, 1], [], []>} : vector<4x4xf32>, vector<4x8xf32>, vector<4x8xf32> -> vector<4x8xf32>
    %22 = arith.addf %16, %21 : vector<4x8xf32>
    %c0_31 = arith.constant 0 : index
    %c0_32 = arith.constant 0 : index
    %c2_33 = arith.constant 2 : index
    %c0_34 = arith.constant 0 : index
    %23 = vector.load %arg2[%c0_31, %c0_32, %c2_33, %c0_34] : memref<2x2x6x4xf32, #tpu.memory_space<vmem>>, vector<1x1x4x4xf32>
    %24 = vector.shape_cast %23 : vector<1x1x4x4xf32> to vector<4x4xf32>
    %c0_35 = arith.constant 0 : index
    %c4 = arith.constant 4 : index
    %c0_36 = arith.constant 0 : index
    %c0_37 = arith.constant 0 : index
    %25 = vector.load %arg5[%c0_35, %c4, %c0_36, %c0_37] : memref<5x5x4x8xf32, #tpu.memory_space<vmem>>, vector<1x1x4x8xf32>
    %26 = vector.shape_cast %25 : vector<1x1x4x8xf32> to vector<4x8xf32>
    %cst_38 = arith.constant dense<0.000000e+00> : vector<4x8xf32>
    %27 = tpu.matmul %24, %26, %cst_38 {dimension_numbers = #tpu.dot_dimension_numbers<[1], [0], [0], [1], [0, 0, 1, 1], [], []>} : vector<4x4xf32>, vector<4x8xf32>, vector<4x8xf32> -> vector<4x8xf32>
    %28 = arith.addf %22, %27 : vector<4x8xf32>
    %c1_39 = arith.constant 1 : index
    %c0_40 = arith.constant 0 : index
    %c0_41 = arith.constant 0 : index
    %c0_42 = arith.constant 0 : index
    %29 = vector.load %arg2[%c1_39, %c0_40, %c0_41, %c0_42] : memref<2x2x6x4xf32, #tpu.memory_space<vmem>>, vector<1x1x4x4xf32>
    %30 = vector.shape_cast %29 : vector<1x1x4x4xf32> to vector<4x4xf32>
    %c1_43 = arith.constant 1 : index
    %c0_44 = arith.constant 0 : index
    %c0_45 = arith.constant 0 : index
    %c0_46 = arith.constant 0 : index
    %31 = vector.load %arg5[%c1_43, %c0_44, %c0_45, %c0_46] : memref<5x5x4x8xf32, #tpu.memory_space<vmem>>, vector<1x1x4x8xf32>
    %32 = vector.shape_cast %31 : vector<1x1x4x8xf32> to vector<4x8xf32>
    %cst_47 = arith.constant dense<0.000000e+00> : vector<4x8xf32>
    %33 = tpu.matmul %30, %32, %cst_47 {dimension_numbers = #tpu.dot_dimension_numbers<[1], [0], [0], [1], [0, 0, 1, 1], [], []>} : vector<4x4xf32>, vector<4x8xf32>, vector<4x8xf32> -> vector<4x8xf32>
    %34 = arith.addf %28, %33 : vector<4x8xf32>
    %c1_48 = arith.constant 1 : index
    %c1_49 = arith.constant 1 : index
    %c0_50 = arith.constant 0 : index
    %c0_51 = arith.constant 0 : index
    %35 = vector.load %arg2[%c1_48, %c1_49, %c0_50, %c0_51] : memref<2x2x6x4xf32, #tpu.memory_space<vmem>>, vector<1x1x4x4xf32>
    %36 = vector.shape_cast %35 : vector<1x1x4x4xf32> to vector<4x4xf32>
    %c1_52 = arith.constant 1 : index
    %c1_53 = arith.constant 1 : index
    %c0_54 = arith.constant 0 : index
    %c0_55 = arith.constant 0 : index
    %37 = vector.load %arg5[%c1_52, %c1_53, %c0_54, %c0_55] : memref<5x5x4x8xf32, #tpu.memory_space<vmem>>, vector<1x1x4x8xf32>
    %38 = vector.shape_cast %37 : vector<1x1x4x8xf32> to vector<4x8xf32>
    %cst_56 = arith.constant dense<0.000000e+00> : vector<4x8xf32>
    %39 = tpu.matmul %36, %38, %cst_56 {dimension_numbers = #tpu.dot_dimension_numbers<[1], [0], [0], [1], [0, 0, 1, 1], [], []>} : vector<4x4xf32>, vector<4x8xf32>, vector<4x8xf32> -> vector<4x8xf32>
    %40 = arith.addf %34, %39 : vector<4x8xf32>
    %c1_57 = arith.constant 1 : index
    %c0_58 = arith.constant 0 : index
    %c1_59 = arith.constant 1 : index
    %c0_60 = arith.constant 0 : index
    %41 = vector.load %arg2[%c1_57, %c0_58, %c1_59, %c0_60] : memref<2x2x6x4xf32, #tpu.memory_space<vmem>>, vector<1x1x4x4xf32>
    %42 = vector.shape_cast %41 : vector<1x1x4x4xf32> to vector<4x4xf32>
    %c1_61 = arith.constant 1 : index
    %c2_62 = arith.constant 2 : index
    %c0_63 = arith.constant 0 : index
    %c0_64 = arith.constant 0 : index
    %43 = vector.load %arg5[%c1_61, %c2_62, %c0_63, %c0_64] : memref<5x5x4x8xf32, #tpu.memory_space<vmem>>, vector<1x1x4x8xf32>
    %44 = vector.shape_cast %43 : vector<1x1x4x8xf32> to vector<4x8xf32>
    %cst_65 = arith.constant dense<0.000000e+00> : vector<4x8xf32>
    %45 = tpu.matmul %42, %44, %cst_65 {dimension_numbers = #tpu.dot_dimension_numbers<[1], [0], [0], [1], [0, 0, 1, 1], [], []>} : vector<4x4xf32>, vector<4x8xf32>, vector<4x8xf32> -> vector<4x8xf32>
    %46 = arith.addf %40, %45 : vector<4x8xf32>
    %c1_66 = arith.constant 1 : index
    %c1_67 = arith.constant 1 : index
    %c1_68 = arith.constant 1 : index
    %c0_69 = arith.constant 0 : index
    %47 = vector.load %arg2[%c1_66, %c1_67, %c1_68, %c0_69] : memref<2x2x6x4xf32, #tpu.memory_space<vmem>>, vector<1x1x4x4xf32>
    %48 = vector.shape_cast %47 : vector<1x1x4x4xf32> to vector<4x4xf32>
    %c1_70 = arith.constant 1 : index
    %c3_71 = arith.constant 3 : index
    %c0_72 = arith.constant 0 : index
    %c0_73 = arith.constant 0 : index
    %49 = vector.load %arg5[%c1_70, %c3_71, %c0_72, %c0_73] : memref<5x5x4x8xf32, #tpu.memory_space<vmem>>, vector<1x1x4x8xf32>
    %50 = vector.shape_cast %49 : vector<1x1x4x8xf32> to vector<4x8xf32>
    %cst_74 = arith.constant dense<0.000000e+00> : vector<4x8xf32>
    %51 = tpu.matmul %48, %50, %cst_74 {dimension_numbers = #tpu.dot_dimension_numbers<[1], [0], [0], [1], [0, 0, 1, 1], [], []>} : vector<4x4xf32>, vector<4x8xf32>, vector<4x8xf32> -> vector<4x8xf32>
    %52 = arith.addf %46, %51 : vector<4x8xf32>
    %c1_75 = arith.constant 1 : index
    %c0_76 = arith.constant 0 : index
    %c2_77 = arith.constant 2 : index
    %c0_78 = arith.constant 0 : index
    %53 = vector.load %arg2[%c1_75, %c0_76, %c2_77, %c0_78] : memref<2x2x6x4xf32, #tpu.memory_space<vmem>>, vector<1x1x4x4xf32>
    %54 = vector.shape_cast %53 : vector<1x1x4x4xf32> to vector<4x4xf32>
    %c1_79 = arith.constant 1 : index
    %c4_80 = arith.constant 4 : index
    %c0_81 = arith.constant 0 : index
    %c0_82 = arith.constant 0 : index
    %55 = vector.load %arg5[%c1_79, %c4_80, %c0_81, %c0_82] : memref<5x5x4x8xf32, #tpu.memory_space<vmem>>, vector<1x1x4x8xf32>
    %56 = vector.shape_cast %55 : vector<1x1x4x8xf32> to vector<4x8xf32>
    %cst_83 = arith.constant dense<0.000000e+00> : vector<4x8xf32>
    %57 = tpu.matmul %54, %56, %cst_83 {dimension_numbers = #tpu.dot_dimension_numbers<[1], [0], [0], [1], [0, 0, 1, 1], [], []>} : vector<4x4xf32>, vector<4x8xf32>, vector<4x8xf32> -> vector<4x8xf32>
    %58 = arith.addf %52, %57 : vector<4x8xf32>
    %c0_84 = arith.constant 0 : index
    %c0_85 = arith.constant 0 : index
    %c0_86 = arith.constant 0 : index
    %c0_87 = arith.constant 0 : index
    %59 = vector.load %arg3[%c0_84, %c0_85, %c0_86, %c0_87] : memref<2x2x6x4xf32, #tpu.memory_space<vmem>>, vector<1x1x4x4xf32>
    %60 = vector.shape_cast %59 : vector<1x1x4x4xf32> to vector<4x4xf32>
    %c2_88 = arith.constant 2 : index
    %c0_89 = arith.constant 0 : index
    %c0_90 = arith.constant 0 : index
    %c0_91 = arith.constant 0 : index
    %61 = vector.load %arg5[%c2_88, %c0_89, %c0_90, %c0_91] : memref<5x5x4x8xf32, #tpu.memory_space<vmem>>, vector<1x1x4x8xf32>
    %62 = vector.shape_cast %61 : vector<1x1x4x8xf32> to vector<4x8xf32>
    %cst_92 = arith.constant dense<0.000000e+00> : vector<4x8xf32>
    %63 = tpu.matmul %60, %62, %cst_92 {dimension_numbers = #tpu.dot_dimension_numbers<[1], [0], [0], [1], [0, 0, 1, 1], [], []>} : vector<4x4xf32>, vector<4x8xf32>, vector<4x8xf32> -> vector<4x8xf32>
    %64 = arith.addf %58, %63 : vector<4x8xf32>
    %c0_93 = arith.constant 0 : index
    %c1_94 = arith.constant 1 : index
    %c0_95 = arith.constant 0 : index
    %c0_96 = arith.constant 0 : index
    %65 = vector.load %arg3[%c0_93, %c1_94, %c0_95, %c0_96] : memref<2x2x6x4xf32, #tpu.memory_space<vmem>>, vector<1x1x4x4xf32>
    %66 = vector.shape_cast %65 : vector<1x1x4x4xf32> to vector<4x4xf32>
    %c2_97 = arith.constant 2 : index
    %c1_98 = arith.constant 1 : index
    %c0_99 = arith.constant 0 : index
    %c0_100 = arith.constant 0 : index
    %67 = vector.load %arg5[%c2_97, %c1_98, %c0_99, %c0_100] : memref<5x5x4x8xf32, #tpu.memory_space<vmem>>, vector<1x1x4x8xf32>
    %68 = vector.shape_cast %67 : vector<1x1x4x8xf32> to vector<4x8xf32>
    %cst_101 = arith.constant dense<0.000000e+00> : vector<4x8xf32>
    %69 = tpu.matmul %66, %68, %cst_101 {dimension_numbers = #tpu.dot_dimension_numbers<[1], [0], [0], [1], [0, 0, 1, 1], [], []>} : vector<4x4xf32>, vector<4x8xf32>, vector<4x8xf32> -> vector<4x8xf32>
    %70 = arith.addf %64, %69 : vector<4x8xf32>
    %c0_102 = arith.constant 0 : index
    %c0_103 = arith.constant 0 : index
    %c1_104 = arith.constant 1 : index
    %c0_105 = arith.constant 0 : index
    %71 = vector.load %arg3[%c0_102, %c0_103, %c1_104, %c0_105] : memref<2x2x6x4xf32, #tpu.memory_space<vmem>>, vector<1x1x4x4xf32>
    %72 = vector.shape_cast %71 : vector<1x1x4x4xf32> to vector<4x4xf32>
    %c2_106 = arith.constant 2 : index
    %c2_107 = arith.constant 2 : index
    %c0_108 = arith.constant 0 : index
    %c0_109 = arith.constant 0 : index
    %73 = vector.load %arg5[%c2_106, %c2_107, %c0_108, %c0_109] : memref<5x5x4x8xf32, #tpu.memory_space<vmem>>, vector<1x1x4x8xf32>
    %74 = vector.shape_cast %73 : vector<1x1x4x8xf32> to vector<4x8xf32>
    %cst_110 = arith.constant dense<0.000000e+00> : vector<4x8xf32>
    %75 = tpu.matmul %72, %74, %cst_110 {dimension_numbers = #tpu.dot_dimension_numbers<[1], [0], [0], [1], [0, 0, 1, 1], [], []>} : vector<4x4xf32>, vector<4x8xf32>, vector<4x8xf32> -> vector<4x8xf32>
    %76 = arith.addf %70, %75 : vector<4x8xf32>
    %c0_111 = arith.constant 0 : index
    %c1_112 = arith.constant 1 : index
    %c1_113 = arith.constant 1 : index
    %c0_114 = arith.constant 0 : index
    %77 = vector.load %arg3[%c0_111, %c1_112, %c1_113, %c0_114] : memref<2x2x6x4xf32, #tpu.memory_space<vmem>>, vector<1x1x4x4xf32>
    %78 = vector.shape_cast %77 : vector<1x1x4x4xf32> to vector<4x4xf32>
    %c2_115 = arith.constant 2 : index
    %c3_116 = arith.constant 3 : index
    %c0_117 = arith.constant 0 : index
    %c0_118 = arith.constant 0 : index
    %79 = vector.load %arg5[%c2_115, %c3_116, %c0_117, %c0_118] : memref<5x5x4x8xf32, #tpu.memory_space<vmem>>, vector<1x1x4x8xf32>
    %80 = vector.shape_cast %79 : vector<1x1x4x8xf32> to vector<4x8xf32>
    %cst_119 = arith.constant dense<0.000000e+00> : vector<4x8xf32>
    %81 = tpu.matmul %78, %80, %cst_119 {dimension_numbers = #tpu.dot_dimension_numbers<[1], [0], [0], [1], [0, 0, 1, 1], [], []>} : vector<4x4xf32>, vector<4x8xf32>, vector<4x8xf32> -> vector<4x8xf32>
    %82 = arith.addf %76, %81 : vector<4x8xf32>
    %c0_120 = arith.constant 0 : index
    %c0_121 = arith.constant 0 : index
    %c2_122 = arith.constant 2 : index
    %c0_123 = arith.constant 0 : index
    %83 = vector.load %arg3[%c0_120, %c0_121, %c2_122, %c0_123] : memref<2x2x6x4xf32, #tpu.memory_space<vmem>>, vector<1x1x4x4xf32>
    %84 = vector.shape_cast %83 : vector<1x1x4x4xf32> to vector<4x4xf32>
    %c2_124 = arith.constant 2 : index
    %c4_125 = arith.constant 4 : index
    %c0_126 = arith.constant 0 : index
    %c0_127 = arith.constant 0 : index
    %85 = vector.load %arg5[%c2_124, %c4_125, %c0_126, %c0_127] : memref<5x5x4x8xf32, #tpu.memory_space<vmem>>, vector<1x1x4x8xf32>
    %86 = vector.shape_cast %85 : vector<1x1x4x8xf32> to vector<4x8xf32>
    %cst_128 = arith.constant dense<0.000000e+00> : vector<4x8xf32>
    %87 = tpu.matmul %84, %86, %cst_128 {dimension_numbers = #tpu.dot_dimension_numbers<[1], [0], [0], [1], [0, 0, 1, 1], [], []>} : vector<4x4xf32>, vector<4x8xf32>, vector<4x8xf32> -> vector<4x8xf32>
    %88 = arith.addf %82, %87 : vector<4x8xf32>
    %c1_129 = arith.constant 1 : index
    %c0_130 = arith.constant 0 : index
    %c0_131 = arith.constant 0 : index
    %c0_132 = arith.constant 0 : index
    %89 = vector.load %arg3[%c1_129, %c0_130, %c0_131, %c0_132] : memref<2x2x6x4xf32, #tpu.memory_space<vmem>>, vector<1x1x4x4xf32>
    %90 = vector.shape_cast %89 : vector<1x1x4x4xf32> to vector<4x4xf32>
    %c3_133 = arith.constant 3 : index
    %c0_134 = arith.constant 0 : index
    %c0_135 = arith.constant 0 : index
    %c0_136 = arith.constant 0 : index
    %91 = vector.load %arg5[%c3_133, %c0_134, %c0_135, %c0_136] : memref<5x5x4x8xf32, #tpu.memory_space<vmem>>, vector<1x1x4x8xf32>
    %92 = vector.shape_cast %91 : vector<1x1x4x8xf32> to vector<4x8xf32>
    %cst_137 = arith.constant dense<0.000000e+00> : vector<4x8xf32>
    %93 = tpu.matmul %90, %92, %cst_137 {dimension_numbers = #tpu.dot_dimension_numbers<[1], [0], [0], [1], [0, 0, 1, 1], [], []>} : vector<4x4xf32>, vector<4x8xf32>, vector<4x8xf32> -> vector<4x8xf32>
    %94 = arith.addf %88, %93 : vector<4x8xf32>
    %c1_138 = arith.constant 1 : index
    %c1_139 = arith.constant 1 : index
    %c0_140 = arith.constant 0 : index
    %c0_141 = arith.constant 0 : index
    %95 = vector.load %arg3[%c1_138, %c1_139, %c0_140, %c0_141] : memref<2x2x6x4xf32, #tpu.memory_space<vmem>>, vector<1x1x4x4xf32>
    %96 = vector.shape_cast %95 : vector<1x1x4x4xf32> to vector<4x4xf32>
    %c3_142 = arith.constant 3 : index
    %c1_143 = arith.constant 1 : index
    %c0_144 = arith.constant 0 : index
    %c0_145 = arith.constant 0 : index
    %97 = vector.load %arg5[%c3_142, %c1_143, %c0_144, %c0_145] : memref<5x5x4x8xf32, #tpu.memory_space<vmem>>, vector<1x1x4x8xf32>
    %98 = vector.shape_cast %97 : vector<1x1x4x8xf32> to vector<4x8xf32>
    %cst_146 = arith.constant dense<0.000000e+00> : vector<4x8xf32>
    %99 = tpu.matmul %96, %98, %cst_146 {dimension_numbers = #tpu.dot_dimension_numbers<[1], [0], [0], [1], [0, 0, 1, 1], [], []>} : vector<4x4xf32>, vector<4x8xf32>, vector<4x8xf32> -> vector<4x8xf32>
    %100 = arith.addf %94, %99 : vector<4x8xf32>
    %c1_147 = arith.constant 1 : index
    %c0_148 = arith.constant 0 : index
    %c1_149 = arith.constant 1 : index
    %c0_150 = arith.constant 0 : index
    %101 = vector.load %arg3[%c1_147, %c0_148, %c1_149, %c0_150] : memref<2x2x6x4xf32, #tpu.memory_space<vmem>>, vector<1x1x4x4xf32>
    %102 = vector.shape_cast %101 : vector<1x1x4x4xf32> to vector<4x4xf32>
    %c3_151 = arith.constant 3 : index
    %c2_152 = arith.constant 2 : index
    %c0_153 = arith.constant 0 : index
    %c0_154 = arith.constant 0 : index
    %103 = vector.load %arg5[%c3_151, %c2_152, %c0_153, %c0_154] : memref<5x5x4x8xf32, #tpu.memory_space<vmem>>, vector<1x1x4x8xf32>
    %104 = vector.shape_cast %103 : vector<1x1x4x8xf32> to vector<4x8xf32>
    %cst_155 = arith.constant dense<0.000000e+00> : vector<4x8xf32>
    %105 = tpu.matmul %102, %104, %cst_155 {dimension_numbers = #tpu.dot_dimension_numbers<[1], [0], [0], [1], [0, 0, 1, 1], [], []>} : vector<4x4xf32>, vector<4x8xf32>, vector<4x8xf32> -> vector<4x8xf32>
    %106 = arith.addf %100, %105 : vector<4x8xf32>
    %c1_156 = arith.constant 1 : index
    %c1_157 = arith.constant 1 : index
    %c1_158 = arith.constant 1 : index
    %c0_159 = arith.constant 0 : index
    %107 = vector.load %arg3[%c1_156, %c1_157, %c1_158, %c0_159] : memref<2x2x6x4xf32, #tpu.memory_space<vmem>>, vector<1x1x4x4xf32>
    %108 = vector.shape_cast %107 : vector<1x1x4x4xf32> to vector<4x4xf32>
    %c3_160 = arith.constant 3 : index
    %c3_161 = arith.constant 3 : index
    %c0_162 = arith.constant 0 : index
    %c0_163 = arith.constant 0 : index
    %109 = vector.load %arg5[%c3_160, %c3_161, %c0_162, %c0_163] : memref<5x5x4x8xf32, #tpu.memory_space<vmem>>, vector<1x1x4x8xf32>
    %110 = vector.shape_cast %109 : vector<1x1x4x8xf32> to vector<4x8xf32>
    %cst_164 = arith.constant dense<0.000000e+00> : vector<4x8xf32>
    %111 = tpu.matmul %108, %110, %cst_164 {dimension_numbers = #tpu.dot_dimension_numbers<[1], [0], [0], [1], [0, 0, 1, 1], [], []>} : vector<4x4xf32>, vector<4x8xf32>, vector<4x8xf32> -> vector<4x8xf32>
    %112 = arith.addf %106, %111 : vector<4x8xf32>
    %c1_165 = arith.constant 1 : index
    %c0_166 = arith.constant 0 : index
    %c2_167 = arith.constant 2 : index
    %c0_168 = arith.constant 0 : index
    %113 = vector.load %arg3[%c1_165, %c0_166, %c2_167, %c0_168] : memref<2x2x6x4xf32, #tpu.memory_space<vmem>>, vector<1x1x4x4xf32>
    %114 = vector.shape_cast %113 : vector<1x1x4x4xf32> to vector<4x4xf32>
    %c3_169 = arith.constant 3 : index
    %c4_170 = arith.constant 4 : index
    %c0_171 = arith.constant 0 : index
    %c0_172 = arith.constant 0 : index
    %115 = vector.load %arg5[%c3_169, %c4_170, %c0_171, %c0_172] : memref<5x5x4x8xf32, #tpu.memory_space<vmem>>, vector<1x1x4x8xf32>
    %116 = vector.shape_cast %115 : vector<1x1x4x8xf32> to vector<4x8xf32>
    %cst_173 = arith.constant dense<0.000000e+00> : vector<4x8xf32>
    %117 = tpu.matmul %114, %116, %cst_173 {dimension_numbers = #tpu.dot_dimension_numbers<[1], [0], [0], [1], [0, 0, 1, 1], [], []>} : vector<4x4xf32>, vector<4x8xf32>, vector<4x8xf32> -> vector<4x8xf32>
    %118 = arith.addf %112, %117 : vector<4x8xf32>
    %c0_174 = arith.constant 0 : index
    %c0_175 = arith.constant 0 : index
    %c0_176 = arith.constant 0 : index
    %c0_177 = arith.constant 0 : index
    %119 = vector.load %arg4[%c0_174, %c0_175, %c0_176, %c0_177] : memref<2x2x6x4xf32, #tpu.memory_space<vmem>>, vector<1x1x4x4xf32>
    %120 = vector.shape_cast %119 : vector<1x1x4x4xf32> to vector<4x4xf32>
    %c4_178 = arith.constant 4 : index
    %c0_179 = arith.constant 0 : index
    %c0_180 = arith.constant 0 : index
    %c0_181 = arith.constant 0 : index
    %121 = vector.load %arg5[%c4_178, %c0_179, %c0_180, %c0_181] : memref<5x5x4x8xf32, #tpu.memory_space<vmem>>, vector<1x1x4x8xf32>
    %122 = vector.shape_cast %121 : vector<1x1x4x8xf32> to vector<4x8xf32>
    %cst_182 = arith.constant dense<0.000000e+00> : vector<4x8xf32>
    %123 = tpu.matmul %120, %122, %cst_182 {dimension_numbers = #tpu.dot_dimension_numbers<[1], [0], [0], [1], [0, 0, 1, 1], [], []>} : vector<4x4xf32>, vector<4x8xf32>, vector<4x8xf32> -> vector<4x8xf32>
    %124 = arith.addf %118, %123 : vector<4x8xf32>
    %c0_183 = arith.constant 0 : index
    %c1_184 = arith.constant 1 : index
    %c0_185 = arith.constant 0 : index
    %c0_186 = arith.constant 0 : index
    %125 = vector.load %arg4[%c0_183, %c1_184, %c0_185, %c0_186] : memref<2x2x6x4xf32, #tpu.memory_space<vmem>>, vector<1x1x4x4xf32>
    %126 = vector.shape_cast %125 : vector<1x1x4x4xf32> to vector<4x4xf32>
    %c4_187 = arith.constant 4 : index
    %c1_188 = arith.constant 1 : index
    %c0_189 = arith.constant 0 : index
    %c0_190 = arith.constant 0 : index
    %127 = vector.load %arg5[%c4_187, %c1_188, %c0_189, %c0_190] : memref<5x5x4x8xf32, #tpu.memory_space<vmem>>, vector<1x1x4x8xf32>
    %128 = vector.shape_cast %127 : vector<1x1x4x8xf32> to vector<4x8xf32>
    %cst_191 = arith.constant dense<0.000000e+00> : vector<4x8xf32>
    %129 = tpu.matmul %126, %128, %cst_191 {dimension_numbers = #tpu.dot_dimension_numbers<[1], [0], [0], [1], [0, 0, 1, 1], [], []>} : vector<4x4xf32>, vector<4x8xf32>, vector<4x8xf32> -> vector<4x8xf32>
    %130 = arith.addf %124, %129 : vector<4x8xf32>
    %c0_192 = arith.constant 0 : index
    %c0_193 = arith.constant 0 : index
    %c1_194 = arith.constant 1 : index
    %c0_195 = arith.constant 0 : index
    %131 = vector.load %arg4[%c0_192, %c0_193, %c1_194, %c0_195] : memref<2x2x6x4xf32, #tpu.memory_space<vmem>>, vector<1x1x4x4xf32>
    %132 = vector.shape_cast %131 : vector<1x1x4x4xf32> to vector<4x4xf32>
    %c4_196 = arith.constant 4 : index
    %c2_197 = arith.constant 2 : index
    %c0_198 = arith.constant 0 : index
    %c0_199 = arith.constant 0 : index
    %133 = vector.load %arg5[%c4_196, %c2_197, %c0_198, %c0_199] : memref<5x5x4x8xf32, #tpu.memory_space<vmem>>, vector<1x1x4x8xf32>
    %134 = vector.shape_cast %133 : vector<1x1x4x8xf32> to vector<4x8xf32>
    %cst_200 = arith.constant dense<0.000000e+00> : vector<4x8xf32>
    %135 = tpu.matmul %132, %134, %cst_200 {dimension_numbers = #tpu.dot_dimension_numbers<[1], [0], [0], [1], [0, 0, 1, 1], [], []>} : vector<4x4xf32>, vector<4x8xf32>, vector<4x8xf32> -> vector<4x8xf32>
    %136 = arith.addf %130, %135 : vector<4x8xf32>
    %c0_201 = arith.constant 0 : index
    %c1_202 = arith.constant 1 : index
    %c1_203 = arith.constant 1 : index
    %c0_204 = arith.constant 0 : index
    %137 = vector.load %arg4[%c0_201, %c1_202, %c1_203, %c0_204] : memref<2x2x6x4xf32, #tpu.memory_space<vmem>>, vector<1x1x4x4xf32>
    %138 = vector.shape_cast %137 : vector<1x1x4x4xf32> to vector<4x4xf32>
    %c4_205 = arith.constant 4 : index
    %c3_206 = arith.constant 3 : index
    %c0_207 = arith.constant 0 : index
    %c0_208 = arith.constant 0 : index
    %139 = vector.load %arg5[%c4_205, %c3_206, %c0_207, %c0_208] : memref<5x5x4x8xf32, #tpu.memory_space<vmem>>, vector<1x1x4x8xf32>
    %140 = vector.shape_cast %139 : vector<1x1x4x8xf32> to vector<4x8xf32>
    %cst_209 = arith.constant dense<0.000000e+00> : vector<4x8xf32>
    %141 = tpu.matmul %138, %140, %cst_209 {dimension_numbers = #tpu.dot_dimension_numbers<[1], [0], [0], [1], [0, 0, 1, 1], [], []>} : vector<4x4xf32>, vector<4x8xf32>, vector<4x8xf32> -> vector<4x8xf32>
    %142 = arith.addf %136, %141 : vector<4x8xf32>
    %c0_210 = arith.constant 0 : index
    %c0_211 = arith.constant 0 : index
    %c2_212 = arith.constant 2 : index
    %c0_213 = arith.constant 0 : index
    %143 = vector.load %arg4[%c0_210, %c0_211, %c2_212, %c0_213] : memref<2x2x6x4xf32, #tpu.memory_space<vmem>>, vector<1x1x4x4xf32>
    %144 = vector.shape_cast %143 : vector<1x1x4x4xf32> to vector<4x4xf32>
    %c4_214 = arith.constant 4 : index
    %c4_215 = arith.constant 4 : index
    %c0_216 = arith.constant 0 : index
    %c0_217 = arith.constant 0 : index
    %145 = vector.load %arg5[%c4_214, %c4_215, %c0_216, %c0_217] : memref<5x5x4x8xf32, #tpu.memory_space<vmem>>, vector<1x1x4x8xf32>
    %146 = vector.shape_cast %145 : vector<1x1x4x8xf32> to vector<4x8xf32>
    %cst_218 = arith.constant dense<0.000000e+00> : vector<4x8xf32>
    %147 = tpu.matmul %144, %146, %cst_218 {dimension_numbers = #tpu.dot_dimension_numbers<[1], [0], [0], [1], [0, 0, 1, 1], [], []>} : vector<4x4xf32>, vector<4x8xf32>, vector<4x8xf32> -> vector<4x8xf32>
    %148 = arith.addf %142, %147 : vector<4x8xf32>
    %c0_219 = arith.constant 0 : index
    %c0_220 = arith.constant 0 : index
    %c0_221 = arith.constant 0 : index
    %149 = vector.load %arg6[%c0_219, %c0_220, %c0_221] : memref<1x4x8xf32, #tpu.memory_space<vmem>>, vector<1x4x8xf32>
    %150 = vector.shape_cast %149 : vector<1x4x8xf32> to vector<4x8xf32>
    %151 = vector.shape_cast %148 : vector<4x8xf32> to vector<1x4x8xf32>
    tpu.vector_store %arg6[%c0_219, %c0_220, %c0_221], %151 {strides = array<i32>} : memref<1x4x8xf32, #tpu.memory_space<vmem>>, vector<1x4x8xf32>,
    %cst_222 = arith.constant dense<0.000000e+00> : vector<8xf32>
    %152 = vector.multi_reduction <add>, %148, %cst_222 [0] : vector<4x8xf32> to vector<8xf32>
    %153 = vector.shape_cast %152 : vector<8xf32> to vector<1x8xf32>
    %c0_223 = arith.constant 0 : index
    %c0_224 = arith.constant 0 : index
    %c0_225 = arith.constant 0 : index
    %154 = vector.load %arg7[%c0_223, %c0_224, %c0_225] : memref<1x1x8xf32, #tpu.memory_space<vmem>>, vector<1x1x8xf32>
    %155 = vector.shape_cast %154 : vector<1x1x8xf32> to vector<1x8xf32>
    %156 = vector.shape_cast %153 : vector<1x8xf32> to vector<1x1x8xf32>
    tpu.vector_store %arg7[%c0_223, %c0_224, %c0_225], %156 {strides = array<i32>} : memref<1x1x8xf32, #tpu.memory_space<vmem>>, vector<1x1x8xf32>,
    %157 = arith.mulf %148, %148 : vector<4x8xf32>
    %cst_226 = arith.constant dense<0.000000e+00> : vector<8xf32>
    %158 = vector.multi_reduction <add>, %157, %cst_226 [0] : vector<4x8xf32> to vector<8xf32>
    %159 = vector.shape_cast %158 : vector<8xf32> to vector<1x8xf32>
    %c0_227 = arith.constant 0 : index
    %c0_228 = arith.constant 0 : index
    %c0_229 = arith.constant 0 : index
    %160 = vector.load %arg8[%c0_227, %c0_228, %c0_229] : memref<1x1x8xf32, #tpu.memory_space<vmem>>, vector<1x1x8xf32>
    %161 = vector.shape_cast %160 : vector<1x1x8xf32> to vector<1x8xf32>
    %162 = vector.shape_cast %159 : vector<1x8xf32> to vector<1x1x8xf32>
    tpu.vector_store %arg8[%c0_227, %c0_228, %c0_229], %162 {strides = array<i32>} : memref<1x1x8xf32, #tpu.memory_space<vmem>>, vector<1x1x8xf32>,
    return
  }
  func.func @transform_0(%arg0: i32, %arg1: i32) -> (i32, i32, i32, i32) {
    %c6_i32 = arith.constant 6 : i32
    %0 = arith.muli %arg0, %c6_i32 : i32
    %1 = arith.addi %0, %arg1 : i32
    %c0_i32 = arith.constant 0 : i32
    %2 = arith.addi %1, %c0_i32 : i32
    %c0_i32_0 = arith.constant 0 : i32
    %c0_i32_1 = arith.constant 0 : i32
    %c0_i32_2 = arith.constant 0 : i32
    %c0_i32_3 = arith.constant 0 : i32
    return %2, %c0_i32_0, %c0_i32_1, %c0_i32_2 : i32, i32, i32, i32
  }
  func.func @transform_1(%arg0: i32, %arg1: i32) -> (i32, i32, i32, i32) {
    %c6_i32 = arith.constant 6 : i32
    %0 = arith.muli %arg0, %c6_i32 : i32
    %1 = arith.addi %0, %arg1 : i32
    %c1_i32 = arith.constant 1 : i32
    %2 = arith.addi %1, %c1_i32 : i32
    %c0_i32 = arith.constant 0 : i32
    %c0_i32_0 = arith.constant 0 : i32
    %c0_i32_1 = arith.constant 0 : i32
    %c0_i32_2 = arith.constant 0 : i32
    return %2, %c0_i32, %c0_i32_0, %c0_i32_1 : i32, i32, i32, i32
  }
  func.func @transform_2(%arg0: i32, %arg1: i32) -> (i32, i32, i32, i32) {
    %c6_i32 = arith.constant 6 : i32
    %0 = arith.muli %arg0, %c6_i32 : i32
    %1 = arith.addi %0, %arg1 : i32
    %c2_i32 = arith.constant 2 : i32
    %2 = arith.addi %1, %c2_i32 : i32
    %c0_i32 = arith.constant 0 : i32
    %c0_i32_0 = arith.constant 0 : i32
    %c0_i32_1 = arith.constant 0 : i32
    %c0_i32_2 = arith.constant 0 : i32
    return %2, %c0_i32, %c0_i32_0, %c0_i32_1 : i32, i32, i32, i32
  }
  func.func @transform_3(%arg0: i32, %arg1: i32) -> (i32, i32, i32, i32) {
    %c0_i32 = arith.constant 0 : i32
    %c0_i32_0 = arith.constant 0 : i32
    %c0_i32_1 = arith.constant 0 : i32
    %c0_i32_2 = arith.constant 0 : i32
    %c0_i32_3 = arith.constant 0 : i32
    return %c0_i32, %c0_i32_0, %c0_i32_1, %c0_i32_2 : i32, i32, i32, i32
  }
  func.func @transform_4(%arg0: i32, %arg1: i32) -> (i32, i32, i32) {
    %c4_i32 = arith.constant 4 : i32
    %0 = arith.muli %arg0, %c4_i32 : i32
    %1 = arith.addi %0, %arg1 : i32
    %c0_i32 = arith.constant 0 : i32
    %c0_i32_0 = arith.constant 0 : i32
    %c0_i32_1 = arith.constant 0 : i32
    return %1, %c0_i32, %c0_i32_0 : i32, i32, i32
  }
  func.func @transform_5(%arg0: i32, %arg1: i32) -> (i32, i32, i32) {
    %c4_i32 = arith.constant 4 : i32
    %0 = arith.muli %arg0, %c4_i32 : i32
    %1 = arith.addi %0, %arg1 : i32
    %c0_i32 = arith.constant 0 : i32
    %c0_i32_0 = arith.constant 0 : i32
    %c0_i32_1 = arith.constant 0 : i32
    return %1, %c0_i32, %c0_i32_0 : i32, i32, i32
  }
  func.func @transform_6(%arg0: i32, %arg1: i32) -> (i32, i32, i32) {
    %c4_i32 = arith.constant 4 : i32
    %0 = arith.muli %arg0, %c4_i32 : i32
    %1 = arith.addi %0, %arg1 : i32
    %c0_i32 = arith.constant 0 : i32
    %c0_i32_0 = arith.constant 0 : i32
    %c0_i32_1 = arith.constant 0 : i32
    return %1, %c0_i32, %c0_i32_0 : i32, i32, i32
  }
}

module attributes {stable_mosaic.version = 11 : i64} {
  func.func @_bn_lrelu_kernel(%arg0: i32, %arg1: memref<2x128xf32, #tpu.memory_space<vmem>>, %arg2: memref<1x128xf32, #tpu.memory_space<vmem>>, %arg3: memref<1x128xf32, #tpu.memory_space<vmem>>, %arg4: memref<2x128xf32, #tpu.memory_space<vmem>>) attributes {dimension_semantics = [#tpu.dimension_semantics<parallel>], iteration_bounds = array<i64: 1>, scalar_prefetch = 0 : i64, scratch_operands = 0 : i64, tpu.core_type = #tpu.core_type<tc>, window_params = [{transform_indices = @transform_0, window_bounds = array<i64: 2, 128>}, {pipeline_mode = #tpu.pipeline_mode<synchronous>, transform_indices = @transform_1, window_bounds = array<i64: 1, 128>}, {pipeline_mode = #tpu.pipeline_mode<synchronous>, transform_indices = @transform_2, window_bounds = array<i64: 1, 128>}, {transform_indices = @transform_3, window_bounds = array<i64: 2, 128>}]} {
    %c0 = arith.constant 0 : index
    %c0_0 = arith.constant 0 : index
    %0 = vector.load %arg1[%c0, %c0_0] : memref<2x128xf32, #tpu.memory_space<vmem>>, vector<2x128xf32>
    %c0_1 = arith.constant 0 : index
    %c0_2 = arith.constant 0 : index
    %1 = vector.load %arg2[%c0_1, %c0_2] : memref<1x128xf32, #tpu.memory_space<vmem>>, vector<1x128xf32>
    %2 = vector.broadcast %1 : vector<1x128xf32> to vector<2x128xf32>
    %3 = arith.mulf %0, %2 : vector<2x128xf32>
    %c0_3 = arith.constant 0 : index
    %c0_4 = arith.constant 0 : index
    %4 = vector.load %arg3[%c0_3, %c0_4] : memref<1x128xf32, #tpu.memory_space<vmem>>, vector<1x128xf32>
    %5 = vector.broadcast %4 : vector<1x128xf32> to vector<2x128xf32>
    %6 = arith.addf %3, %5 : vector<2x128xf32>
    %cst = arith.constant 0.000000e+00 : f32
    %7 = vector.broadcast %cst : f32 to vector<2x128xf32>
    %8 = arith.cmpf ogt, %6, %7 : vector<2x128xf32>
    %cst_5 = arith.constant 2.000000e-01 : f32
    %9 = vector.broadcast %cst_5 : f32 to vector<2x128xf32>
    %10 = arith.mulf %9, %6 : vector<2x128xf32>
    %11 = arith.select %8, %6, %10 : vector<2x128xi1>, vector<2x128xf32>
    %c0_6 = arith.constant 0 : index
    %c0_7 = arith.constant 0 : index
    %12 = vector.load %arg4[%c0_6, %c0_7] : memref<2x128xf32, #tpu.memory_space<vmem>>, vector<2x128xf32>
    tpu.vector_store %arg4[%c0_6, %c0_7], %11 {strides = array<i32>} : memref<2x128xf32, #tpu.memory_space<vmem>>, vector<2x128xf32>,
    return
  }
  func.func @transform_0(%arg0: i32) -> (i32, i32) {
    %c0_i32 = arith.constant 0 : i32
    %c0_i32_0 = arith.constant 0 : i32
    return %arg0, %c0_i32 : i32, i32
  }
  func.func @transform_1(%arg0: i32) -> (i32, i32) {
    %c0_i32 = arith.constant 0 : i32
    %c0_i32_0 = arith.constant 0 : i32
    %c0_i32_1 = arith.constant 0 : i32
    return %c0_i32, %c0_i32_0 : i32, i32
  }
  func.func @transform_2(%arg0: i32) -> (i32, i32) {
    %c0_i32 = arith.constant 0 : i32
    %c0_i32_0 = arith.constant 0 : i32
    %c0_i32_1 = arith.constant 0 : i32
    return %c0_i32, %c0_i32_0 : i32, i32
  }
  func.func @transform_3(%arg0: i32) -> (i32, i32) {
    %c0_i32 = arith.constant 0 : i32
    %c0_i32_0 = arith.constant 0 : i32
    return %arg0, %c0_i32 : i32, i32
  }
}

module attributes {stable_mosaic.version = 11 : i64} {
  func.func @_mm_bias_lrelu_kernel(%arg0: i32, %arg1: memref<2x128xf32, #tpu.memory_space<vmem>>, %arg2: memref<128x8xf32, #tpu.memory_space<vmem>>, %arg3: memref<1x8xf32, #tpu.memory_space<vmem>>, %arg4: memref<2x8xf32, #tpu.memory_space<vmem>>) attributes {dimension_semantics = [#tpu.dimension_semantics<parallel>], iteration_bounds = array<i64: 1>, scalar_prefetch = 0 : i64, scratch_operands = 0 : i64, tpu.core_type = #tpu.core_type<tc>, window_params = [{transform_indices = @transform_0, window_bounds = array<i64: 2, 128>}, {pipeline_mode = #tpu.pipeline_mode<synchronous>, transform_indices = @transform_1, window_bounds = array<i64: 128, 8>}, {pipeline_mode = #tpu.pipeline_mode<synchronous>, transform_indices = @transform_2, window_bounds = array<i64: 1, 8>}, {transform_indices = @transform_3, window_bounds = array<i64: 2, 8>}]} {
    %c0 = arith.constant 0 : index
    %c0_0 = arith.constant 0 : index
    %0 = vector.load %arg1[%c0, %c0_0] : memref<2x128xf32, #tpu.memory_space<vmem>>, vector<2x128xf32>
    %c0_1 = arith.constant 0 : index
    %c0_2 = arith.constant 0 : index
    %1 = vector.load %arg2[%c0_1, %c0_2] : memref<128x8xf32, #tpu.memory_space<vmem>>, vector<128x8xf32>
    %cst = arith.constant dense<0.000000e+00> : vector<2x8xf32>
    %2 = tpu.matmul %0, %1, %cst {dimension_numbers = #tpu.dot_dimension_numbers<[1], [0], [0], [1], [0, 0, 1, 1], [], []>} : vector<2x128xf32>, vector<128x8xf32>, vector<2x8xf32> -> vector<2x8xf32>
    %c0_3 = arith.constant 0 : index
    %c0_4 = arith.constant 0 : index
    %3 = vector.load %arg3[%c0_3, %c0_4] : memref<1x8xf32, #tpu.memory_space<vmem>>, vector<1x8xf32>
    %4 = vector.broadcast %3 : vector<1x8xf32> to vector<2x8xf32>
    %5 = arith.addf %2, %4 : vector<2x8xf32>
    %cst_5 = arith.constant 0.000000e+00 : f32
    %6 = vector.broadcast %cst_5 : f32 to vector<2x8xf32>
    %7 = arith.cmpf ogt, %5, %6 : vector<2x8xf32>
    %cst_6 = arith.constant 2.000000e-01 : f32
    %8 = vector.broadcast %cst_6 : f32 to vector<2x8xf32>
    %9 = arith.mulf %8, %5 : vector<2x8xf32>
    %10 = arith.select %7, %5, %9 : vector<2x8xi1>, vector<2x8xf32>
    %c0_7 = arith.constant 0 : index
    %c0_8 = arith.constant 0 : index
    %11 = vector.load %arg4[%c0_7, %c0_8] : memref<2x8xf32, #tpu.memory_space<vmem>>, vector<2x8xf32>
    tpu.vector_store %arg4[%c0_7, %c0_8], %10 {strides = array<i32>} : memref<2x8xf32, #tpu.memory_space<vmem>>, vector<2x8xf32>,
    return
  }
  func.func @transform_0(%arg0: i32) -> (i32, i32) {
    %c0_i32 = arith.constant 0 : i32
    %c0_i32_0 = arith.constant 0 : i32
    return %arg0, %c0_i32 : i32, i32
  }
  func.func @transform_1(%arg0: i32) -> (i32, i32) {
    %c0_i32 = arith.constant 0 : i32
    %c0_i32_0 = arith.constant 0 : i32
    %c0_i32_1 = arith.constant 0 : i32
    return %c0_i32, %c0_i32_0 : i32, i32
  }
  func.func @transform_2(%arg0: i32) -> (i32, i32) {
    %c0_i32 = arith.constant 0 : i32
    %c0_i32_0 = arith.constant 0 : i32
    %c0_i32_1 = arith.constant 0 : i32
    return %c0_i32, %c0_i32_0 : i32, i32
  }
  func.func @transform_3(%arg0: i32) -> (i32, i32) {
    %c0_i32 = arith.constant 0 : i32
    %c0_i32_0 = arith.constant 0 : i32
    return %arg0, %c0_i32 : i32, i32
  }
}

</mosaic_0001>

<llo_original>
// kernel: _lambda_.6
$region0: #{_lambda_.6}
  #allocation0 [shape = 'u32[]', space=smem, size = 0x4, offset = 0x4, fixed_abs, tag = 'smem constant byte address 0x4 - core index']
  #allocation1 [shape = 'u32[144,128]{1,0:T(1,128)}', space=vmem, size = 0x12000, scoped, tag = 'internal scratch']
  %s0 = inlined_call_operand.vmem [shape: f32[2,128], index: 0, kind: input, shape index: {}]
  %s1 = inlined_call_operand.vmem [shape: f32[1,128], index: 1, kind: input, shape index: {}]
  %s2 = inlined_call_operand.vmem [shape: f32[1,128], index: 2, kind: input, shape index: {}]
  %s3 = inlined_call_operand.vmem [shape: f32[2,128], index: 3, kind: output, shape index: {}]
  %s4 = sld [smem:[#allocation0]]
  $region22: #{_lambda_.6} parent=0
    _
  %s6 = ssub.s32 1, %s4
  %s7 = scalar_select 0, %s6, %s4
  // Predicated region
  $region2: #{_lambda_.6} parent=0 // pred_check
    _
  $region3: #{_lambda_.6} parent=0 // pred_check_branch
    %9 = sbr.rel (0) target = $region5
  $region4: #{_lambda_.6} parent=0 // pred_region
    _
  $region5: #{_lambda_.6} parent=0 // pred_fallthru
    _
  // Predicated region
  $region6: #{_lambda_.6} parent=0 // pred_check
    _
  $region7: #{_lambda_.6} parent=0 // pred_check_branch
    %11 = sbr.rel (0) target = $region9
  $region8: #{_lambda_.6} parent=0 // pred_region
    _
  $region9: #{_lambda_.6} parent=0 // pred_fallthru
    _
  // Predicated region
  $region10: #{_lambda_.6} parent=0 // pred_check
    _
  $region11: #{_lambda_.6} parent=0 // pred_check_branch
    %13 = sbr.rel (0) target = $region13
  $region12: #{_lambda_.6} parent=0 // pred_region
    _
  $region13: #{_lambda_.6} parent=0 // pred_fallthru
    _
  %v14 = vld [vmem:[%s0] sm:$0x3]
  %v15 = vld [vmem:[%s1] sm:$0x1]
  %v17 = vlaneseq
  %v18 = vshrl.u32 %v17, 7
  %v19 = vsub.s32 0, %v18
  %v20 = vrot.slane %v15, %v19
  %v22 = vmul.f32 %v14, %v20
  %v23 = vld [vmem:[%s2] sm:$0x1]
  %v25 = vlaneseq
  %v26 = vshrl.u32 %v25, 7
  %v27 = vsub.s32 0, %v26
  %v28 = vrot.slane %v23, %v27
  %v30 = vadd.f32 %v22, %v28
  %vm31 = vcmp.gt.f32.partialorder %v30, 0.0
  %v32 = vmul.f32 %v30, 0.2
  %v33 = vsel %vm31, %v30, %v32
  %34 = vst [vmem:[%s3] sm:$0x3] %v33
  // Predicated region
  $region14: #{_lambda_.6} parent=0 // pred_check
    _
  $region15: #{_lambda_.6} parent=0 // pred_check_branch
    %36 = sbr.rel (0) target = $region17
  $region16: #{_lambda_.6} parent=0 // pred_region
    _
  $region17: #{_lambda_.6} parent=0 // pred_fallthru
    _
  // Predicated region
  $region18: #{_lambda_.6} parent=0 // pred_check
    _
  $region19: #{_lambda_.6} parent=0 // pred_check_branch
    %38 = sbr.rel (0) target = $region21
  $region20: #{_lambda_.6} parent=0 // pred_region
    _
  $region21: #{_lambda_.6} parent=0 // pred_fallthru
    _

// kernel: _lambda_.7
$region0: #{_lambda_.7}
  #allocation0 [shape = 'u32[]', space=smem, size = 0x4, offset = 0x4, fixed_abs, tag = 'smem constant byte address 0x4 - core index']
  #allocation1 [shape = 'u32[144,128]{1,0:T(1,128)}', space=vmem, size = 0x12000, scoped, tag = 'internal scratch']
  %s0 = inlined_call_operand.vmem [shape: f32[2,128], index: 0, kind: input, shape index: {}]
  %s1 = inlined_call_operand.vmem [shape: f32[128,8], index: 1, kind: input, shape index: {}]
  %s2 = inlined_call_operand.vmem [shape: f32[1,8], index: 2, kind: input, shape index: {}]
  %s3 = inlined_call_operand.hbm [shape: f32[2,8], index: 3, kind: output, shape index: {}]
  %s4 = sld [smem:[#allocation0]]
  $region22: #{_lambda_.7} parent=0
    _
  %s6 = ssub.s32 1, %s4
  %s7 = scalar_select 0, %s6, %s4
  $region1: #{_lambda_.7} parent=0
    #allocation2 [shape = 'u8[1024]{0}', space=vmem, size = 0x400, scoped, tag = 'output window, operand 0, single buffered']
    #allocation3 [shape = 's32[1]{0}', space=sflag, size = 0x4, scoped, tag = 'scoped memory for _lambda_.7']
    %8 = vsyncpa [#allocation3], 0
    // Predicated region
    $region2: #{_lambda_.7} parent=1 // pred_check
      _
    $region3: #{_lambda_.7} parent=1 // pred_check_branch
      %10 = sbr.rel (0) target = $region5
    $region4: #{_lambda_.7} parent=1 // pred_region
      _
    $region5: #{_lambda_.7} parent=1 // pred_fallthru
      _
    // Predicated region
    $region6: #{_lambda_.7} parent=1 // pred_check
      _
    $region7: #{_lambda_.7} parent=1 // pred_check_branch
      %12 = sbr.rel (0) target = $region9
    $region8: #{_lambda_.7} parent=1 // pred_region
      _
    $region9: #{_lambda_.7} parent=1 // pred_fallthru
      _
    // Predicated region
    $region10: #{_lambda_.7} parent=1 // pred_check
      _
    $region11: #{_lambda_.7} parent=1 // pred_check_branch
      %14 = sbr.rel (0) target = $region13
    $region12: #{_lambda_.7} parent=1 // pred_region
      _
    $region13: #{_lambda_.7} parent=1 // pred_fallthru
      _
    %v15 = vld [vmem:[%s0] sm:$0x3]
    %v16 = vld [vmem:[%s1] sm:$0xff]
    %v17 = vld [vmem:[%s1 + $0x8] sm:$0xff]
    %v18 = vld [vmem:[%s1 + $0x10] sm:$0xff]
    %v19 = vld [vmem:[%s1 + $0x18] sm:$0xff]
    %v20 = vld [vmem:[%s1 + $0x20] sm:$0xff]
    %v21 = vld [vmem:[%s1 + $0x28] sm:$0xff]
    %v22 = vld [vmem:[%s1 + $0x30] sm:$0xff]
    %v23 = vld [vmem:[%s1 + $0x38] sm:$0xff]
    %v24 = vld [vmem:[%s1 + $0x40] sm:$0xff]
    %v25 = vld [vmem:[%s1 + $0x48] sm:$0xff]
    %v26 = vld [vmem:[%s1 + $0x50] sm:$0xff]
    %v27 = vld [vmem:[%s1 + $0x58] sm:$0xff]
    %v28 = vld [vmem:[%s1 + $0x60] sm:$0xff]
    %v29 = vld [vmem:[%s1 + $0x68] sm:$0xff]
    %v30 = vld [vmem:[%s1 + $0x70] sm:$0xff]
    %v31 = vld [vmem:[%s1 + $0x78] sm:$0xff]
    %v32 = vld [vmem:[%s2] sm:$0x1]
    %v34 = vlaneseq
    %v35 = vshrl.u32 %v34, 7
    %v36 = vsub.s32 0, %v35
    %v37 = vrot.slane %v32, %v36
    %39 = vmatprep.subr.mxu0 0.0
    %40 = vmatpush1.msra.mxu0 %v16
    %41 = vmatprep.subr.mxu0 0.0
    %42 = vmatpush1.msra.mxu0 %v17
    %43 = vmatprep.subr.mxu0 0.0
    %44 = vmatpush1.msra.mxu0 %v18
    %45 = vmatprep.subr.mxu0 0.0
    %46 = vmatpush1.msra.mxu0 %v19
    %47 = vmatprep.subr.mxu0 0.0
    %48 = vmatpush1.msra.mxu0 %v20
    %49 = vmatprep.subr.mxu0 0.0
    %50 = vmatpush1.msra.mxu0 %v21
    %51 = vmatprep.subr.mxu0 0.0
    %52 = vmatpush1.msra.mxu0 %v22
    %53 = vmatprep.subr.mxu0 0.0
    %54 = vmatpush1.msra.mxu0 %v23
    %55 = vmatprep.subr.mxu0 0.0
    %56 = vmatpush1.msra.mxu0 %v24
    %57 = vmatprep.subr.mxu0 0.0
    %58 = vmatpush1.msra.mxu0 %v25
    %59 = vmatprep.subr.mxu0 0.0
    %60 = vmatpush1.msra.mxu0 %v26
    %61 = vmatprep.subr.mxu0 0.0
    %62 = vmatpush1.msra.mxu0 %v27
    %63 = vmatprep.subr.mxu0 0.0
    %64 = vmatpush1.msra.mxu0 %v28
    %65 = vmatprep.subr.mxu0 0.0
    %66 = vmatpush1.msra.mxu0 %v29
    %67 = vmatprep.subr.mxu0 0.0
    %68 = vmatpush1.msra.mxu0 %v30
    %69 = vmatprep.subr.mxu0 0.0
    %70 = vmatpush1.msra.mxu0 %v31
    %71 = vmatprep.subr.mxu0 0.0
    %72 = vmatpush1.msra.mxu0 0.0
    %73 = vmatprep.subr.mxu0 0.0
    %74 = vmatpush1.msra.mxu0 0.0
    %75 = vmatprep.subr.mxu0 0.0
    %76 = vmatpush1.msra.mxu0 0.0
    %77 = vmatprep.subr.mxu0 0.0
    %78 = vmatpush1.msra.mxu0 0.0
    %79 = vmatprep.subr.mxu0 0.0
    %80 = vmatpush1.msra.mxu0 0.0
    %81 = vmatprep.subr.mxu0 0.0
    %82 = vmatpush1.msra.mxu0 0.0
    %83 = vmatprep.subr.mxu0 0.0
    %84 = vmatpush1.msra.mxu0 0.0
    %85 = vmatprep.subr.mxu0 0.0
    %86 = vmatpush1.msra.mxu0 0.0
    %87 = vmatprep.subr.mxu0 0.0
    %88 = vmatpush1.msra.mxu0 0.0
    %89 = vmatprep.subr.mxu0 0.0
    %90 = vmatpush1.msra.mxu0 0.0
    %91 = vmatprep.subr.mxu0 0.0
    %92 = vmatpush1.msra.mxu0 0.0
    %93 = vmatprep.subr.mxu0 0.0
    %94 = vmatpush1.msra.mxu0 0.0
    %95 = vmatprep.subr.mxu0 0.0
    %96 = vmatpush1.msra.mxu0 0.0
    %97 = vmatprep.subr.mxu0 0.0
    %98 = vmatpush1.msra.mxu0 0.0
    %99 = vmatprep.subr.mxu0 0.0
    %100 = vmatpush1.msra.mxu0 0.0
    %101 = vmatprep.subr.mxu0 0.0
    %102 = vmatpush1.msra.mxu0 0.0
    %103 = vmatprep.mubr.f32.mxu0 0.0
    %104 = vmatmul.mubr.f32.gmra.mrb[0].mxu0 %v15
    %v105 = vpop.f32.mrb[0].mxu0
    %v106 = vadd.f32 %v37, %v105
    %v107 = vpop.f32.mrb[0].mxu0
    %108 = vdwg.mxu0
    %vm109 = vcmp.gt.f32.partialorder %v106, 0.0
    %v110 = vmul.f32 %v106, 0.2
    %v111 = vsel %vm109, %v106, %v110
    %vm112 = vcmask 58368
    %113 = vst.msk [vmem:[#allocation2] sm:$0x3] %vm112, %v111
    // Predicated region
    $region14: #{_lambda_.7} parent=1 // pred_check
      _
    $region15: #{_lambda_.7} parent=1 // pred_check_branch
      %115 = sbr.rel (0) target = $region17
    $region16: #{_lambda_.7} parent=1 // pred_region
      %s117 = ssub.s32 32, 32
      %118 = vsyncadd [#allocation3], %s117
      %s120 = sshll.u32 [#allocation2], 4
      %s121 = int_to_ptr.vmem [resolvable:$true] %s120
      %123 = dma.vmem_to_hbm [thread:$0]  %s121, 32, %s3, [#allocation3]
    $region17: #{_lambda_.7} parent=1 // pred_fallthru
      _
    // Predicated region
    $region18: #{_lambda_.7} parent=1 // pred_check
      _
    $region19: #{_lambda_.7} parent=1 // pred_check_branch
      %125 = sbr.rel (0) target = $region21
    $region20: #{_lambda_.7} parent=1 // pred_region
      %126 = dma.done [#allocation3], 32
    $region21: #{_lambda_.7} parent=1 // pred_fallthru
      _
    %127 = vsyncpa [#allocation3], 1

// kernel: _lambda_.4
$region0: #{_lambda_.4}
  #allocation0 [shape = 'u32[]', space=smem, size = 0x4, offset = 0x4, fixed_abs, tag = 'smem constant byte address 0x4 - core index']
  #allocation1 [shape = 'u32[144,128]{1,0:T(1,128)}', space=vmem, size = 0x12000, scoped, tag = 'internal scratch']
  %s0 = inlined_call_operand.vmem [shape: f32[40,2,10,4], index: 0, kind: input, shape index: {}, may-alias: {0,1,2}]
  %s1 = inlined_call_operand.vmem [shape: f32[40,2,10,4], index: 1, kind: input, shape index: {}, may-alias: {0,1,2}]
  %s2 = inlined_call_operand.vmem [shape: f32[40,2,10,4], index: 2, kind: input, shape index: {}, may-alias: {0,1,2}]
  %s3 = inlined_call_operand.vmem [shape: f32[5,5,4,4], index: 3, kind: input, shape index: {}]
  %s4 = inlined_call_operand.vmem [shape: f32[1,4], index: 4, kind: input, shape index: {}]
  %s5 = inlined_call_operand.vmem [shape: f32[16,8,4], index: 5, kind: output, shape index: {}]
  %s6 = sld [smem:[#allocation0]]
  $region53: #{_lambda_.4} parent=0
    _
  %s8 = ssub.s32 1, %s6
  %s9 = scalar_select 0, %s8, %s6
  loop: start=0, step=1, limit=18
  $region2: #{_lambda_.4} parent=0 // loop_pre_header
    _
  $region3: #{_lambda_.4} parent=0 // loop_header
    %s11 = sphi 0, %s15
    %p12 = scmp.ge.s32.totalorder %s11, 18
    %s18 = sphi 0, %s30
    %s19 = sphi 0, %s26
    %s20 = sphi 0, %s18
    %s21 = sphi 0, %s19
    %s22 = sphi 0, %s20
    %s23 = sphi 0, %s21
    %s37 = sphi 0, %s39
    %s40 = sphi 0, %s37
    %s41 = sphi 0, %s40
    %s57 = sphi 0, %s41
    %s69 = sphi 0, %s71
    %s72 = sphi 0, %s69
    %s73 = sphi 0, %s72
    %s89 = sphi 0, %s73
    %s101 = sphi 0, %s103
    %s104 = sphi 0, %s101
    %s105 = sphi 0, %s104
    %s121 = sphi 0, %s105
    %s125 = sphi 0, %s125
    %s127 = sphi 0, %s125
    %s128 = sphi 0, %s127
    %s142 = sphi 0, %s128
    %s146 = sphi 0, %s146
    %s148 = sphi 0, %s146
    %s149 = sphi 0, %s148
    %s163 = sphi 0, %s149
    %s173 = sphi 0, %s175
    %s176 = sphi 0, %s173
    %s177 = sphi 0, %s176
    %s193 = sphi 0, %s177
  $region4: #{_lambda_.4} parent=0 // loop_header_branch
    %14 = sbr.rel (%p12) target = $region8
  $region5: #{_lambda_.4} parent=0 // loop_body
    %s16 = ssub.s32 %s11, 1
    %s17 = ssub.s32 %s11, 2
    %s24 = sadd.s32 1, %s19
    %p25 = scmp.ge.s32.totalorder %s24, 8
    %s26 = scalar_select %p25, 0, %s24
    %s27 = sadd.s32 1, %s18
    %s28 = scalar_select %p25, %s27, %s18
    %p29 = scmp.ge.s32.totalorder %s28, 2
    %s30 = scalar_select %p29, 0, %s28
    %s31 = smul.u32 %s18, 10
    %s32 = sadd.s32 %s31, %s19
    %s33 = smul.u32 %s30, 10
    %s34 = sadd.s32 %s33, %s26
    %s35 = ssub.s32 %s32, %s34
    %p36 = scmp.eq.s32.totalorder %s35, 0
    %s38 = sadd.s32 %s37, 1
    %s39 = scalar_select %p36, %s37, %s38
    %p42 = pneg %p36
    %p43 = scmp.eq.s32.totalorder %s11, 15
    %p44 = por %p42, %p43
    %p45 = scmp.ne.s32.totalorder %s37, %s40
    %p46 = scmp.eq.s32.totalorder %s11, 0
    %p47 = por %p45, %p46
    %p48 = scmp.ne.s32.totalorder %s37, %s40
    %p49 = scmp.eq.s32.totalorder %s16, 15
    %p50 = por %p48, %p49
    %p51 = scmp.ne.s32.totalorder %s40, %s41
    %p52 = scmp.eq.s32.totalorder %s16, 0
    %p53 = por %p51, %p52
    %p54 = scmp.ne.s32.totalorder %s40, %s41
    %p55 = scmp.eq.s32.totalorder %s17, 15
    %p56 = por %p54, %p55
    %p58 = scmp.ne.s32.totalorder %s41, %s57
    %p59 = scmp.eq.s32.totalorder %s17, 0
    %p60 = por %p58, %p59
    %s61 = smul.u32 %s18, 10
    %s62 = sadd.s32 %s61, %s19
    %s63 = sadd.s32 %s62, 1
    %s64 = smul.u32 %s30, 10
    %s65 = sadd.s32 %s64, %s26
    %s66 = sadd.s32 %s65, 1
    %s67 = ssub.s32 %s63, %s66
    %p68 = scmp.eq.s32.totalorder %s67, 0
    %s70 = sadd.s32 %s69, 1
    %s71 = scalar_select %p68, %s69, %s70
    %p74 = pneg %p68
    %p75 = scmp.eq.s32.totalorder %s11, 15
    %p76 = por %p74, %p75
    %p77 = scmp.ne.s32.totalorder %s69, %s72
    %p78 = scmp.eq.s32.totalorder %s11, 0
    %p79 = por %p77, %p78
    %p80 = scmp.ne.s32.totalorder %s69, %s72
    %p81 = scmp.eq.s32.totalorder %s16, 15
    %p82 = por %p80, %p81
    %p83 = scmp.ne.s32.totalorder %s72, %s73
    %p84 = scmp.eq.s32.totalorder %s16, 0
    %p85 = por %p83, %p84
    %p86 = scmp.ne.s32.totalorder %s72, %s73
    %p87 = scmp.eq.s32.totalorder %s17, 15
    %p88 = por %p86, %p87
    %p90 = scmp.ne.s32.totalorder %s73, %s89
    %p91 = scmp.eq.s32.totalorder %s17, 0
    %p92 = por %p90, %p91
    %s93 = smul.u32 %s18, 10
    %s94 = sadd.s32 %s93, %s19
    %s95 = sadd.s32 %s94, 2
    %s96 = smul.u32 %s30, 10
    %s97 = sadd.s32 %s96, %s26
    %s98 = sadd.s32 %s97, 2
    %s99 = ssub.s32 %s95, %s98
    %p100 = scmp.eq.s32.totalorder %s99, 0
    %s102 = sadd.s32 %s101, 1
    %s103 = scalar_select %p100, %s101, %s102
    %p106 = pneg %p100
    %p107 = scmp.eq.s32.totalorder %s11, 15
    %p108 = por %p106, %p107
    %p109 = scmp.ne.s32.totalorder %s101, %s104
    %p110 = scmp.eq.s32.totalorder %s11, 0
    %p111 = por %p109, %p110
    %p112 = scmp.ne.s32.totalorder %s101, %s104
    %p113 = scmp.eq.s32.totalorder %s16, 15
    %p114 = por %p112, %p113
    %p115 = scmp.ne.s32.totalorder %s104, %s105
    %p116 = scmp.eq.s32.totalorder %s16, 0
    %p117 = por %p115, %p116
    %p118 = scmp.ne.s32.totalorder %s104, %s105
    %p119 = scmp.eq.s32.totalorder %s17, 15
    %p120 = por %p118, %p119
    %p122 = scmp.ne.s32.totalorder %s105, %s121
    %p123 = scmp.eq.s32.totalorder %s17, 0
    %p124 = por %p122, %p123
    %s126 = sadd.s32 %s125, 1
    %p129 = scmp.eq.s32.totalorder %s11, 15
    %p130 = scmp.ne.s32.totalorder %s125, %s127
    %p131 = scmp.eq.s32.totalorder %s11, 0
    %p132 = por %p130, %p131
    %p133 = scmp.ne.s32.totalorder %s125, %s127
    %p134 = scmp.eq.s32.totalorder %s16, 15
    %p135 = por %p133, %p134
    %p136 = scmp.ne.s32.totalorder %s127, %s128
    %p137 = scmp.eq.s32.totalorder %s16, 0
    %p138 = por %p136, %p137
    %p139 = scmp.ne.s32.totalorder %s127, %s128
    %p140 = scmp.eq.s32.totalorder %s17, 15
    %p141 = por %p139, %p140
    %p143 = scmp.ne.s32.totalorder %s128, %s142
    %p144 = scmp.eq.s32.totalorder %s17, 0
    %p145 = por %p143, %p144
    %s147 = sadd.s32 %s146, 1
    %p150 = scmp.eq.s32.totalorder %s11, 15
    %p151 = scmp.ne.s32.totalorder %s146, %s148
    %p152 = scmp.eq.s32.totalorder %s11, 0
    %p153 = por %p151, %p152
    %p154 = scmp.ne.s32.totalorder %s146, %s148
    %p155 = scmp.eq.s32.totalorder %s16, 15
    %p156 = por %p154, %p155
    %p157 = scmp.ne.s32.totalorder %s148, %s149
    %p158 = scmp.eq.s32.totalorder %s16, 0
    %p159 = por %p157, %p158
    %p160 = scmp.ne.s32.totalorder %s148, %s149
    %p161 = scmp.eq.s32.totalorder %s17, 15
    %p162 = por %p160, %p161
    %p164 = scmp.ne.s32.totalorder %s149, %s163
    %p165 = scmp.eq.s32.totalorder %s17, 0
    %p166 = por %p164, %p165
    %s167 = smul.u32 %s18, 8
    %s168 = sadd.s32 %s167, %s19
    %s169 = smul.u32 %s30, 8
    %s170 = sadd.s32 %s169, %s26
    %s171 = ssub.s32 %s168, %s170
    %p172 = scmp.eq.s32.totalorder %s171, 0
    %s174 = sadd.s32 %s173, 1
    %s175 = scalar_select %p172, %s173, %s174
    %p178 = pneg %p172
    %p179 = scmp.eq.s32.totalorder %s11, 15
    %p180 = por %p178, %p179
    %p181 = scmp.ne.s32.totalorder %s173, %s176
    %p182 = scmp.eq.s32.totalorder %s11, 0
    %p183 = por %p181, %p182
    %p184 = scmp.ne.s32.totalorder %s173, %s176
    %p185 = scmp.eq.s32.totalorder %s16, 15
    %p186 = por %p184, %p185
    %p187 = scmp.ne.s32.totalorder %s176, %s177
    %p188 = scmp.eq.s32.totalorder %s16, 0
    %p189 = por %p187, %p188
    %p190 = scmp.ne.s32.totalorder %s176, %s177
    %p191 = scmp.eq.s32.totalorder %s17, 15
    %p192 = por %p190, %p191
    %p194 = scmp.ne.s32.totalorder %s177, %s193
    %p195 = scmp.eq.s32.totalorder %s17, 0
    %p196 = por %p194, %p195
    %p197 = scmp.le.s32.totalorder 1, %s11
    %p198 = scmp.lt.s32.totalorder %s11, 17
    %p199 = pnand %p197, %p198
    %p200 = pneg %p199
    // Predicated region
    $region9: #{_lambda_.4} parent=5 // pred_check
      _
    $region10: #{_lambda_.4} parent=5 // pred_check_branch
      %202 = sbr.rel (%p199) target = $region12
    $region11: #{_lambda_.4} parent=5 // pred_region
      %s203 = ssub.s32 %s11, 1
      // Predicated region
      $region13: #{_lambda_.4} parent=11 // pred_check
        %p204 = pneg %p138
      $region14: #{_lambda_.4} parent=11 // pred_check_branch
        %206 = sbr.rel (%p204) target = $region16
      $region15: #{_lambda_.4} parent=11 // pred_region
        _
      $region16: #{_lambda_.4} parent=11 // pred_fallthru
        _
      // Predicated region
      $region17: #{_lambda_.4} parent=11 // pred_check
        %p207 = pneg %p159
      $region18: #{_lambda_.4} parent=11 // pred_check_branch
        %209 = sbr.rel (%p207) target = $region20
      $region19: #{_lambda_.4} parent=11 // pred_region
        _
      $region20: #{_lambda_.4} parent=11 // pred_fallthru
        _
    $region12: #{_lambda_.4} parent=5 // pred_fallthru
      _
    %p210 = scmp.lt.s32.totalorder %s11, 16
    // Predicated region
    $region21: #{_lambda_.4} parent=5 // pred_check
      %p211 = pneg %p210
    $region22: #{_lambda_.4} parent=5 // pred_check_branch
      %213 = sbr.rel (%p211) target = $region24
    $region23: #{_lambda_.4} parent=5 // pred_region
      // Predicated region
      $region25: #{_lambda_.4} parent=23 // pred_check
        %p214 = pneg %p47
      $region26: #{_lambda_.4} parent=23 // pred_check_branch
        %216 = sbr.rel (%p214) target = $region28
      $region27: #{_lambda_.4} parent=23 // pred_region
        %s217 = smul.u32 %s18, 10
        %s218 = sadd.s32 %s217, %s19
        %s219 = smul.u32 2, %s218
        %p220 = scmp.lt.s32.totalorder %s219, 39
        %s221 = scalar_select %p220, %s219, 39
        %s222 = smul.addr %s221, 4
        %s223 = smul.addr %s222, 8
        %s224 = scalar_lea.vmem %s0, %s223
        %s225 = smul.u32 %s18, 10
        %s226 = sadd.s32 %s225, %s19
        %s227 = smul.u32 2, %s226
      $region28: #{_lambda_.4} parent=23 // pred_fallthru
        _
      // Predicated region
      $region29: #{_lambda_.4} parent=23 // pred_check
        %p228 = pneg %p79
      $region30: #{_lambda_.4} parent=23 // pred_check_branch
        %230 = sbr.rel (%p228) target = $region32
      $region31: #{_lambda_.4} parent=23 // pred_region
        %s231 = smul.u32 %s18, 10
        %s232 = sadd.s32 %s231, %s19
        %s233 = sadd.s32 %s232, 1
        %s234 = smul.u32 2, %s233
        %p235 = scmp.lt.s32.totalorder %s234, 39
        %s236 = scalar_select %p235, %s234, 39
        %s237 = smul.addr %s236, 4
        %s238 = smul.addr %s237, 8
        %s239 = scalar_lea.vmem %s1, %s238
        %s240 = smul.u32 %s18, 10
        %s241 = sadd.s32 %s240, %s19
        %s242 = sadd.s32 %s241, 1
        %s243 = smul.u32 2, %s242
      $region32: #{_lambda_.4} parent=23 // pred_fallthru
        _
      // Predicated region
      $region33: #{_lambda_.4} parent=23 // pred_check
        %p244 = pneg %p111
      $region34: #{_lambda_.4} parent=23 // pred_check_branch
        %246 = sbr.rel (%p244) target = $region36
      $region35: #{_lambda_.4} parent=23 // pred_region
        %s247 = smul.u32 %s18, 10
        %s248 = sadd.s32 %s247, %s19
        %s249 = sadd.s32 %s248, 2
        %s250 = smul.u32 2, %s249
        %p251 = scmp.lt.s32.totalorder %s250, 39
        %s252 = scalar_select %p251, %s250, 39
        %s253 = smul.addr %s252, 4
        %s254 = smul.addr %s253, 8
        %s255 = scalar_lea.vmem %s2, %s254
        %s256 = smul.u32 %s18, 10
        %s257 = sadd.s32 %s256, %s19
        %s258 = sadd.s32 %s257, 2
        %s259 = smul.u32 2, %s258
      $region36: #{_lambda_.4} parent=23 // pred_fallthru
        _
    $region24: #{_lambda_.4} parent=5 // pred_fallthru
      _
    %p260 = scmp.le.s32.totalorder 1, %s11
    %p261 = scmp.lt.s32.totalorder %s11, 17
    %p262 = pnand %p260, %p261
    %p263 = pneg %p262
    // Predicated region
    $region37: #{_lambda_.4} parent=5 // pred_check
      _
    $region38: #{_lambda_.4} parent=5 // pred_check_branch
      %265 = sbr.rel (%p262) target = $region40
    $region39: #{_lambda_.4} parent=5 // pred_region
      %s266 = ssub.s32 %s11, 1
      %s267 = smul.u32 %s20, 10
      %s268 = sadd.s32 %s267, %s21
      %s269 = smul.u32 2, %s268
      %p270 = scmp.lt.s32.totalorder %s269, 39
      %s271 = scalar_select %p270, %s269, 39
      %s272 = smul.addr %s271, 4
      %s273 = smul.addr %s272, 8
      %s274 = scalar_lea.vmem %s0, %s273
      %p275 = pneg %p53
      %p276 = pneg %p50
      %s277 = smul.u32 %s20, 10
      %s278 = sadd.s32 %s277, %s21
      %s279 = sadd.s32 %s278, 1
      %s280 = smul.u32 2, %s279
      %p281 = scmp.lt.s32.totalorder %s280, 39
      %s282 = scalar_select %p281, %s280, 39
      %s283 = smul.addr %s282, 4
      %s284 = smul.addr %s283, 8
      %s285 = scalar_lea.vmem %s1, %s284
      %p286 = pneg %p85
      %p287 = pneg %p82
      %s288 = smul.u32 %s20, 10
      %s289 = sadd.s32 %s288, %s21
      %s290 = sadd.s32 %s289, 2
      %s291 = smul.u32 2, %s290
      %p292 = scmp.lt.s32.totalorder %s291, 39
      %s293 = scalar_select %p292, %s291, 39
      %s294 = smul.addr %s293, 4
      %s295 = smul.addr %s294, 8
      %s296 = scalar_lea.vmem %s2, %s295
      %p297 = pneg %p117
      %p298 = pneg %p114
      %p299 = pneg %p138
      %p300 = pneg %p135
      %p301 = pneg %p159
      %p302 = pneg %p156
      %p303 = pneg %p189
      %p304 = pneg %p186
      %s305 = smul.u32 %s20, 8
      %s306 = sadd.s32 %s305, %s21
      %p307 = scmp.lt.s32.totalorder %s306, 15
      %s308 = scalar_select %p307, %s306, 15
      %s309 = smul.addr %s308, 8
      %s310 = scalar_lea.vmem %s5, %s309
      %s311 = smul.u32 %s20, 10
      %s312 = sadd.s32 %s311, %s21
      %s313 = smul.u32 2, %s312
      %p314 = scmp.lt.s32.totalorder %s313, 39
      %s315 = scalar_select %p314, %s313, 39
      %s316 = smul.addr %s315, 4
      %s317 = smul.addr %s316, 8
      %s318 = scalar_lea.vmem %s0, %s317
      %s319 = smul.u32 %s20, 10
      %s320 = sadd.s32 %s319, %s21
      %s321 = smul.u32 2, %s320
      %s322 = smul.u32 %s20, 10
      %s323 = sadd.s32 %s322, %s21
      %s324 = sadd.s32 %s323, 1
      %s325 = smul.u32 2, %s324
      %p326 = scmp.lt.s32.totalorder %s325, 39
      %s327 = scalar_select %p326, %s325, 39
      %s328 = smul.addr %s327, 4
      %s329 = smul.addr %s328, 8
      %s330 = scalar_lea.vmem %s1, %s329
      %s331 = smul.u32 %s20, 10
      %s332 = sadd.s32 %s331, %s21
      %s333 = sadd.s32 %s332, 1
      %s334 = smul.u32 2, %s333
      %s335 = smul.u32 %s20, 10
      %s336 = sadd.s32 %s335, %s21
      %s337 = sadd.s32 %s336, 2
      %s338 = smul.u32 2, %s337
      %p339 = scmp.lt.s32.totalorder %s338, 39
      %s340 = scalar_select %p339, %s338, 39
      %s341 = smul.addr %s340, 4
      %s342 = smul.addr %s341, 8
      %s343 = scalar_lea.vmem %s2, %s342
      %s344 = smul.u32 %s20, 10
      %s345 = sadd.s32 %s344, %s21
      %s346 = sadd.s32 %s345, 2
      %s347 = smul.u32 2, %s346
      %s348 = smul.u32 %s20, 8
      %s349 = sadd.s32 %s348, %s21
      %p350 = scmp.lt.s32.totalorder %s349, 15
      %s351 = scalar_select %p350, %s349, 15
      %s352 = smul.addr %s351, 8
      %s353 = scalar_lea.vmem %s5, %s352
      %s354 = smul.u32 %s20, 8
      %s355 = sadd.s32 %s354, %s21
      %v356 = vld [vmem:[%s318] sm:$0xff]
      %v357 = vld [vmem:[%s3] sm:$0xf]
      %s358 = scalar_lea.vmem %s318, 16
      %v359 = vld [vmem:[%s358] sm:$0xff]
      %s360 = scalar_lea.vmem %s3, 4
      %v361 = vld [vmem:[%s360] sm:$0xf]
      %vm362 = vcmask 31744
      %v364 = vsel %vm362, %v359, 0
      %vm366 = vcmask 1043456
      %v368 = vsel %vm366, %v361, 0
      %370 = vmatprep.subr.mxu0 0.0
      %371 = vmatpush1.msra.mxu0 %v368
      %372 = vmatprep.subr.mxu0 0.0
      %373 = vmatpush1.msra.mxu0 0.0
      %374 = vmatprep.subr.mxu0 0.0
      %375 = vmatpush1.msra.mxu0 0.0
      %376 = vmatprep.subr.mxu0 0.0
      %377 = vmatpush1.msra.mxu0 0.0
      %378 = vmatprep.subr.mxu0 0.0
      %379 = vmatpush1.msra.mxu0 0.0
      %380 = vmatprep.subr.mxu0 0.0
      %381 = vmatpush1.msra.mxu0 0.0
      %382 = vmatprep.subr.mxu0 0.0
      %383 = vmatpush1.msra.mxu0 0.0
      %384 = vmatprep.subr.mxu0 0.0
      %385 = vmatpush1.msra.mxu0 0.0
      %386 = vmatprep.subr.mxu0 0.0
      %387 = vmatpush1.msra.mxu0 0.0
      %388 = vmatprep.subr.mxu0 0.0
      %389 = vmatpush1.msra.mxu0 0.0
      %390 = vmatprep.subr.mxu0 0.0
      %391 = vmatpush1.msra.mxu0 0.0
      %392 = vmatprep.subr.mxu0 0.0
      %393 = vmatpush1.msra.mxu0 0.0
      %394 = vmatprep.subr.mxu0 0.0
      %395 = vmatpush1.msra.mxu0 0.0
      %396 = vmatprep.subr.mxu0 0.0
      %397 = vmatpush1.msra.mxu0 0.0
      %398 = vmatprep.subr.mxu0 0.0
      %399 = vmatpush1.msra.mxu0 0.0
      %400 = vmatprep.subr.mxu0 0.0
      %401 = vmatpush1.msra.mxu0 0.0
      %402 = vmatprep.subr.mxu0 0.0
      %403 = vmatpush1.msra.mxu0 0.0
      %404 = vmatprep.subr.mxu0 0.0
      %405 = vmatpush1.msra.mxu0 0.0
      %406 = vmatprep.subr.mxu0 0.0
      %407 = vmatpush1.msra.mxu0 0.0
      %408 = vmatprep.subr.mxu0 0.0
      %409 = vmatpush1.msra.mxu0 0.0
      %410 = vmatprep.subr.mxu0 0.0
      %411 = vmatpush1.msra.mxu0 0.0
      %412 = vmatprep.subr.mxu0 0.0
      %413 = vmatpush1.msra.mxu0 0.0
      %414 = vmatprep.subr.mxu0 0.0
      %415 = vmatpush1.msra.mxu0 0.0
      %416 = vmatprep.subr.mxu0 0.0
      %417 = vmatpush1.msra.mxu0 0.0
      %418 = vmatprep.subr.mxu0 0.0
      %419 = vmatpush1.msra.mxu0 0.0
      %420 = vmatprep.subr.mxu0 0.0
      %421 = vmatpush1.msra.mxu0 0.0
      %422 = vmatprep.subr.mxu0 0.0
      %423 = vmatpush1.msra.mxu0 0.0
      %424 = vmatprep.subr.mxu0 0.0
      %425 = vmatpush1.msra.mxu0 0.0
      %426 = vmatprep.subr.mxu0 0.0
      %427 = vmatpush1.msra.mxu0 0.0
      %428 = vmatprep.subr.mxu0 0.0
      %429 = vmatpush1.msra.mxu0 0.0
      %430 = vmatprep.subr.mxu0 0.0
      %431 = vmatpush1.msra.mxu0 0.0
      %432 = vmatprep.subr.mxu0 0.0
      %433 = vmatpush1.msra.mxu0 0.0
      %434 = vmatprep.mubr.f32.mxu0 0.0
      %435 = vmatmul.mubr.f32.gmra.mrb[0].mxu0 %v364
      %v436 = vpop.f32.mrb[0].mxu0
      %v437 = vadd.f32 0.0, %v436
      %v438 = vpop.f32.mrb[0].mxu0
      %439 = vdwg.mxu0
      %v441 = vsel %vm362, %v356, 0
      %v444 = vsel %vm366, %v357, 0
      %446 = vmatprep.subr.mxu0 0.0
      %447 = vmatpush1.msra.mxu0 %v444
      %448 = vmatprep.subr.mxu0 0.0
      %449 = vmatpush1.msra.mxu0 0.0
      %450 = vmatprep.subr.mxu0 0.0
      %451 = vmatpush1.msra.mxu0 0.0
      %452 = vmatprep.subr.mxu0 0.0
      %453 = vmatpush1.msra.mxu0 0.0
      %454 = vmatprep.subr.mxu0 0.0
      %455 = vmatpush1.msra.mxu0 0.0
      %456 = vmatprep.subr.mxu0 0.0
      %457 = vmatpush1.msra.mxu0 0.0
      %458 = vmatprep.subr.mxu0 0.0
      %459 = vmatpush1.msra.mxu0 0.0
      %460 = vmatprep.subr.mxu0 0.0
      %461 = vmatpush1.msra.mxu0 0.0
      %462 = vmatprep.subr.mxu0 0.0
      %463 = vmatpush1.msra.mxu0 0.0
      %464 = vmatprep.subr.mxu0 0.0
      %465 = vmatpush1.msra.mxu0 0.0
      %466 = vmatprep.subr.mxu0 0.0
      %467 = vmatpush1.msra.mxu0 0.0
      %468 = vmatprep.subr.mxu0 0.0
      %469 = vmatpush1.msra.mxu0 0.0
      %470 = vmatprep.subr.mxu0 0.0
      %471 = vmatpush1.msra.mxu0 0.0
      %472 = vmatprep.subr.mxu0 0.0
      %473 = vmatpush1.msra.mxu0 0.0
      %474 = vmatprep.subr.mxu0 0.0
      %475 = vmatpush1.msra.mxu0 0.0
      %476 = vmatprep.subr.mxu0 0.0
      %477 = vmatpush1.msra.mxu0 0.0
      %478 = vmatprep.subr.mxu0 0.0
      %479 = vmatpush1.msra.mxu0 0.0
      %480 = vmatprep.subr.mxu0 0.0
      %481 = vmatpush1.msra.mxu0 0.0
      %482 = vmatprep.subr.mxu0 0.0
      %483 = vmatpush1.msra.mxu0 0.0
      %484 = vmatprep.subr.mxu0 0.0
      %485 = vmatpush1.msra.mxu0 0.0
      %486 = vmatprep.subr.mxu0 0.0
      %487 = vmatpush1.msra.mxu0 0.0
      %488 = vmatprep.subr.mxu0 0.0
      %489 = vmatpush1.msra.mxu0 0.0
      %490 = vmatprep.subr.mxu0 0.0
      %491 = vmatpush1.msra.mxu0 0.0
      %492 = vmatprep.subr.mxu0 0.0
      %493 = vmatpush1.msra.mxu0 0.0
      %494 = vmatprep.subr.mxu0 0.0
      %495 = vmatpush1.msra.mxu0 0.0
      %496 = vmatprep.subr.mxu0 0.0
      %497 = vmatpush1.msra.mxu0 0.0
      %498 = vmatprep.subr.mxu0 0.0
      %499 = vmatpush1.msra.mxu0 0.0
      %500 = vmatprep.subr.mxu0 0.0
      %501 = vmatpush1.msra.mxu0 0.0
      %502 = vmatprep.subr.mxu0 0.0
      %503 = vmatpush1.msra.mxu0 0.0
      %504 = vmatprep.subr.mxu0 0.0
      %505 = vmatpush1.msra.mxu0 0.0
      %506 = vmatprep.subr.mxu0 0.0
      %507 = vmatpush1.msra.mxu0 0.0
      %508 = vmatprep.subr.mxu0 0.0
      %509 = vmatpush1.msra.mxu0 0.0
      %510 = vmatprep.mubr.f32.mxu0 0.0
      %511 = vmatmul.mubr.f32.gmra.mrb[0].mxu0 %v441
      %v512 = vpop.f32.mrb[0].mxu0
      %v513 = vadd.f32 %v437, %v512
      %v514 = vpop.f32.mrb[0].mxu0
      %515 = vdwg.mxu0
      %v516 = vld [vmem:[%s318 + $0x1] sm:$0xff]
      %s517 = scalar_lea.vmem %s3, 8
      %v518 = vld [vmem:[%s517] sm:$0xf]
      %v520 = vsel %vm362, %v516, 0
      %v523 = vsel %vm366, %v518, 0
      %525 = vmatprep.subr.mxu0 0.0
      %526 = vmatpush1.msra.mxu0 %v523
      %527 = vmatprep.subr.mxu0 0.0
      %528 = vmatpush1.msra.mxu0 0.0
      %529 = vmatprep.subr.mxu0 0.0
      %530 = vmatpush1.msra.mxu0 0.0
      %531 = vmatprep.subr.mxu0 0.0
      %532 = vmatpush1.msra.mxu0 0.0
      %533 = vmatprep.subr.mxu0 0.0
      %534 = vmatpush1.msra.mxu0 0.0
      %535 = vmatprep.subr.mxu0 0.0
      %536 = vmatpush1.msra.mxu0 0.0
      %537 = vmatprep.subr.mxu0 0.0
      %538 = vmatpush1.msra.mxu0 0.0
      %539 = vmatprep.subr.mxu0 0.0
      %540 = vmatpush1.msra.mxu0 0.0
      %541 = vmatprep.subr.mxu0 0.0
      %542 = vmatpush1.msra.mxu0 0.0
      %543 = vmatprep.subr.mxu0 0.0
      %544 = vmatpush1.msra.mxu0 0.0
      %545 = vmatprep.subr.mxu0 0.0
      %546 = vmatpush1.msra.mxu0 0.0
      %547 = vmatprep.subr.mxu0 0.0
      %548 = vmatpush1.msra.mxu0 0.0
      %549 = vmatprep.subr.mxu0 0.0
      %550 = vmatpush1.msra.mxu0 0.0
      %551 = vmatprep.subr.mxu0 0.0
      %552 = vmatpush1.msra.mxu0 0.0
      %553 = vmatprep.subr.mxu0 0.0
      %554 = vmatpush1.msra.mxu0 0.0
      %555 = vmatprep.subr.mxu0 0.0
      %556 = vmatpush1.msra.mxu0 0.0
      %557 = vmatprep.subr.mxu0 0.0
      %558 = vmatpush1.msra.mxu0 0.0
      %559 = vmatprep.subr.mxu0 0.0
      %560 = vmatpush1.msra.mxu0 0.0
      %561 = vmatprep.subr.mxu0 0.0
      %562 = vmatpush1.msra.mxu0 0.0
      %563 = vmatprep.subr.mxu0 0.0
      %564 = vmatpush1.msra.mxu0 0.0
      %565 = vmatprep.subr.mxu0 0.0
      %566 = vmatpush1.msra.mxu0 0.0
      %567 = vmatprep.subr.mxu0 0.0
      %568 = vmatpush1.msra.mxu0 0.0
      %569 = vmatprep.subr.mxu0 0.0
      %570 = vmatpush1.msra.mxu0 0.0
      %571 = vmatprep.subr.mxu0 0.0
      %572 = vmatpush1.msra.mxu0 0.0
      %573 = vmatprep.subr.mxu0 0.0
      %574 = vmatpush1.msra.mxu0 0.0
      %575 = vmatprep.subr.mxu0 0.0
      %576 = vmatpush1.msra.mxu0 0.0
      %577 = vmatprep.subr.mxu0 0.0
      %578 = vmatpush1.msra.mxu0 0.0
      %579 = vmatprep.subr.mxu0 0.0
      %580 = vmatpush1.msra.mxu0 0.0
      %581 = vmatprep.subr.mxu0 0.0
      %582 = vmatpush1.msra.mxu0 0.0
      %583 = vmatprep.subr.mxu0 0.0
      %584 = vmatpush1.msra.mxu0 0.0
      %585 = vmatprep.subr.mxu0 0.0
      %586 = vmatpush1.msra.mxu0 0.0
      %587 = vmatprep.subr.mxu0 0.0
      %588 = vmatpush1.msra.mxu0 0.0
      %589 = vmatprep.mubr.f32.mxu0 0.0
      %590 = vmatmul.mubr.f32.gmra.mrb[0].mxu0 %v520
      %v591 = vpop.f32.mrb[0].mxu0
      %v592 = vadd.f32 0.0, %v591
      %v593 = vpop.f32.mrb[0].mxu0
      %594 = vdwg.mxu0
      %v595 = vadd.f32 %v513, %v592
      %v596 = vld [vmem:[%s358 + $0x1] sm:$0xff]
      %s597 = scalar_lea.vmem %s3, 12
      %v598 = vld [vmem:[%s597] sm:$0xf]
      %v600 = vsel %vm362, %v596, 0
      %v603 = vsel %vm366, %v598, 0
      %605 = vmatprep.subr.mxu0 0.0
      %606 = vmatpush1.msra.mxu0 %v603
      %607 = vmatprep.subr.mxu0 0.0
      %608 = vmatpush1.msra.mxu0 0.0
      %609 = vmatprep.subr.mxu0 0.0
      %610 = vmatpush1.msra.mxu0 0.0
      %611 = vmatprep.subr.mxu0 0.0
      %612 = vmatpush1.msra.mxu0 0.0
      %613 = vmatprep.subr.mxu0 0.0
      %614 = vmatpush1.msra.mxu0 0.0
      %615 = vmatprep.subr.mxu0 0.0
      %616 = vmatpush1.msra.mxu0 0.0
      %617 = vmatprep.subr.mxu0 0.0
      %618 = vmatpush1.msra.mxu0 0.0
      %619 = vmatprep.subr.mxu0 0.0
      %620 = vmatpush1.msra.mxu0 0.0
      %621 = vmatprep.subr.mxu0 0.0
      %622 = vmatpush1.msra.mxu0 0.0
      %623 = vmatprep.subr.mxu0 0.0
      %624 = vmatpush1.msra.mxu0 0.0
      %625 = vmatprep.subr.mxu0 0.0
      %626 = vmatpush1.msra.mxu0 0.0
      %627 = vmatprep.subr.mxu0 0.0
      %628 = vmatpush1.msra.mxu0 0.0
      %629 = vmatprep.subr.mxu0 0.0
      %630 = vmatpush1.msra.mxu0 0.0
      %631 = vmatprep.subr.mxu0 0.0
      %632 = vmatpush1.msra.mxu0 0.0
      %633 = vmatprep.subr.mxu0 0.0
      %634 = vmatpush1.msra.mxu0 0.0
      %635 = vmatprep.subr.mxu0 0.0
      %636 = vmatpush1.msra.mxu0 0.0
      %637 = vmatprep.subr.mxu0 0.0
      %638 = vmatpush1.msra.mxu0 0.0
      %639 = vmatprep.subr.mxu0 0.0
      %640 = vmatpush1.msra.mxu0 0.0
      %641 = vmatprep.subr.mxu0 0.0
      %642 = vmatpush1.msra.mxu0 0.0
      %643 = vmatprep.subr.mxu0 0.0
      %644 = vmatpush1.msra.mxu0 0.0
      %645 = vmatprep.subr.mxu0 0.0
      %646 = vmatpush1.msra.mxu0 0.0
      %647 = vmatprep.subr.mxu0 0.0
      %648 = vmatpush1.msra.mxu0 0.0
      %649 = vmatprep.subr.mxu0 0.0
      %650 = vmatpush1.msra.mxu0 0.0
      %651 = vmatprep.subr.mxu0 0.0
      %652 = vmatpush1.msra.mxu0 0.0
      %653 = vmatprep.subr.mxu0 0.0
      %654 = vmatpush1.msra.mxu0 0.0
      %655 = vmatprep.subr.mxu0 0.0
      %656 = vmatpush1.msra.mxu0 0.0
      %657 = vmatprep.subr.mxu0 0.0
      %658 = vmatpush1.msra.mxu0 0.0
      %659 = vmatprep.subr.mxu0 0.0
      %660 = vmatpush1.msra.mxu0 0.0
      %661 = vmatprep.subr.mxu0 0.0
      %662 = vmatpush1.msra.mxu0 0.0
      %663 = vmatprep.subr.mxu0 0.0
      %664 = vmatpush1.msra.mxu0 0.0
      %665 = vmatprep.subr.mxu0 0.0
      %666 = vmatpush1.msra.mxu0 0.0
      %667 = vmatprep.subr.mxu0 0.0
      %668 = vmatpush1.msra.mxu0 0.0
      %669 = vmatprep.mubr.f32.mxu0 0.0
      %670 = vmatmul.mubr.f32.gmra.mrb[0].mxu0 %v600
      %v671 = vpop.f32.mrb[0].mxu0
      %v672 = vadd.f32 0.0, %v671
      %v673 = vpop.f32.mrb[0].mxu0
      %674 = vdwg.mxu0
      %v675 = vadd.f32 %v595, %v672
      %v676 = vld [vmem:[%s318 + $0x2] sm:$0xff]
      %s677 = scalar_lea.vmem %s3, 16
      %v678 = vld [vmem:[%s677] sm:$0xf]
      %v680 = vsel %vm362, %v676, 0
      %v683 = vsel %vm366, %v678, 0
      %685 = vmatprep.subr.mxu0 0.0
      %686 = vmatpush1.msra.mxu0 %v683
      %687 = vmatprep.subr.mxu0 0.0
      %688 = vmatpush1.msra.mxu0 0.0
      %689 = vmatprep.subr.mxu0 0.0
      %690 = vmatpush1.msra.mxu0 0.0
      %691 = vmatprep.subr.mxu0 0.0
      %692 = vmatpush1.msra.mxu0 0.0
      %693 = vmatprep.subr.mxu0 0.0
      %694 = vmatpush1.msra.mxu0 0.0
      %695 = vmatprep.subr.mxu0 0.0
      %696 = vmatpush1.msra.mxu0 0.0
      %697 = vmatprep.subr.mxu0 0.0
      %698 = vmatpush1.msra.mxu0 0.0
      %699 = vmatprep.subr.mxu0 0.0
      %700 = vmatpush1.msra.mxu0 0.0
      %701 = vmatprep.subr.mxu0 0.0
      %702 = vmatpush1.msra.mxu0 0.0
      %703 = vmatprep.subr.mxu0 0.0
      %704 = vmatpush1.msra.mxu0 0.0
      %705 = vmatprep.subr.mxu0 0.0
      %706 = vmatpush1.msra.mxu0 0.0
      %707 = vmatprep.subr.mxu0 0.0
      %708 = vmatpush1.msra.mxu0 0.0
      %709 = vmatprep.subr.mxu0 0.0
      %710 = vmatpush1.msra.mxu0 0.0
      %711 = vmatprep.subr.mxu0 0.0
      %712 = vmatpush1.msra.mxu0 0.0
      %713 = vmatprep.subr.mxu0 0.0
      %714 = vmatpush1.msra.mxu0 0.0
      %715 = vmatprep.subr.mxu0 0.0
      %716 = vmatpush1.msra.mxu0 0.0
      %717 = vmatprep.subr.mxu0 0.0
      %718 = vmatpush1.msra.mxu0 0.0
      %719 = vmatprep.subr.mxu0 0.0
      %720 = vmatpush1.msra.mxu0 0.0
      %721 = vmatprep.subr.mxu0 0.0
      %722 = vmatpush1.msra.mxu0 0.0
      %723 = vmatprep.subr.mxu0 0.0
      %724 = vmatpush1.msra.mxu0 0.0
      %725 = vmatprep.subr.mxu0 0.0
      %726 = vmatpush1.msra.mxu0 0.0
      %727 = vmatprep.subr.mxu0 0.0
      %728 = vmatpush1.msra.mxu0 0.0
      %729 = vmatprep.subr.mxu0 0.0
      %730 = vmatpush1.msra.mxu0 0.0
      %731 = vmatprep.subr.mxu0 0.0
      %732 = vmatpush1.msra.mxu0 0.0
      %733 = vmatprep.subr.mxu0 0.0
      %734 = vmatpush1.msra.mxu0 0.0
      %735 = vmatprep.subr.mxu0 0.0
      %736 = vmatpush1.msra.mxu0 0.0
      %737 = vmatprep.subr.mxu0 0.0
      %738 = vmatpush1.msra.mxu0 0.0
      %739 = vmatprep.subr.mxu0 0.0
      %740 = vmatpush1.msra.mxu0 0.0
      %741 = vmatprep.subr.mxu0 0.0
      %742 = vmatpush1.msra.mxu0 0.0
      %743 = vmatprep.subr.mxu0 0.0
      %744 = vmatpush1.msra.mxu0 0.0
      %745 = vmatprep.subr.mxu0 0.0
      %746 = vmatpush1.msra.mxu0 0.0
      %747 = vmatprep.subr.mxu0 0.0
      %748 = vmatpush1.msra.mxu0 0.0
      %749 = vmatprep.mubr.f32.mxu0 0.0
      %750 = vmatmul.mubr.f32.gmra.mrb[0].mxu0 %v680
      %v751 = vpop.f32.mrb[0].mxu0
      %v752 = vadd.f32 0.0, %v751
      %v753 = vpop.f32.mrb[0].mxu0
      %754 = vdwg.mxu0
      %v755 = vadd.f32 %v675, %v752
      %s756 = scalar_lea.vmem %s318, 32
      %v757 = vld [vmem:[%s756] sm:$0xff]
      %s758 = scalar_lea.vmem %s3, 20
      %v759 = vld [vmem:[%s758] sm:$0xf]
      %v761 = vsel %vm362, %v757, 0
      %v764 = vsel %vm366, %v759, 0
      %766 = vmatprep.subr.mxu0 0.0
      %767 = vmatpush1.msra.mxu0 %v764
      %768 = vmatprep.subr.mxu0 0.0
      %769 = vmatpush1.msra.mxu0 0.0
      %770 = vmatprep.subr.mxu0 0.0
      %771 = vmatpush1.msra.mxu0 0.0
      %772 = vmatprep.subr.mxu0 0.0
      %773 = vmatpush1.msra.mxu0 0.0
      %774 = vmatprep.subr.mxu0 0.0
      %775 = vmatpush1.msra.mxu0 0.0
      %776 = vmatprep.subr.mxu0 0.0
      %777 = vmatpush1.msra.mxu0 0.0
      %778 = vmatprep.subr.mxu0 0.0
      %779 = vmatpush1.msra.mxu0 0.0
      %780 = vmatprep.subr.mxu0 0.0
      %781 = vmatpush1.msra.mxu0 0.0
      %782 = vmatprep.subr.mxu0 0.0
      %783 = vmatpush1.msra.mxu0 0.0
      %784 = vmatprep.subr.mxu0 0.0
      %785 = vmatpush1.msra.mxu0 0.0
      %786 = vmatprep.subr.mxu0 0.0
      %787 = vmatpush1.msra.mxu0 0.0
      %788 = vmatprep.subr.mxu0 0.0
      %789 = vmatpush1.msra.mxu0 0.0
      %790 = vmatprep.subr.mxu0 0.0
      %791 = vmatpush1.msra.mxu0 0.0
      %792 = vmatprep.subr.mxu0 0.0
      %793 = vmatpush1.msra.mxu0 0.0
      %794 = vmatprep.subr.mxu0 0.0
      %795 = vmatpush1.msra.mxu0 0.0
      %796 = vmatprep.subr.mxu0 0.0
      %797 = vmatpush1.msra.mxu0 0.0
      %798 = vmatprep.subr.mxu0 0.0
      %799 = vmatpush1.msra.mxu0 0.0
      %800 = vmatprep.subr.mxu0 0.0
      %801 = vmatpush1.msra.mxu0 0.0
      %802 = vmatprep.subr.mxu0 0.0
      %803 = vmatpush1.msra.mxu0 0.0
      %804 = vmatprep.subr.mxu0 0.0
      %805 = vmatpush1.msra.mxu0 0.0
      %806 = vmatprep.subr.mxu0 0.0
      %807 = vmatpush1.msra.mxu0 0.0
      %808 = vmatprep.subr.mxu0 0.0
      %809 = vmatpush1.msra.mxu0 0.0
      %810 = vmatprep.subr.mxu0 0.0
      %811 = vmatpush1.msra.mxu0 0.0
      %812 = vmatprep.subr.mxu0 0.0
      %813 = vmatpush1.msra.mxu0 0.0
      %814 = vmatprep.subr.mxu0 0.0
      %815 = vmatpush1.msra.mxu0 0.0
      %816 = vmatprep.subr.mxu0 0.0
      %817 = vmatpush1.msra.mxu0 0.0
      %818 = vmatprep.subr.mxu0 0.0
      %819 = vmatpush1.msra.mxu0 0.0
      %820 = vmatprep.subr.mxu0 0.0
      %821 = vmatpush1.msra.mxu0 0.0
      %822 = vmatprep.subr.mxu0 0.0
      %823 = vmatpush1.msra.mxu0 0.0
      %824 = vmatprep.subr.mxu0 0.0
      %825 = vmatpush1.msra.mxu0 0.0
      %826 = vmatprep.subr.mxu0 0.0
      %827 = vmatpush1.msra.mxu0 0.0
      %828 = vmatprep.subr.mxu0 0.0
      %829 = vmatpush1.msra.mxu0 0.0
      %830 = vmatprep.mubr.f32.mxu0 0.0
      %831 = vmatmul.mubr.f32.gmra.mrb[0].mxu0 %v761
      %v832 = vpop.f32.mrb[0].mxu0
      %v833 = vadd.f32 0.0, %v832
      %v834 = vpop.f32.mrb[0].mxu0
      %835 = vdwg.mxu0
      %v836 = vadd.f32 %v755, %v833
      %s837 = scalar_lea.vmem %s318, 48
      %v838 = vld [vmem:[%s837] sm:$0xff]
      %s839 = scalar_lea.vmem %s3, 24
      %v840 = vld [vmem:[%s839] sm:$0xf]
      %v842 = vsel %vm362, %v838, 0
      %v845 = vsel %vm366, %v840, 0
      %847 = vmatprep.subr.mxu0 0.0
      %848 = vmatpush1.msra.mxu0 %v845
      %849 = vmatprep.subr.mxu0 0.0
      %850 = vmatpush1.msra.mxu0 0.0
      %851 = vmatprep.subr.mxu0 0.0
      %852 = vmatpush1.msra.mxu0 0.0
      %853 = vmatprep.subr.mxu0 0.0
      %854 = vmatpush1.msra.mxu0 0.0
      %855 = vmatprep.subr.mxu0 0.0
      %856 = vmatpush1.msra.mxu0 0.0
      %857 = vmatprep.subr.mxu0 0.0
      %858 = vmatpush1.msra.mxu0 0.0
      %859 = vmatprep.subr.mxu0 0.0
      %860 = vmatpush1.msra.mxu0 0.0
      %861 = vmatprep.subr.mxu0 0.0
      %862 = vmatpush1.msra.mxu0 0.0
      %863 = vmatprep.subr.mxu0 0.0
      %864 = vmatpush1.msra.mxu0 0.0
      %865 = vmatprep.subr.mxu0 0.0
      %866 = vmatpush1.msra.mxu0 0.0
      %867 = vmatprep.subr.mxu0 0.0
      %868 = vmatpush1.msra.mxu0 0.0
      %869 = vmatprep.subr.mxu0 0.0
      %870 = vmatpush1.msra.mxu0 0.0
      %871 = vmatprep.subr.mxu0 0.0
      %872 = vmatpush1.msra.mxu0 0.0
      %873 = vmatprep.subr.mxu0 0.0
      %874 = vmatpush1.msra.mxu0 0.0
      %875 = vmatprep.subr.mxu0 0.0
      %876 = vmatpush1.msra.mxu0 0.0
      %877 = vmatprep.subr.mxu0 0.0
      %878 = vmatpush1.msra.mxu0 0.0
      %879 = vmatprep.subr.mxu0 0.0
      %880 = vmatpush1.msra.mxu0 0.0
      %881 = vmatprep.subr.mxu0 0.0
      %882 = vmatpush1.msra.mxu0 0.0
      %883 = vmatprep.subr.mxu0 0.0
      %884 = vmatpush1.msra.mxu0 0.0
      %885 = vmatprep.subr.mxu0 0.0
      %886 = vmatpush1.msra.mxu0 0.0
      %887 = vmatprep.subr.mxu0 0.0
      %888 = vmatpush1.msra.mxu0 0.0
      %889 = vmatprep.subr.mxu0 0.0
      %890 = vmatpush1.msra.mxu0 0.0
      %891 = vmatprep.subr.mxu0 0.0
      %892 = vmatpush1.msra.mxu0 0.0
      %893 = vmatprep.subr.mxu0 0.0
      %894 = vmatpush1.msra.mxu0 0.0
      %895 = vmatprep.subr.mxu0 0.0
      %896 = vmatpush1.msra.mxu0 0.0
      %897 = vmatprep.subr.mxu0 0.0
      %898 = vmatpush1.msra.mxu0 0.0
      %899 = vmatprep.subr.mxu0 0.0
      %900 = vmatpush1.msra.mxu0 0.0
      %901 = vmatprep.subr.mxu0 0.0
      %902 = vmatpush1.msra.mxu0 0.0
      %903 = vmatprep.subr.mxu0 0.0
      %904 = vmatpush1.msra.mxu0 0.0
      %905 = vmatprep.subr.mxu0 0.0
      %906 = vmatpush1.msra.mxu0 0.0
      %907 = vmatprep.subr.mxu0 0.0
      %908 = vmatpush1.msra.mxu0 0.0
      %909 = vmatprep.subr.mxu0 0.0
      %910 = vmatpush1.msra.mxu0 0.0
      %911 = vmatprep.mubr.f32.mxu0 0.0
      %912 = vmatmul.mubr.f32.gmra.mrb[0].mxu0 %v842
      %v913 = vpop.f32.mrb[0].mxu0
      %v914 = vadd.f32 0.0, %v913
      %v915 = vpop.f32.mrb[0].mxu0
      %916 = vdwg.mxu0
      %v917 = vadd.f32 %v836, %v914
      %v918 = vld [vmem:[%s756 + $0x1] sm:$0xff]
      %s919 = scalar_lea.vmem %s3, 28
      %v920 = vld [vmem:[%s919] sm:$0xf]
      %v922 = vsel %vm362, %v918, 0
      %v925 = vsel %vm366, %v920, 0
      %927 = vmatprep.subr.mxu0 0.0
      %928 = vmatpush1.msra.mxu0 %v925
      %929 = vmatprep.subr.mxu0 0.0
      %930 = vmatpush1.msra.mxu0 0.0
      %931 = vmatprep.subr.mxu0 0.0
      %932 = vmatpush1.msra.mxu0 0.0
      %933 = vmatprep.subr.mxu0 0.0
      %934 = vmatpush1.msra.mxu0 0.0
      %935 = vmatprep.subr.mxu0 0.0
      %936 = vmatpush1.msra.mxu0 0.0
      %937 = vmatprep.subr.mxu0 0.0
      %938 = vmatpush1.msra.mxu0 0.0
      %939 = vmatprep.subr.mxu0 0.0
      %940 = vmatpush1.msra.mxu0 0.0
      %941 = vmatprep.subr.mxu0 0.0
      %942 = vmatpush1.msra.mxu0 0.0
      %943 = vmatprep.subr.mxu0 0.0
      %944 = vmatpush1.msra.mxu0 0.0
      %945 = vmatprep.subr.mxu0 0.0
      %946 = vmatpush1.msra.mxu0 0.0
      %947 = vmatprep.subr.mxu0 0.0
      %948 = vmatpush1.msra.mxu0 0.0
      %949 = vmatprep.subr.mxu0 0.0
      %950 = vmatpush1.msra.mxu0 0.0
      %951 = vmatprep.subr.mxu0 0.0
      %952 = vmatpush1.msra.mxu0 0.0
      %953 = vmatprep.subr.mxu0 0.0
      %954 = vmatpush1.msra.mxu0 0.0
      %955 = vmatprep.subr.mxu0 0.0
      %956 = vmatpush1.msra.mxu0 0.0
      %957 = vmatprep.subr.mxu0 0.0
      %958 = vmatpush1.msra.mxu0 0.0
      %959 = vmatprep.subr.mxu0 0.0
      %960 = vmatpush1.msra.mxu0 0.0
      %961 = vmatprep.subr.mxu0 0.0
      %962 = vmatpush1.msra.mxu0 0.0
      %963 = vmatprep.subr.mxu0 0.0
      %964 = vmatpush1.msra.mxu0 0.0
      %965 = vmatprep.subr.mxu0 0.0
      %966 = vmatpush1.msra.mxu0 0.0
      %967 = vmatprep.subr.mxu0 0.0
      %968 = vmatpush1.msra.mxu0 0.0
      %969 = vmatprep.subr.mxu0 0.0
      %970 = vmatpush1.msra.mxu0 0.0
      %971 = vmatprep.subr.mxu0 0.0
      %972 = vmatpush1.msra.mxu0 0.0
      %973 = vmatprep.subr.mxu0 0.0
      %974 = vmatpush1.msra.mxu0 0.0
      %975 = vmatprep.subr.mxu0 0.0
      %976 = vmatpush1.msra.mxu0 0.0
      %977 = vmatprep.subr.mxu0 0.0
      %978 = vmatpush1.msra.mxu0 0.0
      %979 = vmatprep.subr.mxu0 0.0
      %980 = vmatpush1.msra.mxu0 0.0
      %981 = vmatprep.subr.mxu0 0.0
      %982 = vmatpush1.msra.mxu0 0.0
      %983 = vmatprep.subr.mxu0 0.0
      %984 = vmatpush1.msra.mxu0 0.0
      %985 = vmatprep.subr.mxu0 0.0
      %986 = vmatpush1.msra.mxu0 0.0
      %987 = vmatprep.subr.mxu0 0.0
      %988 = vmatpush1.msra.mxu0 0.0
      %989 = vmatprep.subr.mxu0 0.0
      %990 = vmatpush1.msra.mxu0 0.0
      %991 = vmatprep.mubr.f32.mxu0 0.0
      %992 = vmatmul.mubr.f32.gmra.mrb[0].mxu0 %v922
      %v993 = vpop.f32.mrb[0].mxu0
      %v994 = vadd.f32 0.0, %v993
      %v995 = vpop.f32.mrb[0].mxu0
      %996 = vdwg.mxu0
      %v997 = vadd.f32 %v917, %v994
      %v998 = vld [vmem:[%s837 + $0x1] sm:$0xff]
      %s999 = scalar_lea.vmem %s3, 32
      %v1000 = vld [vmem:[%s999] sm:$0xf]
      %v1002 = vsel %vm362, %v998, 0
      %v1005 = vsel %vm366, %v1000, 0
      %1007 = vmatprep.subr.mxu0 0.0
      %1008 = vmatpush1.msra.mxu0 %v1005
      %1009 = vmatprep.subr.mxu0 0.0
      %1010 = vmatpush1.msra.mxu0 0.0
      %1011 = vmatprep.subr.mxu0 0.0
      %1012 = vmatpush1.msra.mxu0 0.0
      %1013 = vmatprep.subr.mxu0 0.0
      %1014 = vmatpush1.msra.mxu0 0.0
      %1015 = vmatprep.subr.mxu0 0.0
      %1016 = vmatpush1.msra.mxu0 0.0
      %1017 = vmatprep.subr.mxu0 0.0
      %1018 = vmatpush1.msra.mxu0 0.0
      %1019 = vmatprep.subr.mxu0 0.0
      %1020 = vmatpush1.msra.mxu0 0.0
      %1021 = vmatprep.subr.mxu0 0.0
      %1022 = vmatpush1.msra.mxu0 0.0
      %1023 = vmatprep.subr.mxu0 0.0
      %1024 = vmatpush1.msra.mxu0 0.0
      %1025 = vmatprep.subr.mxu0 0.0
      %1026 = vmatpush1.msra.mxu0 0.0
      %1027 = vmatprep.subr.mxu0 0.0
      %1028 = vmatpush1.msra.mxu0 0.0
      %1029 = vmatprep.subr.mxu0 0.0
      %1030 = vmatpush1.msra.mxu0 0.0
      %1031 = vmatprep.subr.mxu0 0.0
      %1032 = vmatpush1.msra.mxu0 0.0
      %1033 = vmatprep.subr.mxu0 0.0
      %1034 = vmatpush1.msra.mxu0 0.0
      %1035 = vmatprep.subr.mxu0 0.0
      %1036 = vmatpush1.msra.mxu0 0.0
      %1037 = vmatprep.subr.mxu0 0.0
      %1038 = vmatpush1.msra.mxu0 0.0
      %1039 = vmatprep.subr.mxu0 0.0
      %1040 = vmatpush1.msra.mxu0 0.0
      %1041 = vmatprep.subr.mxu0 0.0
      %1042 = vmatpush1.msra.mxu0 0.0
      %1043 = vmatprep.subr.mxu0 0.0
      %1044 = vmatpush1.msra.mxu0 0.0
      %1045 = vmatprep.subr.mxu0 0.0
      %1046 = vmatpush1.msra.mxu0 0.0
      %1047 = vmatprep.subr.mxu0 0.0
      %1048 = vmatpush1.msra.mxu0 0.0
      %1049 = vmatprep.subr.mxu0 0.0
      %1050 = vmatpush1.msra.mxu0 0.0
      %1051 = vmatprep.subr.mxu0 0.0
      %1052 = vmatpush1.msra.mxu0 0.0
      %1053 = vmatprep.subr.mxu0 0.0
      %1054 = vmatpush1.msra.mxu0 0.0
      %1055 = vmatprep.subr.mxu0 0.0
      %1056 = vmatpush1.msra.mxu0 0.0
      %1057 = vmatprep.subr.mxu0 0.0
      %1058 = vmatpush1.msra.mxu0 0.0
      %1059 = vmatprep.subr.mxu0 0.0
      %1060 = vmatpush1.msra.mxu0 0.0
      %1061 = vmatprep.subr.mxu0 0.0
      %1062 = vmatpush1.msra.mxu0 0.0
      %1063 = vmatprep.subr.mxu0 0.0
      %1064 = vmatpush1.msra.mxu0 0.0
      %1065 = vmatprep.subr.mxu0 0.0
      %1066 = vmatpush1.msra.mxu0 0.0
      %1067 = vmatprep.subr.mxu0 0.0
      %1068 = vmatpush1.msra.mxu0 0.0
      %1069 = vmatprep.subr.mxu0 0.0
      %1070 = vmatpush1.msra.mxu0 0.0
      %1071 = vmatprep.mubr.f32.mxu0 0.0
      %1072 = vmatmul.mubr.f32.gmra.mrb[0].mxu0 %v1002
      %v1073 = vpop.f32.mrb[0].mxu0
      %v1074 = vadd.f32 0.0, %v1073
      %v1075 = vpop.f32.mrb[0].mxu0
      %1076 = vdwg.mxu0
      %v1077 = vadd.f32 %v997, %v1074
      %v1078 = vld [vmem:[%s756 + $0x2] sm:$0xff]
      %s1079 = scalar_lea.vmem %s3, 36
      %v1080 = vld [vmem:[%s1079] sm:$0xf]
      %v1082 = vsel %vm362, %v1078, 0
      %v1085 = vsel %vm366, %v1080, 0
      %1087 = vmatprep.subr.mxu0 0.0
      %1088 = vmatpush1.msra.mxu0 %v1085
      %1089 = vmatprep.subr.mxu0 0.0
      %1090 = vmatpush1.msra.mxu0 0.0
      %1091 = vmatprep.subr.mxu0 0.0
      %1092 = vmatpush1.msra.mxu0 0.0
      %1093 = vmatprep.subr.mxu0 0.0
      %1094 = vmatpush1.msra.mxu0 0.0
      %1095 = vmatprep.subr.mxu0 0.0
      %1096 = vmatpush1.msra.mxu0 0.0
      %1097 = vmatprep.subr.mxu0 0.0
      %1098 = vmatpush1.msra.mxu0 0.0
      %1099 = vmatprep.subr.mxu0 0.0
      %1100 = vmatpush1.msra.mxu0 0.0
      %1101 = vmatprep.subr.mxu0 0.0
      %1102 = vmatpush1.msra.mxu0 0.0
      %1103 = vmatprep.subr.mxu0 0.0
      %1104 = vmatpush1.msra.mxu0 0.0
      %1105 = vmatprep.subr.mxu0 0.0
      %1106 = vmatpush1.msra.mxu0 0.0
      %1107 = vmatprep.subr.mxu0 0.0
      %1108 = vmatpush1.msra.mxu0 0.0
      %1109 = vmatprep.subr.mxu0 0.0
      %1110 = vmatpush1.msra.mxu0 0.0
      %1111 = vmatprep.subr.mxu0 0.0
      %1112 = vmatpush1.msra.mxu0 0.0
      %1113 = vmatprep.subr.mxu0 0.0
      %1114 = vmatpush1.msra.mxu0 0.0
      %1115 = vmatprep.subr.mxu0 0.0
      %1116 = vmatpush1.msra.mxu0 0.0
      %1117 = vmatprep.subr.mxu0 0.0
      %1118 = vmatpush1.msra.mxu0 0.0
      %1119 = vmatprep.subr.mxu0 0.0
      %1120 = vmatpush1.msra.mxu0 0.0
      %1121 = vmatprep.subr.mxu0 0.0
      %1122 = vmatpush1.msra.mxu0 0.0
      %1123 = vmatprep.subr.mxu0 0.0
      %1124 = vmatpush1.msra.mxu0 0.0
      %1125 = vmatprep.subr.mxu0 0.0
      %1126 = vmatpush1.msra.mxu0 0.0
      %1127 = vmatprep.subr.mxu0 0.0
      %1128 = vmatpush1.msra.mxu0 0.0
      %1129 = vmatprep.subr.mxu0 0.0
      %1130 = vmatpush1.msra.mxu0 0.0
      %1131 = vmatprep.subr.mxu0 0.0
      %1132 = vmatpush1.msra.mxu0 0.0
      %1133 = vmatprep.subr.mxu0 0.0
      %1134 = vmatpush1.msra.mxu0 0.0
      %1135 = vmatprep.subr.mxu0 0.0
      %1136 = vmatpush1.msra.mxu0 0.0
      %1137 = vmatprep.subr.mxu0 0.0
      %1138 = vmatpush1.msra.mxu0 0.0
      %1139 = vmatprep.subr.mxu0 0.0
      %1140 = vmatpush1.msra.mxu0 0.0
      %1141 = vmatprep.subr.mxu0 0.0
      %1142 = vmatpush1.msra.mxu0 0.0
      %1143 = vmatprep.subr.mxu0 0.0
      %1144 = vmatpush1.msra.mxu0 0.0
      %1145 = vmatprep.subr.mxu0 0.0
      %1146 = vmatpush1.msra.mxu0 0.0
      %1147 = vmatprep.subr.mxu0 0.0
      %1148 = vmatpush1.msra.mxu0 0.0
      %1149 = vmatprep.subr.mxu0 0.0
      %1150 = vmatpush1.msra.mxu0 0.0
      %1151 = vmatprep.mubr.f32.mxu0 0.0
      %1152 = vmatmul.mubr.f32.gmra.mrb[0].mxu0 %v1082
      %v1153 = vpop.f32.mrb[0].mxu0
      %v1154 = vadd.f32 0.0, %v1153
      %v1155 = vpop.f32.mrb[0].mxu0
      %1156 = vdwg.mxu0
      %v1157 = vadd.f32 %v1077, %v1154
      %v1158 = vld [vmem:[%s330] sm:$0xff]
      %s1159 = scalar_lea.vmem %s3, 40
      %v1160 = vld [vmem:[%s1159] sm:$0xf]
      %v1162 = vsel %vm362, %v1158, 0
      %v1165 = vsel %vm366, %v1160, 0
      %1167 = vmatprep.subr.mxu0 0.0
      %1168 = vmatpush1.msra.mxu0 %v1165
      %1169 = vmatprep.subr.mxu0 0.0
      %1170 = vmatpush1.msra.mxu0 0.0
      %1171 = vmatprep.subr.mxu0 0.0
      %1172 = vmatpush1.msra.mxu0 0.0
      %1173 = vmatprep.subr.mxu0 0.0
      %1174 = vmatpush1.msra.mxu0 0.0
      %1175 = vmatprep.subr.mxu0 0.0
      %1176 = vmatpush1.msra.mxu0 0.0
      %1177 = vmatprep.subr.mxu0 0.0
      %1178 = vmatpush1.msra.mxu0 0.0
      %1179 = vmatprep.subr.mxu0 0.0
      %1180 = vmatpush1.msra.mxu0 0.0
      %1181 = vmatprep.subr.mxu0 0.0
      %1182 = vmatpush1.msra.mxu0 0.0
      %1183 = vmatprep.subr.mxu0 0.0
      %1184 = vmatpush1.msra.mxu0 0.0
      %1185 = vmatprep.subr.mxu0 0.0
      %1186 = vmatpush1.msra.mxu0 0.0
      %1187 = vmatprep.subr.mxu0 0.0
      %1188 = vmatpush1.msra.mxu0 0.0
      %1189 = vmatprep.subr.mxu0 0.0
      %1190 = vmatpush1.msra.mxu0 0.0
      %1191 = vmatprep.subr.mxu0 0.0
      %1192 = vmatpush1.msra.mxu0 0.0
      %1193 = vmatprep.subr.mxu0 0.0
      %1194 = vmatpush1.msra.mxu0 0.0
      %1195 = vmatprep.subr.mxu0 0.0
      %1196 = vmatpush1.msra.mxu0 0.0
      %1197 = vmatprep.subr.mxu0 0.0
      %1198 = vmatpush1.msra.mxu0 0.0
      %1199 = vmatprep.subr.mxu0 0.0
      %1200 = vmatpush1.msra.mxu0 0.0
      %1201 = vmatprep.subr.mxu0 0.0
      %1202 = vmatpush1.msra.mxu0 0.0
      %1203 = vmatprep.subr.mxu0 0.0
      %1204 = vmatpush1.msra.mxu0 0.0
      %1205 = vmatprep.subr.mxu0 0.0
      %1206 = vmatpush1.msra.mxu0 0.0
      %1207 = vmatprep.subr.mxu0 0.0
      %1208 = vmatpush1.msra.mxu0 0.0
      %1209 = vmatprep.subr.mxu0 0.0
      %1210 = vmatpush1.msra.mxu0 0.0
      %1211 = vmatprep.subr.mxu0 0.0
      %1212 = vmatpush1.msra.mxu0 0.0
      %1213 = vmatprep.subr.mxu0 0.0
      %1214 = vmatpush1.msra.mxu0 0.0
      %1215 = vmatprep.subr.mxu0 0.0
      %1216 = vmatpush1.msra.mxu0 0.0
      %1217 = vmatprep.subr.mxu0 0.0
      %1218 = vmatpush1.msra.mxu0 0.0
      %1219 = vmatprep.subr.mxu0 0.0
      %1220 = vmatpush1.msra.mxu0 0.0
      %1221 = vmatprep.subr.mxu0 0.0
      %1222 = vmatpush1.msra.mxu0 0.0
      %1223 = vmatprep.subr.mxu0 0.0
      %1224 = vmatpush1.msra.mxu0 0.0
      %1225 = vmatprep.subr.mxu0 0.0
      %1226 = vmatpush1.msra.mxu0 0.0
      %1227 = vmatprep.subr.mxu0 0.0
      %1228 = vmatpush1.msra.mxu0 0.0
      %1229 = vmatprep.subr.mxu0 0.0
      %1230 = vmatpush1.msra.mxu0 0.0
      %1231 = vmatprep.mubr.f32.mxu0 0.0
      %1232 = vmatmul.mubr.f32.gmra.mrb[0].mxu0 %v1162
      %v1233 = vpop.f32.mrb[0].mxu0
      %v1234 = vadd.f32 0.0, %v1233
      %v1235 = vpop.f32.mrb[0].mxu0
      %1236 = vdwg.mxu0
      %v1237 = vadd.f32 %v1157, %v1234
      %s1238 = scalar_lea.vmem %s330, 16
      %v1239 = vld [vmem:[%s1238] sm:$0xff]
      %s1240 = scalar_lea.vmem %s3, 44
      %v1241 = vld [vmem:[%s1240] sm:$0xf]
      %v1243 = vsel %vm362, %v1239, 0
      %v1246 = vsel %vm366, %v1241, 0
      %1248 = vmatprep.subr.mxu0 0.0
      %1249 = vmatpush1.msra.mxu0 %v1246
      %1250 = vmatprep.subr.mxu0 0.0
      %1251 = vmatpush1.msra.mxu0 0.0
      %1252 = vmatprep.subr.mxu0 0.0
      %1253 = vmatpush1.msra.mxu0 0.0
      %1254 = vmatprep.subr.mxu0 0.0
      %1255 = vmatpush1.msra.mxu0 0.0
      %1256 = vmatprep.subr.mxu0 0.0
      %1257 = vmatpush1.msra.mxu0 0.0
      %1258 = vmatprep.subr.mxu0 0.0
      %1259 = vmatpush1.msra.mxu0 0.0
      %1260 = vmatprep.subr.mxu0 0.0
      %1261 = vmatpush1.msra.mxu0 0.0
      %1262 = vmatprep.subr.mxu0 0.0
      %1263 = vmatpush1.msra.mxu0 0.0
      %1264 = vmatprep.subr.mxu0 0.0
      %1265 = vmatpush1.msra.mxu0 0.0
      %1266 = vmatprep.subr.mxu0 0.0
      %1267 = vmatpush1.msra.mxu0 0.0
      %1268 = vmatprep.subr.mxu0 0.0
      %1269 = vmatpush1.msra.mxu0 0.0
      %1270 = vmatprep.subr.mxu0 0.0
      %1271 = vmatpush1.msra.mxu0 0.0
      %1272 = vmatprep.subr.mxu0 0.0
      %1273 = vmatpush1.msra.mxu0 0.0
      %1274 = vmatprep.subr.mxu0 0.0
      %1275 = vmatpush1.msra.mxu0 0.0
      %1276 = vmatprep.subr.mxu0 0.0
      %1277 = vmatpush1.msra.mxu0 0.0
      %1278 = vmatprep.subr.mxu0 0.0
      %1279 = vmatpush1.msra.mxu0 0.0
      %1280 = vmatprep.subr.mxu0 0.0
      %1281 = vmatpush1.msra.mxu0 0.0
      %1282 = vmatprep.subr.mxu0 0.0
      %1283 = vmatpush1.msra.mxu0 0.0
      %1284 = vmatprep.subr.mxu0 0.0
      %1285 = vmatpush1.msra.mxu0 0.0
      %1286 = vmatprep.subr.mxu0 0.0
      %1287 = vmatpush1.msra.mxu0 0.0
      %1288 = vmatprep.subr.mxu0 0.0
      %1289 = vmatpush1.msra.mxu0 0.0
      %1290 = vmatprep.subr.mxu0 0.0
      %1291 = vmatpush1.msra.mxu0 0.0
      %1292 = vmatprep.subr.mxu0 0.0
      %1293 = vmatpush1.msra.mxu0 0.0
      %1294 = vmatprep.subr.mxu0 0.0
      %1295 = vmatpush1.msra.mxu0 0.0
      %1296 = vmatprep.subr.mxu0 0.0
      %1297 = vmatpush1.msra.mxu0 0.0
      %1298 = vmatprep.subr.mxu0 0.0
      %1299 = vmatpush1.msra.mxu0 0.0
      %1300 = vmatprep.subr.mxu0 0.0
      %1301 = vmatpush1.msra.mxu0 0.0
      %1302 = vmatprep.subr.mxu0 0.0
      %1303 = vmatpush1.msra.mxu0 0.0
      %1304 = vmatprep.subr.mxu0 0.0
      %1305 = vmatpush1.msra.mxu0 0.0
      %1306 = vmatprep.subr.mxu0 0.0
      %1307 = vmatpush1.msra.mxu0 0.0
      %1308 = vmatprep.subr.mxu0 0.0
      %1309 = vmatpush1.msra.mxu0 0.0
      %1310 = vmatprep.subr.mxu0 0.0
      %1311 = vmatpush1.msra.mxu0 0.0
      %1312 = vmatprep.mubr.f32.mxu0 0.0
      %1313 = vmatmul.mubr.f32.gmra.mrb[0].mxu0 %v1243
      %v1314 = vpop.f32.mrb[0].mxu0
      %v1315 = vadd.f32 0.0, %v1314
      %v1316 = vpop.f32.mrb[0].mxu0
      %1317 = vdwg.mxu0
      %v1318 = vadd.f32 %v1237, %v1315
      %v1319 = vld [vmem:[%s330 + $0x1] sm:$0xff]
      %s1320 = scalar_lea.vmem %s3, 48
      %v1321 = vld [vmem:[%s1320] sm:$0xf]
      %v1323 = vsel %vm362, %v1319, 0
      %v1326 = vsel %vm366, %v1321, 0
      %1328 = vmatprep.subr.mxu0 0.0
      %1329 = vmatpush1.msra.mxu0 %v1326
      %1330 = vmatprep.subr.mxu0 0.0
      %1331 = vmatpush1.msra.mxu0 0.0
      %1332 = vmatprep.subr.mxu0 0.0
      %1333 = vmatpush1.msra.mxu0 0.0
      %1334 = vmatprep.subr.mxu0 0.0
      %1335 = vmatpush1.msra.mxu0 0.0
      %1336 = vmatprep.subr.mxu0 0.0
      %1337 = vmatpush1.msra.mxu0 0.0
      %1338 = vmatprep.subr.mxu0 0.0
      %1339 = vmatpush1.msra.mxu0 0.0
      %1340 = vmatprep.subr.mxu0 0.0
      %1341 = vmatpush1.msra.mxu0 0.0
      %1342 = vmatprep.subr.mxu0 0.0
      %1343 = vmatpush1.msra.mxu0 0.0
      %1344 = vmatprep.subr.mxu0 0.0
      %1345 = vmatpush1.msra.mxu0 0.0
      %1346 = vmatprep.subr.mxu0 0.0
      %1347 = vmatpush1.msra.mxu0 0.0
      %1348 = vmatprep.subr.mxu0 0.0
      %1349 = vmatpush1.msra.mxu0 0.0
      %1350 = vmatprep.subr.mxu0 0.0
      %1351 = vmatpush1.msra.mxu0 0.0
      %1352 = vmatprep.subr.mxu0 0.0
      %1353 = vmatpush1.msra.mxu0 0.0
      %1354 = vmatprep.subr.mxu0 0.0
      %1355 = vmatpush1.msra.mxu0 0.0
      %1356 = vmatprep.subr.mxu0 0.0
      %1357 = vmatpush1.msra.mxu0 0.0
      %1358 = vmatprep.subr.mxu0 0.0
      %1359 = vmatpush1.msra.mxu0 0.0
      %1360 = vmatprep.subr.mxu0 0.0
      %1361 = vmatpush1.msra.mxu0 0.0
      %1362 = vmatprep.subr.mxu0 0.0
      %1363 = vmatpush1.msra.mxu0 0.0
      %1364 = vmatprep.subr.mxu0 0.0
      %1365 = vmatpush1.msra.mxu0 0.0
      %1366 = vmatprep.subr.mxu0 0.0
      %1367 = vmatpush1.msra.mxu0 0.0
      %1368 = vmatprep.subr.mxu0 0.0
      %1369 = vmatpush1.msra.mxu0 0.0
      %1370 = vmatprep.subr.mxu0 0.0
      %1371 = vmatpush1.msra.mxu0 0.0
      %1372 = vmatprep.subr.mxu0 0.0
      %1373 = vmatpush1.msra.mxu0 0.0
      %1374 = vmatprep.subr.mxu0 0.0
      %1375 = vmatpush1.msra.mxu0 0.0
      %1376 = vmatprep.subr.mxu0 0.0
      %1377 = vmatpush1.msra.mxu0 0.0
      %1378 = vmatprep.subr.mxu0 0.0
      %1379 = vmatpush1.msra.mxu0 0.0
      %1380 = vmatprep.subr.mxu0 0.0
      %1381 = vmatpush1.msra.mxu0 0.0
      %1382 = vmatprep.subr.mxu0 0.0
      %1383 = vmatpush1.msra.mxu0 0.0
      %1384 = vmatprep.subr.mxu0 0.0
      %1385 = vmatpush1.msra.mxu0 0.0
      %1386 = vmatprep.subr.mxu0 0.0
      %1387 = vmatpush1.msra.mxu0 0.0
      %1388 = vmatprep.subr.mxu0 0.0
      %1389 = vmatpush1.msra.mxu0 0.0
      %1390 = vmatprep.subr.mxu0 0.0
      %1391 = vmatpush1.msra.mxu0 0.0
      %1392 = vmatprep.mubr.f32.mxu0 0.0
      %1393 = vmatmul.mubr.f32.gmra.mrb[0].mxu0 %v1323
      %v1394 = vpop.f32.mrb[0].mxu0
      %v1395 = vadd.f32 0.0, %v1394
      %v1396 = vpop.f32.mrb[0].mxu0
      %1397 = vdwg.mxu0
      %v1398 = vadd.f32 %v1318, %v1395
      %v1399 = vld [vmem:[%s1238 + $0x1] sm:$0xff]
      %s1400 = scalar_lea.vmem %s3, 52
      %v1401 = vld [vmem:[%s1400] sm:$0xf]
      %v1403 = vsel %vm362, %v1399, 0
      %v1406 = vsel %vm366, %v1401, 0
      %1408 = vmatprep.subr.mxu0 0.0
      %1409 = vmatpush1.msra.mxu0 %v1406
      %1410 = vmatprep.subr.mxu0 0.0
      %1411 = vmatpush1.msra.mxu0 0.0
      %1412 = vmatprep.subr.mxu0 0.0
      %1413 = vmatpush1.msra.mxu0 0.0
      %1414 = vmatprep.subr.mxu0 0.0
      %1415 = vmatpush1.msra.mxu0 0.0
      %1416 = vmatprep.subr.mxu0 0.0
      %1417 = vmatpush1.msra.mxu0 0.0
      %1418 = vmatprep.subr.mxu0 0.0
      %1419 = vmatpush1.msra.mxu0 0.0
      %1420 = vmatprep.subr.mxu0 0.0
      %1421 = vmatpush1.msra.mxu0 0.0
      %1422 = vmatprep.subr.mxu0 0.0
      %1423 = vmatpush1.msra.mxu0 0.0
      %1424 = vmatprep.subr.mxu0 0.0
      %1425 = vmatpush1.msra.mxu0 0.0
      %1426 = vmatprep.subr.mxu0 0.0
      %1427 = vmatpush1.msra.mxu0 0.0
      %1428 = vmatprep.subr.mxu0 0.0
      %1429 = vmatpush1.msra.mxu0 0.0
      %1430 = vmatprep.subr.mxu0 0.0
      %1431 = vmatpush1.msra.mxu0 0.0
      %1432 = vmatprep.subr.mxu0 0.0
      %1433 = vmatpush1.msra.mxu0 0.0
      %1434 = vmatprep.subr.mxu0 0.0
      %1435 = vmatpush1.msra.mxu0 0.0
      %1436 = vmatprep.subr.mxu0 0.0
      %1437 = vmatpush1.msra.mxu0 0.0
      %1438 = vmatprep.subr.mxu0 0.0
      %1439 = vmatpush1.msra.mxu0 0.0
      %1440 = vmatprep.subr.mxu0 0.0
      %1441 = vmatpush1.msra.mxu0 0.0
      %1442 = vmatprep.subr.mxu0 0.0
      %1443 = vmatpush1.msra.mxu0 0.0
      %1444 = vmatprep.subr.mxu0 0.0
      %1445 = vmatpush1.msra.mxu0 0.0
      %1446 = vmatprep.subr.mxu0 0.0
      %1447 = vmatpush1.msra.mxu0 0.0
      %1448 = vmatprep.subr.mxu0 0.0
      %1449 = vmatpush1.msra.mxu0 0.0
      %1450 = vmatprep.subr.mxu0 0.0
      %1451 = vmatpush1.msra.mxu0 0.0
      %1452 = vmatprep.subr.mxu0 0.0
      %1453 = vmatpush1.msra.mxu0 0.0
      %1454 = vmatprep.subr.mxu0 0.0
      %1455 = vmatpush1.msra.mxu0 0.0
      %1456 = vmatprep.subr.mxu0 0.0
      %1457 = vmatpush1.msra.mxu0 0.0
      %1458 = vmatprep.subr.mxu0 0.0
      %1459 = vmatpush1.msra.mxu0 0.0
      %1460 = vmatprep.subr.mxu0 0.0
      %1461 = vmatpush1.msra.mxu0 0.0
      %1462 = vmatprep.subr.mxu0 0.0
      %1463 = vmatpush1.msra.mxu0 0.0
      %1464 = vmatprep.subr.mxu0 0.0
      %1465 = vmatpush1.msra.mxu0 0.0
      %1466 = vmatprep.subr.mxu0 0.0
      %1467 = vmatpush1.msra.mxu0 0.0
      %1468 = vmatprep.subr.mxu0 0.0
      %1469 = vmatpush1.msra.mxu0 0.0
      %1470 = vmatprep.subr.mxu0 0.0
      %1471 = vmatpush1.msra.mxu0 0.0
      %1472 = vmatprep.mubr.f32.mxu0 0.0
      %1473 = vmatmul.mubr.f32.gmra.mrb[0].mxu0 %v1403
      %v1474 = vpop.f32.mrb[0].mxu0
      %v1475 = vadd.f32 0.0, %v1474
      %v1476 = vpop.f32.mrb[0].mxu0
      %1477 = vdwg.mxu0
      %v1478 = vadd.f32 %v1398, %v1475
      %v1479 = vld [vmem:[%s330 + $0x2] sm:$0xff]
      %s1480 = scalar_lea.vmem %s3, 56
      %v1481 = vld [vmem:[%s1480] sm:$0xf]
      %v1483 = vsel %vm362, %v1479, 0
      %v1486 = vsel %vm366, %v1481, 0
      %1488 = vmatprep.subr.mxu0 0.0
      %1489 = vmatpush1.msra.mxu0 %v1486
      %1490 = vmatprep.subr.mxu0 0.0
      %1491 = vmatpush1.msra.mxu0 0.0
      %1492 = vmatprep.subr.mxu0 0.0
      %1493 = vmatpush1.msra.mxu0 0.0
      %1494 = vmatprep.subr.mxu0 0.0
      %1495 = vmatpush1.msra.mxu0 0.0
      %1496 = vmatprep.subr.mxu0 0.0
      %1497 = vmatpush1.msra.mxu0 0.0
      %1498 = vmatprep.subr.mxu0 0.0
      %1499 = vmatpush1.msra.mxu0 0.0
      %1500 = vmatprep.subr.mxu0 0.0
      %1501 = vmatpush1.msra.mxu0 0.0
      %1502 = vmatprep.subr.mxu0 0.0
      %1503 = vmatpush1.msra.mxu0 0.0
      %1504 = vmatprep.subr.mxu0 0.0
      %1505 = vmatpush1.msra.mxu0 0.0
      %1506 = vmatprep.subr.mxu0 0.0
      %1507 = vmatpush1.msra.mxu0 0.0
      %1508 = vmatprep.subr.mxu0 0.0
      %1509 = vmatpush1.msra.mxu0 0.0
      %1510 = vmatprep.subr.mxu0 0.0
      %1511 = vmatpush1.msra.mxu0 0.0
      %1512 = vmatprep.subr.mxu0 0.0
      %1513 = vmatpush1.msra.mxu0 0.0
      %1514 = vmatprep.subr.mxu0 0.0
      %1515 = vmatpush1.msra.mxu0 0.0
      %1516 = vmatprep.subr.mxu0 0.0
      %1517 = vmatpush1.msra.mxu0 0.0
      %1518 = vmatprep.subr.mxu0 0.0
      %1519 = vmatpush1.msra.mxu0 0.0
      %1520 = vmatprep.subr.mxu0 0.0
      %1521 = vmatpush1.msra.mxu0 0.0
      %1522 = vmatprep.subr.mxu0 0.0
      %1523 = vmatpush1.msra.mxu0 0.0
      %1524 = vmatprep.subr.mxu0 0.0
      %1525 = vmatpush1.msra.mxu0 0.0
      %1526 = vmatprep.subr.mxu0 0.0
      %1527 = vmatpush1.msra.mxu0 0.0
      %1528 = vmatprep.subr.mxu0 0.0
      %1529 = vmatpush1.msra.mxu0 0.0
      %1530 = vmatprep.subr.mxu0 0.0
      %1531 = vmatpush1.msra.mxu0 0.0
      %1532 = vmatprep.subr.mxu0 0.0
      %1533 = vmatpush1.msra.mxu0 0.0
      %1534 = vmatprep.subr.mxu0 0.0
      %1535 = vmatpush1.msra.mxu0 0.0
      %1536 = vmatprep.subr.mxu0 0.0
      %1537 = vmatpush1.msra.mxu0 0.0
      %1538 = vmatprep.subr.mxu0 0.0
      %1539 = vmatpush1.msra.mxu0 0.0
      %1540 = vmatprep.subr.mxu0 0.0
      %1541 = vmatpush1.msra.mxu0 0.0
      %1542 = vmatprep.subr.mxu0 0.0
      %1543 = vmatpush1.msra.mxu0 0.0
      %1544 = vmatprep.subr.mxu0 0.0
      %1545 = vmatpush1.msra.mxu0 0.0
      %1546 = vmatprep.subr.mxu0 0.0
      %1547 = vmatpush1.msra.mxu0 0.0
      %1548 = vmatprep.subr.mxu0 0.0
      %1549 = vmatpush1.msra.mxu0 0.0
      %1550 = vmatprep.subr.mxu0 0.0
      %1551 = vmatpush1.msra.mxu0 0.0
      %1552 = vmatprep.mubr.f32.mxu0 0.0
      %1553 = vmatmul.mubr.f32.gmra.mrb[0].mxu0 %v1483
      %v1554 = vpop.f32.mrb[0].mxu0
      %v1555 = vadd.f32 0.0, %v1554
      %v1556 = vpop.f32.mrb[0].mxu0
      %1557 = vdwg.mxu0
      %v1558 = vadd.f32 %v1478, %v1555
      %s1559 = scalar_lea.vmem %s330, 32
      %v1560 = vld [vmem:[%s1559] sm:$0xff]
      %s1561 = scalar_lea.vmem %s3, 60
      %v1562 = vld [vmem:[%s1561] sm:$0xf]
      %v1564 = vsel %vm362, %v1560, 0
      %v1567 = vsel %vm366, %v1562, 0
      %1569 = vmatprep.subr.mxu0 0.0
      %1570 = vmatpush1.msra.mxu0 %v1567
      %1571 = vmatprep.subr.mxu0 0.0
      %1572 = vmatpush1.msra.mxu0 0.0
      %1573 = vmatprep.subr.mxu0 0.0
      %1574 = vmatpush1.msra.mxu0 0.0
      %1575 = vmatprep.subr.mxu0 0.0
      %1576 = vmatpush1.msra.mxu0 0.0
      %1577 = vmatprep.subr.mxu0 0.0
      %1578 = vmatpush1.msra.mxu0 0.0
      %1579 = vmatprep.subr.mxu0 0.0
      %1580 = vmatpush1.msra.mxu0 0.0
      %1581 = vmatprep.subr.mxu0 0.0
      %1582 = vmatpush1.msra.mxu0 0.0
      %1583 = vmatprep.subr.mxu0 0.0
      %1584 = vmatpush1.msra.mxu0 0.0
      %1585 = vmatprep.subr.mxu0 0.0
      %1586 = vmatpush1.msra.mxu0 0.0
      %1587 = vmatprep.subr.mxu0 0.0
      %1588 = vmatpush1.msra.mxu0 0.0
      %1589 = vmatprep.subr.mxu0 0.0
      %1590 = vmatpush1.msra.mxu0 0.0
      %1591 = vmatprep.subr.mxu0 0.0
      %1592 = vmatpush1.msra.mxu0 0.0
      %1593 = vmatprep.subr.mxu0 0.0
      %1594 = vmatpush1.msra.mxu0 0.0
      %1595 = vmatprep.subr.mxu0 0.0
      %1596 = vmatpush1.msra.mxu0 0.0
      %1597 = vmatprep.subr.mxu0 0.0
      %1598 = vmatpush1.msra.mxu0 0.0
      %1599 = vmatprep.subr.mxu0 0.0
      %1600 = vmatpush1.msra.mxu0 0.0
      %1601 = vmatprep.subr.mxu0 0.0
      %1602 = vmatpush1.msra.mxu0 0.0
      %1603 = vmatprep.subr.mxu0 0.0
      %1604 = vmatpush1.msra.mxu0 0.0
      %1605 = vmatprep.subr.mxu0 0.0
      %1606 = vmatpush1.msra.mxu0 0.0
      %1607 = vmatprep.subr.mxu0 0.0
      %1608 = vmatpush1.msra.mxu0 0.0
      %1609 = vmatprep.subr.mxu0 0.0
      %1610 = vmatpush1.msra.mxu0 0.0
      %1611 = vmatprep.subr.mxu0 0.0
      %1612 = vmatpush1.msra.mxu0 0.0
      %1613 = vmatprep.subr.mxu0 0.0
      %1614 = vmatpush1.msra.mxu0 0.0
      %1615 = vmatprep.subr.mxu0 0.0
      %1616 = vmatpush1.msra.mxu0 0.0
      %1617 = vmatprep.subr.mxu0 0.0
      %1618 = vmatpush1.msra.mxu0 0.0
      %1619 = vmatprep.subr.mxu0 0.0
      %1620 = vmatpush1.msra.mxu0 0.0
      %1621 = vmatprep.subr.mxu0 0.0
      %1622 = vmatpush1.msra.mxu0 0.0
      %1623 = vmatprep.subr.mxu0 0.0
      %1624 = vmatpush1.msra.mxu0 0.0
      %1625 = vmatprep.subr.mxu0 0.0
      %1626 = vmatpush1.msra.mxu0 0.0
      %1627 = vmatprep.subr.mxu0 0.0
      %1628 = vmatpush1.msra.mxu0 0.0
      %1629 = vmatprep.subr.mxu0 0.0
      %1630 = vmatpush1.msra.mxu0 0.0
      %1631 = vmatprep.subr.mxu0 0.0
      %1632 = vmatpush1.msra.mxu0 0.0
      %1633 = vmatprep.mubr.f32.mxu0 0.0
      %1634 = vmatmul.mubr.f32.gmra.mrb[0].mxu0 %v1564
      %v1635 = vpop.f32.mrb[0].mxu0
      %v1636 = vadd.f32 0.0, %v1635
      %v1637 = vpop.f32.mrb[0].mxu0
      %1638 = vdwg.mxu0
      %v1639 = vadd.f32 %v1558, %v1636
      %s1640 = scalar_lea.vmem %s330, 48
      %v1641 = vld [vmem:[%s1640] sm:$0xff]
      %s1642 = scalar_lea.vmem %s3, 64
      %v1643 = vld [vmem:[%s1642] sm:$0xf]
      %v1645 = vsel %vm362, %v1641, 0
      %v1648 = vsel %vm366, %v1643, 0
      %1650 = vmatprep.subr.mxu0 0.0
      %1651 = vmatpush1.msra.mxu0 %v1648
      %1652 = vmatprep.subr.mxu0 0.0
      %1653 = vmatpush1.msra.mxu0 0.0
      %1654 = vmatprep.subr.mxu0 0.0
      %1655 = vmatpush1.msra.mxu0 0.0
      %1656 = vmatprep.subr.mxu0 0.0
      %1657 = vmatpush1.msra.mxu0 0.0
      %1658 = vmatprep.subr.mxu0 0.0
      %1659 = vmatpush1.msra.mxu0 0.0
      %1660 = vmatprep.subr.mxu0 0.0
      %1661 = vmatpush1.msra.mxu0 0.0
      %1662 = vmatprep.subr.mxu0 0.0
      %1663 = vmatpush1.msra.mxu0 0.0
      %1664 = vmatprep.subr.mxu0 0.0
      %1665 = vmatpush1.msra.mxu0 0.0
      %1666 = vmatprep.subr.mxu0 0.0
      %1667 = vmatpush1.msra.mxu0 0.0
      %1668 = vmatprep.subr.mxu0 0.0
      %1669 = vmatpush1.msra.mxu0 0.0
      %1670 = vmatprep.subr.mxu0 0.0
      %1671 = vmatpush1.msra.mxu0 0.0
      %1672 = vmatprep.subr.mxu0 0.0
      %1673 = vmatpush1.msra.mxu0 0.0
      %1674 = vmatprep.subr.mxu0 0.0
      %1675 = vmatpush1.msra.mxu0 0.0
      %1676 = vmatprep.subr.mxu0 0.0
      %1677 = vmatpush1.msra.mxu0 0.0
      %1678 = vmatprep.subr.mxu0 0.0
      %1679 = vmatpush1.msra.mxu0 0.0
      %1680 = vmatprep.subr.mxu0 0.0
      %1681 = vmatpush1.msra.mxu0 0.0
      %1682 = vmatprep.subr.mxu0 0.0
      %1683 = vmatpush1.msra.mxu0 0.0
      %1684 = vmatprep.subr.mxu0 0.0
      %1685 = vmatpush1.msra.mxu0 0.0
      %1686 = vmatprep.subr.mxu0 0.0
      %1687 = vmatpush1.msra.mxu0 0.0
      %1688 = vmatprep.subr.mxu0 0.0
      %1689 = vmatpush1.msra.mxu0 0.0
      %1690 = vmatprep.subr.mxu0 0.0
      %1691 = vmatpush1.msra.mxu0 0.0
      %1692 = vmatprep.subr.mxu0 0.0
      %1693 = vmatpush1.msra.mxu0 0.0
      %1694 = vmatprep.subr.mxu0 0.0
      %1695 = vmatpush1.msra.mxu0 0.0
      %1696 = vmatprep.subr.mxu0 0.0
      %1697 = vmatpush1.msra.mxu0 0.0
      %1698 = vmatprep.subr.mxu0 0.0
      %1699 = vmatpush1.msra.mxu0 0.0
      %1700 = vmatprep.subr.mxu0 0.0
      %1701 = vmatpush1.msra.mxu0 0.0
      %1702 = vmatprep.subr.mxu0 0.0
      %1703 = vmatpush1.msra.mxu0 0.0
      %1704 = vmatprep.subr.mxu0 0.0
      %1705 = vmatpush1.msra.mxu0 0.0
      %1706 = vmatprep.subr.mxu0 0.0
      %1707 = vmatpush1.msra.mxu0 0.0
      %1708 = vmatprep.subr.mxu0 0.0
      %1709 = vmatpush1.msra.mxu0 0.0
      %1710 = vmatprep.subr.mxu0 0.0
      %1711 = vmatpush1.msra.mxu0 0.0
      %1712 = vmatprep.subr.mxu0 0.0
      %1713 = vmatpush1.msra.mxu0 0.0
      %1714 = vmatprep.mubr.f32.mxu0 0.0
      %1715 = vmatmul.mubr.f32.gmra.mrb[0].mxu0 %v1645
      %v1716 = vpop.f32.mrb[0].mxu0
      %v1717 = vadd.f32 0.0, %v1716
      %v1718 = vpop.f32.mrb[0].mxu0
      %1719 = vdwg.mxu0
      %v1720 = vadd.f32 %v1639, %v1717
      %v1721 = vld [vmem:[%s1559 + $0x1] sm:$0xff]
      %s1722 = scalar_lea.vmem %s3, 68
      %v1723 = vld [vmem:[%s1722] sm:$0xf]
      %v1725 = vsel %vm362, %v1721, 0
      %v1728 = vsel %vm366, %v1723, 0
      %1730 = vmatprep.subr.mxu0 0.0
      %1731 = vmatpush1.msra.mxu0 %v1728
      %1732 = vmatprep.subr.mxu0 0.0
      %1733 = vmatpush1.msra.mxu0 0.0
      %1734 = vmatprep.subr.mxu0 0.0
      %1735 = vmatpush1.msra.mxu0 0.0
      %1736 = vmatprep.subr.mxu0 0.0
      %1737 = vmatpush1.msra.mxu0 0.0
      %1738 = vmatprep.subr.mxu0 0.0
      %1739 = vmatpush1.msra.mxu0 0.0
      %1740 = vmatprep.subr.mxu0 0.0
      %1741 = vmatpush1.msra.mxu0 0.0
      %1742 = vmatprep.subr.mxu0 0.0
      %1743 = vmatpush1.msra.mxu0 0.0
      %1744 = vmatprep.subr.mxu0 0.0
      %1745 = vmatpush1.msra.mxu0 0.0
      %1746 = vmatprep.subr.mxu0 0.0
      %1747 = vmatpush1.msra.mxu0 0.0
      %1748 = vmatprep.subr.mxu0 0.0
      %1749 = vmatpush1.msra.mxu0 0.0
      %1750 = vmatprep.subr.mxu0 0.0
      %1751 = vmatpush1.msra.mxu0 0.0
      %1752 = vmatprep.subr.mxu0 0.0
      %1753 = vmatpush1.msra.mxu0 0.0
      %1754 = vmatprep.subr.mxu0 0.0
      %1755 = vmatpush1.msra.mxu0 0.0
      %1756 = vmatprep.subr.mxu0 0.0
      %1757 = vmatpush1.msra.mxu0 0.0
      %1758 = vmatprep.subr.mxu0 0.0
      %1759 = vmatpush1.msra.mxu0 0.0
      %1760 = vmatprep.subr.mxu0 0.0
      %1761 = vmatpush1.msra.mxu0 0.0
      %1762 = vmatprep.subr.mxu0 0.0
      %1763 = vmatpush1.msra.mxu0 0.0
      %1764 = vmatprep.subr.mxu0 0.0
      %1765 = vmatpush1.msra.mxu0 0.0
      %1766 = vmatprep.subr.mxu0 0.0
      %1767 = vmatpush1.msra.mxu0 0.0
      %1768 = vmatprep.subr.mxu0 0.0
      %1769 = vmatpush1.msra.mxu0 0.0
      %1770 = vmatprep.subr.mxu0 0.0
      %1771 = vmatpush1.msra.mxu0 0.0
      %1772 = vmatprep.subr.mxu0 0.0
      %1773 = vmatpush1.msra.mxu0 0.0
      %1774 = vmatprep.subr.mxu0 0.0
      %1775 = vmatpush1.msra.mxu0 0.0
      %1776 = vmatprep.subr.mxu0 0.0
      %1777 = vmatpush1.msra.mxu0 0.0
      %1778 = vmatprep.subr.mxu0 0.0
      %1779 = vmatpush1.msra.mxu0 0.0
      %1780 = vmatprep.subr.mxu0 0.0
      %1781 = vmatpush1.msra.mxu0 0.0
      %1782 = vmatprep.subr.mxu0 0.0
      %1783 = vmatpush1.msra.mxu0 0.0
      %1784 = vmatprep.subr.mxu0 0.0
      %1785 = vmatpush1.msra.mxu0 0.0
      %1786 = vmatprep.subr.mxu0 0.0
      %1787 = vmatpush1.msra.mxu0 0.0
      %1788 = vmatprep.subr.mxu0 0.0
      %1789 = vmatpush1.msra.mxu0 0.0
      %1790 = vmatprep.subr.mxu0 0.0
      %1791 = vmatpush1.msra.mxu0 0.0
      %1792 = vmatprep.subr.mxu0 0.0
      %1793 = vmatpush1.msra.mxu0 0.0
      %1794 = vmatprep.mubr.f32.mxu0 0.0
      %1795 = vmatmul.mubr.f32.gmra.mrb[0].mxu0 %v1725
      %v1796 = vpop.f32.mrb[0].mxu0
      %v1797 = vadd.f32 0.0, %v1796
      %v1798 = vpop.f32.mrb[0].mxu0
      %1799 = vdwg.mxu0
      %v1800 = vadd.f32 %v1720, %v1797
      %v1801 = vld [vmem:[%s1640 + $0x1] sm:$0xff]
      %s1802 = scalar_lea.vmem %s3, 72
      %v1803 = vld [vmem:[%s1802] sm:$0xf]
      %v1805 = vsel %vm362, %v1801, 0
      %v1808 = vsel %vm366, %v1803, 0
      %1810 = vmatprep.subr.mxu0 0.0
      %1811 = vmatpush1.msra.mxu0 %v1808
      %1812 = vmatprep.subr.mxu0 0.0
      %1813 = vmatpush1.msra.mxu0 0.0
      %1814 = vmatprep.subr.mxu0 0.0
      %1815 = vmatpush1.msra.mxu0 0.0
      %1816 = vmatprep.subr.mxu0 0.0
      %1817 = vmatpush1.msra.mxu0 0.0
      %1818 = vmatprep.subr.mxu0 0.0
      %1819 = vmatpush1.msra.mxu0 0.0
      %1820 = vmatprep.subr.mxu0 0.0
      %1821 = vmatpush1.msra.mxu0 0.0
      %1822 = vmatprep.subr.mxu0 0.0
      %1823 = vmatpush1.msra.mxu0 0.0
      %1824 = vmatprep.subr.mxu0 0.0
      %1825 = vmatpush1.msra.mxu0 0.0
      %1826 = vmatprep.subr.mxu0 0.0
      %1827 = vmatpush1.msra.mxu0 0.0
      %1828 = vmatprep.subr.mxu0 0.0
      %1829 = vmatpush1.msra.mxu0 0.0
      %1830 = vmatprep.subr.mxu0 0.0
      %1831 = vmatpush1.msra.mxu0 0.0
      %1832 = vmatprep.subr.mxu0 0.0
      %1833 = vmatpush1.msra.mxu0 0.0
      %1834 = vmatprep.subr.mxu0 0.0
      %1835 = vmatpush1.msra.mxu0 0.0
      %1836 = vmatprep.subr.mxu0 0.0
      %1837 = vmatpush1.msra.mxu0 0.0
      %1838 = vmatprep.subr.mxu0 0.0
      %1839 = vmatpush1.msra.mxu0 0.0
      %1840 = vmatprep.subr.mxu0 0.0
      %1841 = vmatpush1.msra.mxu0 0.0
      %1842 = vmatprep.subr.mxu0 0.0
      %1843 = vmatpush1.msra.mxu0 0.0
      %1844 = vmatprep.subr.mxu0 0.0
      %1845 = vmatpush1.msra.mxu0 0.0
      %1846 = vmatprep.subr.mxu0 0.0
      %1847 = vmatpush1.msra.mxu0 0.0
      %1848 = vmatprep.subr.mxu0 0.0
      %1849 = vmatpush1.msra.mxu0 0.0
      %1850 = vmatprep.subr.mxu0 0.0
      %1851 = vmatpush1.msra.mxu0 0.0
      %1852 = vmatprep.subr.mxu0 0.0
      %1853 = vmatpush1.msra.mxu0 0.0
      %1854 = vmatprep.subr.mxu0 0.0
      %1855 = vmatpush1.msra.mxu0 0.0
      %1856 = vmatprep.subr.mxu0 0.0
      %1857 = vmatpush1.msra.mxu0 0.0
      %1858 = vmatprep.subr.mxu0 0.0
      %1859 = vmatpush1.msra.mxu0 0.0
      %1860 = vmatprep.subr.mxu0 0.0
      %1861 = vmatpush1.msra.mxu0 0.0
      %1862 = vmatprep.subr.mxu0 0.0
      %1863 = vmatpush1.msra.mxu0 0.0
      %1864 = vmatprep.subr.mxu0 0.0
      %1865 = vmatpush1.msra.mxu0 0.0
      %1866 = vmatprep.subr.mxu0 0.0
      %1867 = vmatpush1.msra.mxu0 0.0
      %1868 = vmatprep.subr.mxu0 0.0
      %1869 = vmatpush1.msra.mxu0 0.0
      %1870 = vmatprep.subr.mxu0 0.0
      %1871 = vmatpush1.msra.mxu0 0.0
      %1872 = vmatprep.subr.mxu0 0.0
      %1873 = vmatpush1.msra.mxu0 0.0
      %1874 = vmatprep.mubr.f32.mxu0 0.0
      %1875 = vmatmul.mubr.f32.gmra.mrb[0].mxu0 %v1805
      %v1876 = vpop.f32.mrb[0].mxu0
      %v1877 = vadd.f32 0.0, %v1876
      %v1878 = vpop.f32.mrb[0].mxu0
      %1879 = vdwg.mxu0
      %v1880 = vadd.f32 %v1800, %v1877
      %v1881 = vld [vmem:[%s1559 + $0x2] sm:$0xff]
      %s1882 = scalar_lea.vmem %s3, 76
      %v1883 = vld [vmem:[%s1882] sm:$0xf]
      %v1885 = vsel %vm362, %v1881, 0
      %v1888 = vsel %vm366, %v1883, 0
      %1890 = vmatprep.subr.mxu0 0.0
      %1891 = vmatpush1.msra.mxu0 %v1888
      %1892 = vmatprep.subr.mxu0 0.0
      %1893 = vmatpush1.msra.mxu0 0.0
      %1894 = vmatprep.subr.mxu0 0.0
      %1895 = vmatpush1.msra.mxu0 0.0
      %1896 = vmatprep.subr.mxu0 0.0
      %1897 = vmatpush1.msra.mxu0 0.0
      %1898 = vmatprep.subr.mxu0 0.0
      %1899 = vmatpush1.msra.mxu0 0.0
      %1900 = vmatprep.subr.mxu0 0.0
      %1901 = vmatpush1.msra.mxu0 0.0
      %1902 = vmatprep.subr.mxu0 0.0
      %1903 = vmatpush1.msra.mxu0 0.0
      %1904 = vmatprep.subr.mxu0 0.0
      %1905 = vmatpush1.msra.mxu0 0.0
      %1906 = vmatprep.subr.mxu0 0.0
      %1907 = vmatpush1.msra.mxu0 0.0
      %1908 = vmatprep.subr.mxu0 0.0
      %1909 = vmatpush1.msra.mxu0 0.0
      %1910 = vmatprep.subr.mxu0 0.0
      %1911 = vmatpush1.msra.mxu0 0.0
      %1912 = vmatprep.subr.mxu0 0.0
      %1913 = vmatpush1.msra.mxu0 0.0
      %1914 = vmatprep.subr.mxu0 0.0
      %1915 = vmatpush1.msra.mxu0 0.0
      %1916 = vmatprep.subr.mxu0 0.0
      %1917 = vmatpush1.msra.mxu0 0.0
      %1918 = vmatprep.subr.mxu0 0.0
      %1919 = vmatpush1.msra.mxu0 0.0
      %1920 = vmatprep.subr.mxu0 0.0
      %1921 = vmatpush1.msra.mxu0 0.0
      %1922 = vmatprep.subr.mxu0 0.0
      %1923 = vmatpush1.msra.mxu0 0.0
      %1924 = vmatprep.subr.mxu0 0.0
      %1925 = vmatpush1.msra.mxu0 0.0
      %1926 = vmatprep.subr.mxu0 0.0
      %1927 = vmatpush1.msra.mxu0 0.0
      %1928 = vmatprep.subr.mxu0 0.0
      %1929 = vmatpush1.msra.mxu0 0.0
      %1930 = vmatprep.subr.mxu0 0.0
      %1931 = vmatpush1.msra.mxu0 0.0
      %1932 = vmatprep.subr.mxu0 0.0
      %1933 = vmatpush1.msra.mxu0 0.0
      %1934 = vmatprep.subr.mxu0 0.0
      %1935 = vmatpush1.msra.mxu0 0.0
      %1936 = vmatprep.subr.mxu0 0.0
      %1937 = vmatpush1.msra.mxu0 0.0
      %1938 = vmatprep.subr.mxu0 0.0
      %1939 = vmatpush1.msra.mxu0 0.0
      %1940 = vmatprep.subr.mxu0 0.0
      %1941 = vmatpush1.msra.mxu0 0.0
      %1942 = vmatprep.subr.mxu0 0.0
      %1943 = vmatpush1.msra.mxu0 0.0
      %1944 = vmatprep.subr.mxu0 0.0
      %1945 = vmatpush1.msra.mxu0 0.0
      %1946 = vmatprep.subr.mxu0 0.0
      %1947 = vmatpush1.msra.mxu0 0.0
      %1948 = vmatprep.subr.mxu0 0.0
      %1949 = vmatpush1.msra.mxu0 0.0
      %1950 = vmatprep.subr.mxu0 0.0
      %1951 = vmatpush1.msra.mxu0 0.0
      %1952 = vmatprep.subr.mxu0 0.0
      %1953 = vmatpush1.msra.mxu0 0.0
      %1954 = vmatprep.mubr.f32.mxu0 0.0
      %1955 = vmatmul.mubr.f32.gmra.mrb[0].mxu0 %v1885
      %v1956 = vpop.f32.mrb[0].mxu0
      %v1957 = vadd.f32 0.0, %v1956
      %v1958 = vpop.f32.mrb[0].mxu0
      %1959 = vdwg.mxu0
      %v1960 = vadd.f32 %v1880, %v1957
      %v1961 = vld [vmem:[%s343] sm:$0xff]
      %s1962 = scalar_lea.vmem %s3, 80
      %v1963 = vld [vmem:[%s1962] sm:$0xf]
      %v1965 = vsel %vm362, %v1961, 0
      %v1968 = vsel %vm366, %v1963, 0
      %1970 = vmatprep.subr.mxu0 0.0
      %1971 = vmatpush1.msra.mxu0 %v1968
      %1972 = vmatprep.subr.mxu0 0.0
      %1973 = vmatpush1.msra.mxu0 0.0
      %1974 = vmatprep.subr.mxu0 0.0
      %1975 = vmatpush1.msra.mxu0 0.0
      %1976 = vmatprep.subr.mxu0 0.0
      %1977 = vmatpush1.msra.mxu0 0.0
      %1978 = vmatprep.subr.mxu0 0.0
      %1979 = vmatpush1.msra.mxu0 0.0
      %1980 = vmatprep.subr.mxu0 0.0
      %1981 = vmatpush1.msra.mxu0 0.0
      %1982 = vmatprep.subr.mxu0 0.0
      %1983 = vmatpush1.msra.mxu0 0.0
      %1984 = vmatprep.subr.mxu0 0.0
      %1985 = vmatpush1.msra.mxu0 0.0
      %1986 = vmatprep.subr.mxu0 0.0
      %1987 = vmatpush1.msra.mxu0 0.0
      %1988 = vmatprep.subr.mxu0 0.0
      %1989 = vmatpush1.msra.mxu0 0.0
      %1990 = vmatprep.subr.mxu0 0.0
      %1991 = vmatpush1.msra.mxu0 0.0
      %1992 = vmatprep.subr.mxu0 0.0
      %1993 = vmatpush1.msra.mxu0 0.0
      %1994 = vmatprep.subr.mxu0 0.0
      %1995 = vmatpush1.msra.mxu0 0.0
      %1996 = vmatprep.subr.mxu0 0.0
      %1997 = vmatpush1.msra.mxu0 0.0
      %1998 = vmatprep.subr.mxu0 0.0
      %1999 = vmatpush1.msra.mxu0 0.0
      %2000 = vmatprep.subr.mxu0 0.0
      %2001 = vmatpush1.msra.mxu0 0.0
      %2002 = vmatprep.subr.mxu0 0.0
      %2003 = vmatpush1.msra.mxu0 0.0
      %2004 = vmatprep.subr.mxu0 0.0
      %2005 = vmatpush1.msra.mxu0 0.0
      %2006 = vmatprep.subr.mxu0 0.0
      %2007 = vmatpush1.msra.mxu0 0.0
      %2008 = vmatprep.subr.mxu0 0.0
      %2009 = vmatpush1.msra.mxu0 0.0
      %2010 = vmatprep.subr.mxu0 0.0
      %2011 = vmatpush1.msra.mxu0 0.0
      %2012 = vmatprep.subr.mxu0 0.0
      %2013 = vmatpush1.msra.mxu0 0.0
      %2014 = vmatprep.subr.mxu0 0.0
      %2015 = vmatpush1.msra.mxu0 0.0
      %2016 = vmatprep.subr.mxu0 0.0
      %2017 = vmatpush1.msra.mxu0 0.0
      %2018 = vmatprep.subr.mxu0 0.0
      %2019 = vmatpush1.msra.mxu0 0.0
      %2020 = vmatprep.subr.mxu0 0.0
      %2021 = vmatpush1.msra.mxu0 0.0
      %2022 = vmatprep.subr.mxu0 0.0
      %2023 = vmatpush1.msra.mxu0 0.0
      %2024 = vmatprep.subr.mxu0 0.0
      %2025 = vmatpush1.msra.mxu0 0.0
      %2026 = vmatprep.subr.mxu0 0.0
      %2027 = vmatpush1.msra.mxu0 0.0
      %2028 = vmatprep.subr.mxu0 0.0
      %2029 = vmatpush1.msra.mxu0 0.0
      %2030 = vmatprep.subr.mxu0 0.0
      %2031 = vmatpush1.msra.mxu0 0.0
      %2032 = vmatprep.subr.mxu0 0.0
      %2033 = vmatpush1.msra.mxu0 0.0
      %2034 = vmatprep.mubr.f32.mxu0 0.0
      %2035 = vmatmul.mubr.f32.gmra.mrb[0].mxu0 %v1965
      %v2036 = vpop.f32.mrb[0].mxu0
      %v2037 = vadd.f32 0.0, %v2036
      %v2038 = vpop.f32.mrb[0].mxu0
      %2039 = vdwg.mxu0
      %v2040 = vadd.f32 %v1960, %v2037
      %s2041 = scalar_lea.vmem %s343, 16
      %v2042 = vld [vmem:[%s2041] sm:$0xff]
      %s2043 = scalar_lea.vmem %s3, 84
      %v2044 = vld [vmem:[%s2043] sm:$0xf]
      %v2046 = vsel %vm362, %v2042, 0
      %v2049 = vsel %vm366, %v2044, 0
      %2051 = vmatprep.subr.mxu0 0.0
      %2052 = vmatpush1.msra.mxu0 %v2049
      %2053 = vmatprep.subr.mxu0 0.0
      %2054 = vmatpush1.msra.mxu0 0.0
      %2055 = vmatprep.subr.mxu0 0.0
      %2056 = vmatpush1.msra.mxu0 0.0
      %2057 = vmatprep.subr.mxu0 0.0
      %2058 = vmatpush1.msra.mxu0 0.0
      %2059 = vmatprep.subr.mxu0 0.0
      %2060 = vmatpush1.msra.mxu0 0.0
      %2061 = vmatprep.subr.mxu0 0.0
      %2062 = vmatpush1.msra.mxu0 0.0
      %2063 = vmatprep.subr.mxu0 0.0
      %2064 = vmatpush1.msra.mxu0 0.0
      %2065 = vmatprep.subr.mxu0 0.0
      %2066 = vmatpush1.msra.mxu0 0.0
      %2067 = vmatprep.subr.mxu0 0.0
      %2068 = vmatpush1.msra.mxu0 0.0
      %2069 = vmatprep.subr.mxu0 0.0
      %2070 = vmatpush1.msra.mxu0 0.0
      %2071 = vmatprep.subr.mxu0 0.0
      %2072 = vmatpush1.msra.mxu0 0.0
      %2073 = vmatprep.subr.mxu0 0.0
      %2074 = vmatpush1.msra.mxu0 0.0
      %2075 = vmatprep.subr.mxu0 0.0
      %2076 = vmatpush1.msra.mxu0 0.0
      %2077 = vmatprep.subr.mxu0 0.0
      %2078 = vmatpush1.msra.mxu0 0.0
      %2079 = vmatprep.subr.mxu0 0.0
      %2080 = vmatpush1.msra.mxu0 0.0
      %2081 = vmatprep.subr.mxu0 0.0
      %2082 = vmatpush1.msra.mxu0 0.0
      %2083 = vmatprep.subr.mxu0 0.0
      %2084 = vmatpush1.msra.mxu0 0.0
      %2085 = vmatprep.subr.mxu0 0.0
      %2086 = vmatpush1.msra.mxu0 0.0
      %2087 = vmatprep.subr.mxu0 0.0
      %2088 = vmatpush1.msra.mxu0 0.0
      %2089 = vmatprep.subr.mxu0 0.0
      %2090 = vmatpush1.msra.mxu0 0.0
      %2091 = vmatprep.subr.mxu0 0.0
      %2092 = vmatpush1.msra.mxu0 0.0
      %2093 = vmatprep.subr.mxu0 0.0
      %2094 = vmatpush1.msra.mxu0 0.0
      %2095 = vmatprep.subr.mxu0 0.0
      %2096 = vmatpush1.msra.mxu0 0.0
      %2097 = vmatprep.subr.mxu0 0.0
      %2098 = vmatpush1.msra.mxu0 0.0
      %2099 = vmatprep.subr.mxu0 0.0
      %2100 = vmatpush1.msra.mxu0 0.0
      %2101 = vmatprep.subr.mxu0 0.0
      %2102 = vmatpush1.msra.mxu0 0.0
      %2103 = vmatprep.subr.mxu0 0.0
      %2104 = vmatpush1.msra.mxu0 0.0
      %2105 = vmatprep.subr.mxu0 0.0
      %2106 = vmatpush1.msra.mxu0 0.0
      %2107 = vmatprep.subr.mxu0 0.0
      %2108 = vmatpush1.msra.mxu0 0.0
      %2109 = vmatprep.subr.mxu0 0.0
      %2110 = vmatpush1.msra.mxu0 0.0
      %2111 = vmatprep.subr.mxu0 0.0
      %2112 = vmatpush1.msra.mxu0 0.0
      %2113 = vmatprep.subr.mxu0 0.0
      %2114 = vmatpush1.msra.mxu0 0.0
      %2115 = vmatprep.mubr.f32.mxu0 0.0
      %2116 = vmatmul.mubr.f32.gmra.mrb[0].mxu0 %v2046
      %v2117 = vpop.f32.mrb[0].mxu0
      %v2118 = vadd.f32 0.0, %v2117
      %v2119 = vpop.f32.mrb[0].mxu0
      %2120 = vdwg.mxu0
      %v2121 = vadd.f32 %v2040, %v2118
      %v2122 = vld [vmem:[%s343 + $0x1] sm:$0xff]
      %s2123 = scalar_lea.vmem %s3, 88
      %v2124 = vld [vmem:[%s2123] sm:$0xf]
      %v2126 = vsel %vm362, %v2122, 0
      %v2129 = vsel %vm366, %v2124, 0
      %2131 = vmatprep.subr.mxu0 0.0
      %2132 = vmatpush1.msra.mxu0 %v2129
      %2133 = vmatprep.subr.mxu0 0.0
      %2134 = vmatpush1.msra.mxu0 0.0
      %2135 = vmatprep.subr.mxu0 0.0
      %2136 = vmatpush1.msra.mxu0 0.0
      %2137 = vmatprep.subr.mxu0 0.0
      %2138 = vmatpush1.msra.mxu0 0.0
      %2139 = vmatprep.subr.mxu0 0.0
      %2140 = vmatpush1.msra.mxu0 0.0
      %2141 = vmatprep.subr.mxu0 0.0
      %2142 = vmatpush1.msra.mxu0 0.0
      %2143 = vmatprep.subr.mxu0 0.0
      %2144 = vmatpush1.msra.mxu0 0.0
      %2145 = vmatprep.subr.mxu0 0.0
      %2146 = vmatpush1.msra.mxu0 0.0
      %2147 = vmatprep.subr.mxu0 0.0
      %2148 = vmatpush1.msra.mxu0 0.0
      %2149 = vmatprep.subr.mxu0 0.0
      %2150 = vmatpush1.msra.mxu0 0.0
      %2151 = vmatprep.subr.mxu0 0.0
      %2152 = vmatpush1.msra.mxu0 0.0
      %2153 = vmatprep.subr.mxu0 0.0
      %2154 = vmatpush1.msra.mxu0 0.0
      %2155 = vmatprep.subr.mxu0 0.0
      %2156 = vmatpush1.msra.mxu0 0.0
      %2157 = vmatprep.subr.mxu0 0.0
      %2158 = vmatpush1.msra.mxu0 0.0
      %2159 = vmatprep.subr.mxu0 0.0
      %2160 = vmatpush1.msra.mxu0 0.0
      %2161 = vmatprep.subr.mxu0 0.0
      %2162 = vmatpush1.msra.mxu0 0.0
      %2163 = vmatprep.subr.mxu0 0.0
      %2164 = vmatpush1.msra.mxu0 0.0
      %2165 = vmatprep.subr.mxu0 0.0
      %2166 = vmatpush1.msra.mxu0 0.0
      %2167 = vmatprep.subr.mxu0 0.0
      %2168 = vmatpush1.msra.mxu0 0.0
      %2169 = vmatprep.subr.mxu0 0.0
      %2170 = vmatpush1.msra.mxu0 0.0
      %2171 = vmatprep.subr.mxu0 0.0
      %2172 = vmatpush1.msra.mxu0 0.0
      %2173 = vmatprep.subr.mxu0 0.0
      %2174 = vmatpush1.msra.mxu0 0.0
      %2175 = vmatprep.subr.mxu0 0.0
      %2176 = vmatpush1.msra.mxu0 0.0
      %2177 = vmatprep.subr.mxu0 0.0
      %2178 = vmatpush1.msra.mxu0 0.0
      %2179 = vmatprep.subr.mxu0 0.0
      %2180 = vmatpush1.msra.mxu0 0.0
      %2181 = vmatprep.subr.mxu0 0.0
      %2182 = vmatpush1.msra.mxu0 0.0
      %2183 = vmatprep.subr.mxu0 0.0
      %2184 = vmatpush1.msra.mxu0 0.0
      %2185 = vmatprep.subr.mxu0 0.0
      %2186 = vmatpush1.msra.mxu0 0.0
      %2187 = vmatprep.subr.mxu0 0.0
      %2188 = vmatpush1.msra.mxu0 0.0
      %2189 = vmatprep.subr.mxu0 0.0
      %2190 = vmatpush1.msra.mxu0 0.0
      %2191 = vmatprep.subr.mxu0 0.0
      %2192 = vmatpush1.msra.mxu0 0.0
      %2193 = vmatprep.subr.mxu0 0.0
      %2194 = vmatpush1.msra.mxu0 0.0
      %2195 = vmatprep.mubr.f32.mxu0 0.0
      %2196 = vmatmul.mubr.f32.gmra.mrb[0].mxu0 %v2126
      %v2197 = vpop.f32.mrb[0].mxu0
      %v2198 = vadd.f32 0.0, %v2197
      %v2199 = vpop.f32.mrb[0].mxu0
      %2200 = vdwg.mxu0
      %v2201 = vadd.f32 %v2121, %v2198
      %v2202 = vld [vmem:[%s2041 + $0x1] sm:$0xff]
      %s2203 = scalar_lea.vmem %s3, 92
      %v2204 = vld [vmem:[%s2203] sm:$0xf]
      %v2206 = vsel %vm362, %v2202, 0
      %v2209 = vsel %vm366, %v2204, 0
      %2211 = vmatprep.subr.mxu0 0.0
      %2212 = vmatpush1.msra.mxu0 %v2209
      %2213 = vmatprep.subr.mxu0 0.0
      %2214 = vmatpush1.msra.mxu0 0.0
      %2215 = vmatprep.subr.mxu0 0.0
      %2216 = vmatpush1.msra.mxu0 0.0
      %2217 = vmatprep.subr.mxu0 0.0
      %2218 = vmatpush1.msra.mxu0 0.0
      %2219 = vmatprep.subr.mxu0 0.0
      %2220 = vmatpush1.msra.mxu0 0.0
      %2221 = vmatprep.subr.mxu0 0.0
      %2222 = vmatpush1.msra.mxu0 0.0
      %2223 = vmatprep.subr.mxu0 0.0
      %2224 = vmatpush1.msra.mxu0 0.0
      %2225 = vmatprep.subr.mxu0 0.0
      %2226 = vmatpush1.msra.mxu0 0.0
      %2227 = vmatprep.subr.mxu0 0.0
      %2228 = vmatpush1.msra.mxu0 0.0
      %2229 = vmatprep.subr.mxu0 0.0
      %2230 = vmatpush1.msra.mxu0 0.0
      %2231 = vmatprep.subr.mxu0 0.0
      %2232 = vmatpush1.msra.mxu0 0.0
      %2233 = vmatprep.subr.mxu0 0.0
      %2234 = vmatpush1.msra.mxu0 0.0
      %2235 = vmatprep.subr.mxu0 0.0
      %2236 = vmatpush1.msra.mxu0 0.0
      %2237 = vmatprep.subr.mxu0 0.0
      %2238 = vmatpush1.msra.mxu0 0.0
      %2239 = vmatprep.subr.mxu0 0.0
      %2240 = vmatpush1.msra.mxu0 0.0
      %2241 = vmatprep.subr.mxu0 0.0
      %2242 = vmatpush1.msra.mxu0 0.0
      %2243 = vmatprep.subr.mxu0 0.0
      %2244 = vmatpush1.msra.mxu0 0.0
      %2245 = vmatprep.subr.mxu0 0.0
      %2246 = vmatpush1.msra.mxu0 0.0
      %2247 = vmatprep.subr.mxu0 0.0
      %2248 = vmatpush1.msra.mxu0 0.0
      %2249 = vmatprep.subr.mxu0 0.0
      %2250 = vmatpush1.msra.mxu0 0.0
      %2251 = vmatprep.subr.mxu0 0.0
      %2252 = vmatpush1.msra.mxu0 0.0
      %2253 = vmatprep.subr.mxu0 0.0
      %2254 = vmatpush1.msra.mxu0 0.0
      %2255 = vmatprep.subr.mxu0 0.0
      %2256 = vmatpush1.msra.mxu0 0.0
      %2257 = vmatprep.subr.mxu0 0.0
      %2258 = vmatpush1.msra.mxu0 0.0
      %2259 = vmatprep.subr.mxu0 0.0
      %2260 = vmatpush1.msra.mxu0 0.0
      %2261 = vmatprep.subr.mxu0 0.0
      %2262 = vmatpush1.msra.mxu0 0.0
      %2263 = vmatprep.subr.mxu0 0.0
      %2264 = vmatpush1.msra.mxu0 0.0
      %2265 = vmatprep.subr.mxu0 0.0
      %2266 = vmatpush1.msra.mxu0 0.0
      %2267 = vmatprep.subr.mxu0 0.0
      %2268 = vmatpush1.msra.mxu0 0.0
      %2269 = vmatprep.subr.mxu0 0.0
      %2270 = vmatpush1.msra.mxu0 0.0
      %2271 = vmatprep.subr.mxu0 0.0
      %2272 = vmatpush1.msra.mxu0 0.0
      %2273 = vmatprep.subr.mxu0 0.0
      %2274 = vmatpush1.msra.mxu0 0.0
      %2275 = vmatprep.mubr.f32.mxu0 0.0
      %2276 = vmatmul.mubr.f32.gmra.mrb[0].mxu0 %v2206
      %v2277 = vpop.f32.mrb[0].mxu0
      %v2278 = vadd.f32 0.0, %v2277
      %v2279 = vpop.f32.mrb[0].mxu0
      %2280 = vdwg.mxu0
      %v2281 = vadd.f32 %v2201, %v2278
      %v2282 = vld [vmem:[%s343 + $0x2] sm:$0xff]
      %s2283 = scalar_lea.vmem %s3, 96
      %v2284 = vld [vmem:[%s2283] sm:$0xf]
      %v2286 = vsel %vm362, %v2282, 0
      %v2289 = vsel %vm366, %v2284, 0
      %2291 = vmatprep.subr.mxu0 0.0
      %2292 = vmatpush1.msra.mxu0 %v2289
      %2293 = vmatprep.subr.mxu0 0.0
      %2294 = vmatpush1.msra.mxu0 0.0
      %2295 = vmatprep.subr.mxu0 0.0
      %2296 = vmatpush1.msra.mxu0 0.0
      %2297 = vmatprep.subr.mxu0 0.0
      %2298 = vmatpush1.msra.mxu0 0.0
      %2299 = vmatprep.subr.mxu0 0.0
      %2300 = vmatpush1.msra.mxu0 0.0
      %2301 = vmatprep.subr.mxu0 0.0
      %2302 = vmatpush1.msra.mxu0 0.0
      %2303 = vmatprep.subr.mxu0 0.0
      %2304 = vmatpush1.msra.mxu0 0.0
      %2305 = vmatprep.subr.mxu0 0.0
      %2306 = vmatpush1.msra.mxu0 0.0
      %2307 = vmatprep.subr.mxu0 0.0
      %2308 = vmatpush1.msra.mxu0 0.0
      %2309 = vmatprep.subr.mxu0 0.0
      %2310 = vmatpush1.msra.mxu0 0.0
      %2311 = vmatprep.subr.mxu0 0.0
      %2312 = vmatpush1.msra.mxu0 0.0
      %2313 = vmatprep.subr.mxu0 0.0
      %2314 = vmatpush1.msra.mxu0 0.0
      %2315 = vmatprep.subr.mxu0 0.0
      %2316 = vmatpush1.msra.mxu0 0.0
      %2317 = vmatprep.subr.mxu0 0.0
      %2318 = vmatpush1.msra.mxu0 0.0
      %2319 = vmatprep.subr.mxu0 0.0
      %2320 = vmatpush1.msra.mxu0 0.0
      %2321 = vmatprep.subr.mxu0 0.0
      %2322 = vmatpush1.msra.mxu0 0.0
      %2323 = vmatprep.subr.mxu0 0.0
      %2324 = vmatpush1.msra.mxu0 0.0
      %2325 = vmatprep.subr.mxu0 0.0
      %2326 = vmatpush1.msra.mxu0 0.0
      %2327 = vmatprep.subr.mxu0 0.0
      %2328 = vmatpush1.msra.mxu0 0.0
      %2329 = vmatprep.subr.mxu0 0.0
      %2330 = vmatpush1.msra.mxu0 0.0
      %2331 = vmatprep.subr.mxu0 0.0
      %2332 = vmatpush1.msra.mxu0 0.0
      %2333 = vmatprep.subr.mxu0 0.0
      %2334 = vmatpush1.msra.mxu0 0.0
      %2335 = vmatprep.subr.mxu0 0.0
      %2336 = vmatpush1.msra.mxu0 0.0
      %2337 = vmatprep.subr.mxu0 0.0
      %2338 = vmatpush1.msra.mxu0 0.0
      %2339 = vmatprep.subr.mxu0 0.0
      %2340 = vmatpush1.msra.mxu0 0.0
      %2341 = vmatprep.subr.mxu0 0.0
      %2342 = vmatpush1.msra.mxu0 0.0
      %2343 = vmatprep.subr.mxu0 0.0
      %2344 = vmatpush1.msra.mxu0 0.0
      %2345 = vmatprep.subr.mxu0 0.0
      %2346 = vmatpush1.msra.mxu0 0.0
      %2347 = vmatprep.subr.mxu0 0.0
      %2348 = vmatpush1.msra.mxu0 0.0
      %2349 = vmatprep.subr.mxu0 0.0
      %2350 = vmatpush1.msra.mxu0 0.0
      %2351 = vmatprep.subr.mxu0 0.0
      %2352 = vmatpush1.msra.mxu0 0.0
      %2353 = vmatprep.subr.mxu0 0.0
      %2354 = vmatpush1.msra.mxu0 0.0
      %2355 = vmatprep.mubr.f32.mxu0 0.0
      %2356 = vmatmul.mubr.f32.gmra.mrb[0].mxu0 %v2286
      %v2357 = vpop.f32.mrb[0].mxu0
      %v2358 = vadd.f32 0.0, %v2357
      %v2359 = vpop.f32.mrb[0].mxu0
      %2360 = vdwg.mxu0
      %v2361 = vadd.f32 %v2281, %v2358
      %v2362 = vld [vmem:[%s4] sm:$0x1]
      %v2364 = vlaneseq
      %v2365 = vshrl.u32 %v2364, 7
      %v2366 = vsub.s32 0, %v2365
      %v2367 = vrot.slane %v2362, %v2366
      %v2369 = vadd.f32 %v2361, %v2367
      %vm2370 = vcmp.gt.f32.partialorder %v2369, 0.0
      %v2371 = vmul.f32 %v2369, 0.2
      %v2372 = vsel %vm2370, %v2369, %v2371
      %2373 = vst.msk [vmem:[%s353] sm:$0xff] %vm362, %v2372
      %s2374 = smul.u32 %s20, 8
      %s2375 = sadd.s32 %s2374, %s21
      %p2376 = scmp.lt.s32.totalorder %s2375, 15
      %s2377 = scalar_select %p2376, %s2375, 15
      %s2378 = smul.addr %s2377, 8
      %s2379 = scalar_lea.vmem %s5, %s2378
      // Predicated region
      $region41: #{_lambda_.4} parent=39 // pred_check
        %p2380 = pneg %p186
      $region42: #{_lambda_.4} parent=39 // pred_check_branch
        %2382 = sbr.rel (%p2380) target = $region44
      $region43: #{_lambda_.4} parent=39 // pred_region
        %s2383 = smul.u32 %s20, 8
        %s2384 = sadd.s32 %s2383, %s21
      $region44: #{_lambda_.4} parent=39 // pred_fallthru
        _
    $region40: #{_lambda_.4} parent=5 // pred_fallthru
      _
    %p2385 = scmp.le.s32.totalorder 2, %s11
    // Predicated region
    $region45: #{_lambda_.4} parent=5 // pred_check
      %p2386 = pneg %p2385
    $region46: #{_lambda_.4} parent=5 // pred_check_branch
      %2388 = sbr.rel (%p2386) target = $region48
    $region47: #{_lambda_.4} parent=5 // pred_region
      %s2389 = ssub.s32 %s11, 2
      // Predicated region
      $region49: #{_lambda_.4} parent=47 // pred_check
        %p2390 = pneg %p192
      $region50: #{_lambda_.4} parent=47 // pred_check_branch
        %2392 = sbr.rel (%p2390) target = $region52
      $region51: #{_lambda_.4} parent=47 // pred_region
        %s2393 = smul.u32 %s22, 8
        %s2394 = sadd.s32 %s2393, %s23
        %p2395 = scmp.lt.s32.totalorder %s2394, 15
        %s2396 = scalar_select %p2395, %s2394, 15
        %s2397 = smul.addr %s2396, 8
        %s2398 = scalar_lea.vmem %s5, %s2397
      $region52: #{_lambda_.4} parent=47 // pred_fallthru
        _
    $region48: #{_lambda_.4} parent=5 // pred_fallthru
      _
  $region6: #{_lambda_.4} parent=0 // loop_footer
    %s15 = sadd.s32 1, %s11
  $region7: #{_lambda_.4} parent=0 // loop_footer_branch
    %10 = sbr.rel target = $region3
  $region8: #{_lambda_.4} parent=0 // loop_exit
    _

// kernel: _lambda_.5
$region0: #{_lambda_.5}
  #allocation0 [shape = 'u32[]', space=smem, size = 0x4, offset = 0x4, fixed_abs, tag = 'smem constant byte address 0x4 - core index']
  #allocation1 [shape = 'u32[144,128]{1,0:T(1,128)}', space=vmem, size = 0x12000, scoped, tag = 'internal scratch']
  %s0 = inlined_call_operand.vmem [shape: f32[24,2,6,4], index: 0, kind: input, shape index: {}, may-alias: {0,1,2}]
  %s1 = inlined_call_operand.vmem [shape: f32[24,2,6,4], index: 1, kind: input, shape index: {}, may-alias: {0,1,2}]
  %s2 = inlined_call_operand.vmem [shape: f32[24,2,6,4], index: 2, kind: input, shape index: {}, may-alias: {0,1,2}]
  %s3 = inlined_call_operand.vmem [shape: f32[5,5,4,8], index: 3, kind: input, shape index: {}]
  %s4 = inlined_call_operand.vmem [shape: f32[8,4,8], index: 4, kind: output, shape index: {0}]
  %s5 = inlined_call_operand.vmem [shape: f32[8,1,8], index: 5, kind: output, shape index: {1}]
  %s6 = inlined_call_operand.vmem [shape: f32[8,1,8], index: 6, kind: output, shape index: {2}]
  %7 = xla_tuple %s4, %s5, %s6
  %s8 = sld [smem:[#allocation0]]
  $region65: #{_lambda_.5} parent=0
    _
  %s10 = ssub.s32 1, %s8
  %s11 = scalar_select 0, %s10, %s8
  loop: start=0, step=1, limit=10
  $region2: #{_lambda_.5} parent=0 // loop_pre_header
    _
  $region3: #{_lambda_.5} parent=0 // loop_header
    %s13 = sphi 0, %s17
    %p14 = scmp.ge.s32.totalorder %s13, 10
    %s20 = sphi 0, %s32
    %s21 = sphi 0, %s28
    %s22 = sphi 0, %s20
    %s23 = sphi 0, %s21
    %s24 = sphi 0, %s22
    %s25 = sphi 0, %s23
    %s39 = sphi 0, %s41
    %s42 = sphi 0, %s39
    %s43 = sphi 0, %s42
    %s59 = sphi 0, %s43
    %s71 = sphi 0, %s73
    %s74 = sphi 0, %s71
    %s75 = sphi 0, %s74
    %s91 = sphi 0, %s75
    %s103 = sphi 0, %s105
    %s106 = sphi 0, %s103
    %s107 = sphi 0, %s106
    %s123 = sphi 0, %s107
    %s127 = sphi 0, %s127
    %s129 = sphi 0, %s127
    %s130 = sphi 0, %s129
    %s144 = sphi 0, %s130
    %s154 = sphi 0, %s156
    %s157 = sphi 0, %s154
    %s158 = sphi 0, %s157
    %s174 = sphi 0, %s158
    %s184 = sphi 0, %s186
    %s187 = sphi 0, %s184
    %s188 = sphi 0, %s187
    %s204 = sphi 0, %s188
    %s214 = sphi 0, %s216
    %s217 = sphi 0, %s214
    %s218 = sphi 0, %s217
    %s234 = sphi 0, %s218
  $region4: #{_lambda_.5} parent=0 // loop_header_branch
    %16 = sbr.rel (%p14) target = $region8
  $region5: #{_lambda_.5} parent=0 // loop_body
    %s18 = ssub.s32 %s13, 1
    %s19 = ssub.s32 %s13, 2
    %s26 = sadd.s32 1, %s21
    %p27 = scmp.ge.s32.totalorder %s26, 4
    %s28 = scalar_select %p27, 0, %s26
    %s29 = sadd.s32 1, %s20
    %s30 = scalar_select %p27, %s29, %s20
    %p31 = scmp.ge.s32.totalorder %s30, 2
    %s32 = scalar_select %p31, 0, %s30
    %s33 = smul.u32 %s20, 6
    %s34 = sadd.s32 %s33, %s21
    %s35 = smul.u32 %s32, 6
    %s36 = sadd.s32 %s35, %s28
    %s37 = ssub.s32 %s34, %s36
    %p38 = scmp.eq.s32.totalorder %s37, 0
    %s40 = sadd.s32 %s39, 1
    %s41 = scalar_select %p38, %s39, %s40
    %p44 = pneg %p38
    %p45 = scmp.eq.s32.totalorder %s13, 7
    %p46 = por %p44, %p45
    %p47 = scmp.ne.s32.totalorder %s39, %s42
    %p48 = scmp.eq.s32.totalorder %s13, 0
    %p49 = por %p47, %p48
    %p50 = scmp.ne.s32.totalorder %s39, %s42
    %p51 = scmp.eq.s32.totalorder %s18, 7
    %p52 = por %p50, %p51
    %p53 = scmp.ne.s32.totalorder %s42, %s43
    %p54 = scmp.eq.s32.totalorder %s18, 0
    %p55 = por %p53, %p54
    %p56 = scmp.ne.s32.totalorder %s42, %s43
    %p57 = scmp.eq.s32.totalorder %s19, 7
    %p58 = por %p56, %p57
    %p60 = scmp.ne.s32.totalorder %s43, %s59
    %p61 = scmp.eq.s32.totalorder %s19, 0
    %p62 = por %p60, %p61
    %s63 = smul.u32 %s20, 6
    %s64 = sadd.s32 %s63, %s21
    %s65 = sadd.s32 %s64, 1
    %s66 = smul.u32 %s32, 6
    %s67 = sadd.s32 %s66, %s28
    %s68 = sadd.s32 %s67, 1
    %s69 = ssub.s32 %s65, %s68
    %p70 = scmp.eq.s32.totalorder %s69, 0
    %s72 = sadd.s32 %s71, 1
    %s73 = scalar_select %p70, %s71, %s72
    %p76 = pneg %p70
    %p77 = scmp.eq.s32.totalorder %s13, 7
    %p78 = por %p76, %p77
    %p79 = scmp.ne.s32.totalorder %s71, %s74
    %p80 = scmp.eq.s32.totalorder %s13, 0
    %p81 = por %p79, %p80
    %p82 = scmp.ne.s32.totalorder %s71, %s74
    %p83 = scmp.eq.s32.totalorder %s18, 7
    %p84 = por %p82, %p83
    %p85 = scmp.ne.s32.totalorder %s74, %s75
    %p86 = scmp.eq.s32.totalorder %s18, 0
    %p87 = por %p85, %p86
    %p88 = scmp.ne.s32.totalorder %s74, %s75
    %p89 = scmp.eq.s32.totalorder %s19, 7
    %p90 = por %p88, %p89
    %p92 = scmp.ne.s32.totalorder %s75, %s91
    %p93 = scmp.eq.s32.totalorder %s19, 0
    %p94 = por %p92, %p93
    %s95 = smul.u32 %s20, 6
    %s96 = sadd.s32 %s95, %s21
    %s97 = sadd.s32 %s96, 2
    %s98 = smul.u32 %s32, 6
    %s99 = sadd.s32 %s98, %s28
    %s100 = sadd.s32 %s99, 2
    %s101 = ssub.s32 %s97, %s100
    %p102 = scmp.eq.s32.totalorder %s101, 0
    %s104 = sadd.s32 %s103, 1
    %s105 = scalar_select %p102, %s103, %s104
    %p108 = pneg %p102
    %p109 = scmp.eq.s32.totalorder %s13, 7
    %p110 = por %p108, %p109
    %p111 = scmp.ne.s32.totalorder %s103, %s106
    %p112 = scmp.eq.s32.totalorder %s13, 0
    %p113 = por %p111, %p112
    %p114 = scmp.ne.s32.totalorder %s103, %s106
    %p115 = scmp.eq.s32.totalorder %s18, 7
    %p116 = por %p114, %p115
    %p117 = scmp.ne.s32.totalorder %s106, %s107
    %p118 = scmp.eq.s32.totalorder %s18, 0
    %p119 = por %p117, %p118
    %p120 = scmp.ne.s32.totalorder %s106, %s107
    %p121 = scmp.eq.s32.totalorder %s19, 7
    %p122 = por %p120, %p121
    %p124 = scmp.ne.s32.totalorder %s107, %s123
    %p125 = scmp.eq.s32.totalorder %s19, 0
    %p126 = por %p124, %p125
    %s128 = sadd.s32 %s127, 1
    %p131 = scmp.eq.s32.totalorder %s13, 7
    %p132 = scmp.ne.s32.totalorder %s127, %s129
    %p133 = scmp.eq.s32.totalorder %s13, 0
    %p134 = por %p132, %p133
    %p135 = scmp.ne.s32.totalorder %s127, %s129
    %p136 = scmp.eq.s32.totalorder %s18, 7
    %p137 = por %p135, %p136
    %p138 = scmp.ne.s32.totalorder %s129, %s130
    %p139 = scmp.eq.s32.totalorder %s18, 0
    %p140 = por %p138, %p139
    %p141 = scmp.ne.s32.totalorder %s129, %s130
    %p142 = scmp.eq.s32.totalorder %s19, 7
    %p143 = por %p141, %p142
    %p145 = scmp.ne.s32.totalorder %s130, %s144
    %p146 = scmp.eq.s32.totalorder %s19, 0
    %p147 = por %p145, %p146
    %s148 = smul.u32 %s20, 4
    %s149 = sadd.s32 %s148, %s21
    %s150 = smul.u32 %s32, 4
    %s151 = sadd.s32 %s150, %s28
    %s152 = ssub.s32 %s149, %s151
    %p153 = scmp.eq.s32.totalorder %s152, 0
    %s155 = sadd.s32 %s154, 1
    %s156 = scalar_select %p153, %s154, %s155
    %p159 = pneg %p153
    %p160 = scmp.eq.s32.totalorder %s13, 7
    %p161 = por %p159, %p160
    %p162 = scmp.ne.s32.totalorder %s154, %s157
    %p163 = scmp.eq.s32.totalorder %s13, 0
    %p164 = por %p162, %p163
    %p165 = scmp.ne.s32.totalorder %s154, %s157
    %p166 = scmp.eq.s32.totalorder %s18, 7
    %p167 = por %p165, %p166
    %p168 = scmp.ne.s32.totalorder %s157, %s158
    %p169 = scmp.eq.s32.totalorder %s18, 0
    %p170 = por %p168, %p169
    %p171 = scmp.ne.s32.totalorder %s157, %s158
    %p172 = scmp.eq.s32.totalorder %s19, 7
    %p173 = por %p171, %p172
    %p175 = scmp.ne.s32.totalorder %s158, %s174
    %p176 = scmp.eq.s32.totalorder %s19, 0
    %p177 = por %p175, %p176
    %s178 = smul.u32 %s20, 4
    %s179 = sadd.s32 %s178, %s21
    %s180 = smul.u32 %s32, 4
    %s181 = sadd.s32 %s180, %s28
    %s182 = ssub.s32 %s179, %s181
    %p183 = scmp.eq.s32.totalorder %s182, 0
    %s185 = sadd.s32 %s184, 1
    %s186 = scalar_select %p183, %s184, %s185
    %p189 = pneg %p183
    %p190 = scmp.eq.s32.totalorder %s13, 7
    %p191 = por %p189, %p190
    %p192 = scmp.ne.s32.totalorder %s184, %s187
    %p193 = scmp.eq.s32.totalorder %s13, 0
    %p194 = por %p192, %p193
    %p195 = scmp.ne.s32.totalorder %s184, %s187
    %p196 = scmp.eq.s32.totalorder %s18, 7
    %p197 = por %p195, %p196
    %p198 = scmp.ne.s32.totalorder %s187, %s188
    %p199 = scmp.eq.s32.totalorder %s18, 0
    %p200 = por %p198, %p199
    %p201 = scmp.ne.s32.totalorder %s187, %s188
    %p202 = scmp.eq.s32.totalorder %s19, 7
    %p203 = por %p201, %p202
    %p205 = scmp.ne.s32.totalorder %s188, %s204
    %p206 = scmp.eq.s32.totalorder %s19, 0
    %p207 = por %p205, %p206
    %s208 = smul.u32 %s20, 4
    %s209 = sadd.s32 %s208, %s21
    %s210 = smul.u32 %s32, 4
    %s211 = sadd.s32 %s210, %s28
    %s212 = ssub.s32 %s209, %s211
    %p213 = scmp.eq.s32.totalorder %s212, 0
    %s215 = sadd.s32 %s214, 1
    %s216 = scalar_select %p213, %s214, %s215
    %p219 = pneg %p213
    %p220 = scmp.eq.s32.totalorder %s13, 7
    %p221 = por %p219, %p220
    %p222 = scmp.ne.s32.totalorder %s214, %s217
    %p223 = scmp.eq.s32.totalorder %s13, 0
    %p224 = por %p222, %p223
    %p225 = scmp.ne.s32.totalorder %s214, %s217
    %p226 = scmp.eq.s32.totalorder %s18, 7
    %p227 = por %p225, %p226
    %p228 = scmp.ne.s32.totalorder %s217, %s218
    %p229 = scmp.eq.s32.totalorder %s18, 0
    %p230 = por %p228, %p229
    %p231 = scmp.ne.s32.totalorder %s217, %s218
    %p232 = scmp.eq.s32.totalorder %s19, 7
    %p233 = por %p231, %p232
    %p235 = scmp.ne.s32.totalorder %s218, %s234
    %p236 = scmp.eq.s32.totalorder %s19, 0
    %p237 = por %p235, %p236
    %p238 = scmp.le.s32.totalorder 1, %s13
    %p239 = scmp.lt.s32.totalorder %s13, 9
    %p240 = pnand %p238, %p239
    %p241 = pneg %p240
    // Predicated region
    $region9: #{_lambda_.5} parent=5 // pred_check
      _
    $region10: #{_lambda_.5} parent=5 // pred_check_branch
      %243 = sbr.rel (%p240) target = $region12
    $region11: #{_lambda_.5} parent=5 // pred_region
      %s244 = ssub.s32 %s13, 1
      // Predicated region
      $region13: #{_lambda_.5} parent=11 // pred_check
        %p245 = pneg %p140
      $region14: #{_lambda_.5} parent=11 // pred_check_branch
        %247 = sbr.rel (%p245) target = $region16
      $region15: #{_lambda_.5} parent=11 // pred_region
        _
      $region16: #{_lambda_.5} parent=11 // pred_fallthru
        _
    $region12: #{_lambda_.5} parent=5 // pred_fallthru
      _
    %p248 = scmp.lt.s32.totalorder %s13, 8
    // Predicated region
    $region17: #{_lambda_.5} parent=5 // pred_check
      %p249 = pneg %p248
    $region18: #{_lambda_.5} parent=5 // pred_check_branch
      %251 = sbr.rel (%p249) target = $region20
    $region19: #{_lambda_.5} parent=5 // pred_region
      // Predicated region
      $region21: #{_lambda_.5} parent=19 // pred_check
        %p252 = pneg %p49
      $region22: #{_lambda_.5} parent=19 // pred_check_branch
        %254 = sbr.rel (%p252) target = $region24
      $region23: #{_lambda_.5} parent=19 // pred_region
        %s255 = smul.u32 %s20, 6
        %s256 = sadd.s32 %s255, %s21
        %s257 = smul.u32 2, %s256
        %p258 = scmp.lt.s32.totalorder %s257, 23
        %s259 = scalar_select %p258, %s257, 23
        %s260 = smul.addr %s259, 2
        %s261 = smul.addr %s260, 8
        %s262 = scalar_lea.vmem %s0, %s261
        %s263 = smul.u32 %s20, 6
        %s264 = sadd.s32 %s263, %s21
        %s265 = smul.u32 2, %s264
      $region24: #{_lambda_.5} parent=19 // pred_fallthru
        _
      // Predicated region
      $region25: #{_lambda_.5} parent=19 // pred_check
        %p266 = pneg %p81
      $region26: #{_lambda_.5} parent=19 // pred_check_branch
        %268 = sbr.rel (%p266) target = $region28
      $region27: #{_lambda_.5} parent=19 // pred_region
        %s269 = smul.u32 %s20, 6
        %s270 = sadd.s32 %s269, %s21
        %s271 = sadd.s32 %s270, 1
        %s272 = smul.u32 2, %s271
        %p273 = scmp.lt.s32.totalorder %s272, 23
        %s274 = scalar_select %p273, %s272, 23
        %s275 = smul.addr %s274, 2
        %s276 = smul.addr %s275, 8
        %s277 = scalar_lea.vmem %s1, %s276
        %s278 = smul.u32 %s20, 6
        %s279 = sadd.s32 %s278, %s21
        %s280 = sadd.s32 %s279, 1
        %s281 = smul.u32 2, %s280
      $region28: #{_lambda_.5} parent=19 // pred_fallthru
        _
      // Predicated region
      $region29: #{_lambda_.5} parent=19 // pred_check
        %p282 = pneg %p113
      $region30: #{_lambda_.5} parent=19 // pred_check_branch
        %284 = sbr.rel (%p282) target = $region32
      $region31: #{_lambda_.5} parent=19 // pred_region
        %s285 = smul.u32 %s20, 6
        %s286 = sadd.s32 %s285, %s21
        %s287 = sadd.s32 %s286, 2
        %s288 = smul.u32 2, %s287
        %p289 = scmp.lt.s32.totalorder %s288, 23
        %s290 = scalar_select %p289, %s288, 23
        %s291 = smul.addr %s290, 2
        %s292 = smul.addr %s291, 8
        %s293 = scalar_lea.vmem %s2, %s292
        %s294 = smul.u32 %s20, 6
        %s295 = sadd.s32 %s294, %s21
        %s296 = sadd.s32 %s295, 2
        %s297 = smul.u32 2, %s296
      $region32: #{_lambda_.5} parent=19 // pred_fallthru
        _
    $region20: #{_lambda_.5} parent=5 // pred_fallthru
      _
    %p298 = scmp.le.s32.totalorder 1, %s13
    %p299 = scmp.lt.s32.totalorder %s13, 9
    %p300 = pnand %p298, %p299
    %p301 = pneg %p300
    // Predicated region
    $region33: #{_lambda_.5} parent=5 // pred_check
      _
    $region34: #{_lambda_.5} parent=5 // pred_check_branch
      %303 = sbr.rel (%p300) target = $region36
    $region35: #{_lambda_.5} parent=5 // pred_region
      %s304 = ssub.s32 %s13, 1
      %s305 = smul.u32 %s22, 6
      %s306 = sadd.s32 %s305, %s23
      %s307 = smul.u32 2, %s306
      %p308 = scmp.lt.s32.totalorder %s307, 23
      %s309 = scalar_select %p308, %s307, 23
      %s310 = smul.addr %s309, 2
      %s311 = smul.addr %s310, 8
      %s312 = scalar_lea.vmem %s0, %s311
      %p313 = pneg %p55
      %p314 = pneg %p52
      %s315 = smul.u32 %s22, 6
      %s316 = sadd.s32 %s315, %s23
      %s317 = sadd.s32 %s316, 1
      %s318 = smul.u32 2, %s317
      %p319 = scmp.lt.s32.totalorder %s318, 23
      %s320 = scalar_select %p319, %s318, 23
      %s321 = smul.addr %s320, 2
      %s322 = smul.addr %s321, 8
      %s323 = scalar_lea.vmem %s1, %s322
      %p324 = pneg %p87
      %p325 = pneg %p84
      %s326 = smul.u32 %s22, 6
      %s327 = sadd.s32 %s326, %s23
      %s328 = sadd.s32 %s327, 2
      %s329 = smul.u32 2, %s328
      %p330 = scmp.lt.s32.totalorder %s329, 23
      %s331 = scalar_select %p330, %s329, 23
      %s332 = smul.addr %s331, 2
      %s333 = smul.addr %s332, 8
      %s334 = scalar_lea.vmem %s2, %s333
      %p335 = pneg %p119
      %p336 = pneg %p116
      %p337 = pneg %p140
      %p338 = pneg %p137
      %p339 = pneg %p170
      %p340 = pneg %p167
      %s341 = smul.u32 %s22, 4
      %s342 = sadd.s32 %s341, %s23
      %p343 = scmp.lt.s32.totalorder %s342, 7
      %s344 = scalar_select %p343, %s342, 7
      %s345 = smul.addr %s344, 4
      %s346 = scalar_lea.vmem %s4, %s345
      %p347 = pneg %p200
      %p348 = pneg %p197
      %s349 = smul.u32 %s22, 4
      %s350 = sadd.s32 %s349, %s23
      %p351 = scmp.lt.s32.totalorder %s350, 7
      %s352 = scalar_select %p351, %s350, 7
      %s353 = scalar_lea.vmem %s5, %s352
      %p354 = pneg %p230
      %p355 = pneg %p227
      %s356 = smul.u32 %s22, 4
      %s357 = sadd.s32 %s356, %s23
      %p358 = scmp.lt.s32.totalorder %s357, 7
      %s359 = scalar_select %p358, %s357, 7
      %s360 = scalar_lea.vmem %s6, %s359
      %s361 = smul.u32 %s22, 6
      %s362 = sadd.s32 %s361, %s23
      %s363 = smul.u32 2, %s362
      %p364 = scmp.lt.s32.totalorder %s363, 23
      %s365 = scalar_select %p364, %s363, 23
      %s366 = smul.addr %s365, 2
      %s367 = smul.addr %s366, 8
      %s368 = scalar_lea.vmem %s0, %s367
      %s369 = smul.u32 %s22, 6
      %s370 = sadd.s32 %s369, %s23
      %s371 = smul.u32 2, %s370
      %s372 = smul.u32 %s22, 6
      %s373 = sadd.s32 %s372, %s23
      %s374 = sadd.s32 %s373, 1
      %s375 = smul.u32 2, %s374
      %p376 = scmp.lt.s32.totalorder %s375, 23
      %s377 = scalar_select %p376, %s375, 23
      %s378 = smul.addr %s377, 2
      %s379 = smul.addr %s378, 8
      %s380 = scalar_lea.vmem %s1, %s379
      %s381 = smul.u32 %s22, 6
      %s382 = sadd.s32 %s381, %s23
      %s383 = sadd.s32 %s382, 1
      %s384 = smul.u32 2, %s383
      %s385 = smul.u32 %s22, 6
      %s386 = sadd.s32 %s385, %s23
      %s387 = sadd.s32 %s386, 2
      %s388 = smul.u32 2, %s387
      %p389 = scmp.lt.s32.totalorder %s388, 23
      %s390 = scalar_select %p389, %s388, 23
      %s391 = smul.addr %s390, 2
      %s392 = smul.addr %s391, 8
      %s393 = scalar_lea.vmem %s2, %s392
      %s394 = smul.u32 %s22, 6
      %s395 = sadd.s32 %s394, %s23
      %s396 = sadd.s32 %s395, 2
      %s397 = smul.u32 2, %s396
      %s398 = smul.u32 %s22, 4
      %s399 = sadd.s32 %s398, %s23
      %p400 = scmp.lt.s32.totalorder %s399, 7
      %s401 = scalar_select %p400, %s399, 7
      %s402 = smul.addr %s401, 4
      %s403 = scalar_lea.vmem %s4, %s402
      %s404 = smul.u32 %s22, 4
      %s405 = sadd.s32 %s404, %s23
      %s406 = smul.u32 %s22, 4
      %s407 = sadd.s32 %s406, %s23
      %p408 = scmp.lt.s32.totalorder %s407, 7
      %s409 = scalar_select %p408, %s407, 7
      %s410 = scalar_lea.vmem %s5, %s409
      %s411 = smul.u32 %s22, 4
      %s412 = sadd.s32 %s411, %s23
      %s413 = smul.u32 %s22, 4
      %s414 = sadd.s32 %s413, %s23
      %p415 = scmp.lt.s32.totalorder %s414, 7
      %s416 = scalar_select %p415, %s414, 7
      %s417 = scalar_lea.vmem %s6, %s416
      %s418 = smul.u32 %s22, 4
      %s419 = sadd.s32 %s418, %s23
      %v420 = vld [vmem:[%s368] sm:$0xf]
      %v421 = vld [vmem:[%s3] sm:$0xf]
      %s422 = scalar_lea.vmem %s368, 8
      %v423 = vld [vmem:[%s422] sm:$0xf]
      %s424 = scalar_lea.vmem %s3, 4
      %v425 = vld [vmem:[%s424] sm:$0xf]
      %vm426 = vcmask 31744
      %v428 = vsel %vm426, %v423, 0
      %vm430 = vcmask 1043456
      %v432 = vsel %vm430, %v425, 0
      %434 = vmatprep.subr.mxu0 0.0
      %435 = vmatpush1.msra.mxu0 %v432
      %436 = vmatprep.subr.mxu0 0.0
      %437 = vmatpush1.msra.mxu0 0.0
      %438 = vmatprep.subr.mxu0 0.0
      %439 = vmatpush1.msra.mxu0 0.0
      %440 = vmatprep.subr.mxu0 0.0
      %441 = vmatpush1.msra.mxu0 0.0
      %442 = vmatprep.subr.mxu0 0.0
      %443 = vmatpush1.msra.mxu0 0.0
      %444 = vmatprep.subr.mxu0 0.0
      %445 = vmatpush1.msra.mxu0 0.0
      %446 = vmatprep.subr.mxu0 0.0
      %447 = vmatpush1.msra.mxu0 0.0
      %448 = vmatprep.subr.mxu0 0.0
      %449 = vmatpush1.msra.mxu0 0.0
      %450 = vmatprep.subr.mxu0 0.0
      %451 = vmatpush1.msra.mxu0 0.0
      %452 = vmatprep.subr.mxu0 0.0
      %453 = vmatpush1.msra.mxu0 0.0
      %454 = vmatprep.subr.mxu0 0.0
      %455 = vmatpush1.msra.mxu0 0.0
      %456 = vmatprep.subr.mxu0 0.0
      %457 = vmatpush1.msra.mxu0 0.0
      %458 = vmatprep.subr.mxu0 0.0
      %459 = vmatpush1.msra.mxu0 0.0
      %460 = vmatprep.subr.mxu0 0.0
      %461 = vmatpush1.msra.mxu0 0.0
      %462 = vmatprep.subr.mxu0 0.0
      %463 = vmatpush1.msra.mxu0 0.0
      %464 = vmatprep.subr.mxu0 0.0
      %465 = vmatpush1.msra.mxu0 0.0
      %466 = vmatprep.subr.mxu0 0.0
      %467 = vmatpush1.msra.mxu0 0.0
      %468 = vmatprep.subr.mxu0 0.0
      %469 = vmatpush1.msra.mxu0 0.0
      %470 = vmatprep.subr.mxu0 0.0
      %471 = vmatpush1.msra.mxu0 0.0
      %472 = vmatprep.subr.mxu0 0.0
      %473 = vmatpush1.msra.mxu0 0.0
      %474 = vmatprep.subr.mxu0 0.0
      %475 = vmatpush1.msra.mxu0 0.0
      %476 = vmatprep.subr.mxu0 0.0
      %477 = vmatpush1.msra.mxu0 0.0
      %478 = vmatprep.subr.mxu0 0.0
      %479 = vmatpush1.msra.mxu0 0.0
      %480 = vmatprep.subr.mxu0 0.0
      %481 = vmatpush1.msra.mxu0 0.0
      %482 = vmatprep.subr.mxu0 0.0
      %483 = vmatpush1.msra.mxu0 0.0
      %484 = vmatprep.subr.mxu0 0.0
      %485 = vmatpush1.msra.mxu0 0.0
      %486 = vmatprep.subr.mxu0 0.0
      %487 = vmatpush1.msra.mxu0 0.0
      %488 = vmatprep.subr.mxu0 0.0
      %489 = vmatpush1.msra.mxu0 0.0
      %490 = vmatprep.subr.mxu0 0.0
      %491 = vmatpush1.msra.mxu0 0.0
      %492 = vmatprep.subr.mxu0 0.0
      %493 = vmatpush1.msra.mxu0 0.0
      %494 = vmatprep.subr.mxu0 0.0
      %495 = vmatpush1.msra.mxu0 0.0
      %496 = vmatprep.subr.mxu0 0.0
      %497 = vmatpush1.msra.mxu0 0.0
      %498 = vmatprep.mubr.f32.mxu0 0.0
      %499 = vmatmul.mubr.f32.gmra.mrb[0].mxu0 %v428
      %v500 = vpop.f32.mrb[0].mxu0
      %v501 = vadd.f32 0.0, %v500
      %v502 = vpop.f32.mrb[0].mxu0
      %503 = vdwg.mxu0
      %v505 = vsel %vm426, %v420, 0
      %v508 = vsel %vm430, %v421, 0
      %510 = vmatprep.subr.mxu0 0.0
      %511 = vmatpush1.msra.mxu0 %v508
      %512 = vmatprep.subr.mxu0 0.0
      %513 = vmatpush1.msra.mxu0 0.0
      %514 = vmatprep.subr.mxu0 0.0
      %515 = vmatpush1.msra.mxu0 0.0
      %516 = vmatprep.subr.mxu0 0.0
      %517 = vmatpush1.msra.mxu0 0.0
      %518 = vmatprep.subr.mxu0 0.0
      %519 = vmatpush1.msra.mxu0 0.0
      %520 = vmatprep.subr.mxu0 0.0
      %521 = vmatpush1.msra.mxu0 0.0
      %522 = vmatprep.subr.mxu0 0.0
      %523 = vmatpush1.msra.mxu0 0.0
      %524 = vmatprep.subr.mxu0 0.0
      %525 = vmatpush1.msra.mxu0 0.0
      %526 = vmatprep.subr.mxu0 0.0
      %527 = vmatpush1.msra.mxu0 0.0
      %528 = vmatprep.subr.mxu0 0.0
      %529 = vmatpush1.msra.mxu0 0.0
      %530 = vmatprep.subr.mxu0 0.0
      %531 = vmatpush1.msra.mxu0 0.0
      %532 = vmatprep.subr.mxu0 0.0
      %533 = vmatpush1.msra.mxu0 0.0
      %534 = vmatprep.subr.mxu0 0.0
      %535 = vmatpush1.msra.mxu0 0.0
      %536 = vmatprep.subr.mxu0 0.0
      %537 = vmatpush1.msra.mxu0 0.0
      %538 = vmatprep.subr.mxu0 0.0
      %539 = vmatpush1.msra.mxu0 0.0
      %540 = vmatprep.subr.mxu0 0.0
      %541 = vmatpush1.msra.mxu0 0.0
      %542 = vmatprep.subr.mxu0 0.0
      %543 = vmatpush1.msra.mxu0 0.0
      %544 = vmatprep.subr.mxu0 0.0
      %545 = vmatpush1.msra.mxu0 0.0
      %546 = vmatprep.subr.mxu0 0.0
      %547 = vmatpush1.msra.mxu0 0.0
      %548 = vmatprep.subr.mxu0 0.0
      %549 = vmatpush1.msra.mxu0 0.0
      %550 = vmatprep.subr.mxu0 0.0
      %551 = vmatpush1.msra.mxu0 0.0
      %552 = vmatprep.subr.mxu0 0.0
      %553 = vmatpush1.msra.mxu0 0.0
      %554 = vmatprep.subr.mxu0 0.0
      %555 = vmatpush1.msra.mxu0 0.0
      %556 = vmatprep.subr.mxu0 0.0
      %557 = vmatpush1.msra.mxu0 0.0
      %558 = vmatprep.subr.mxu0 0.0
      %559 = vmatpush1.msra.mxu0 0.0
      %560 = vmatprep.subr.mxu0 0.0
      %561 = vmatpush1.msra.mxu0 0.0
      %562 = vmatprep.subr.mxu0 0.0
      %563 = vmatpush1.msra.mxu0 0.0
      %564 = vmatprep.subr.mxu0 0.0
      %565 = vmatpush1.msra.mxu0 0.0
      %566 = vmatprep.subr.mxu0 0.0
      %567 = vmatpush1.msra.mxu0 0.0
      %568 = vmatprep.subr.mxu0 0.0
      %569 = vmatpush1.msra.mxu0 0.0
      %570 = vmatprep.subr.mxu0 0.0
      %571 = vmatpush1.msra.mxu0 0.0
      %572 = vmatprep.subr.mxu0 0.0
      %573 = vmatpush1.msra.mxu0 0.0
      %574 = vmatprep.mubr.f32.mxu0 0.0
      %575 = vmatmul.mubr.f32.gmra.mrb[0].mxu0 %v505
      %v576 = vpop.f32.mrb[0].mxu0
      %v577 = vadd.f32 %v501, %v576
      %v578 = vpop.f32.mrb[0].mxu0
      %579 = vdwg.mxu0
      %v580 = vld [vmem:[%s368 + $0x1] sm:$0xf]
      %s581 = scalar_lea.vmem %s3, 8
      %v582 = vld [vmem:[%s581] sm:$0xf]
      %v584 = vsel %vm426, %v580, 0
      %v587 = vsel %vm430, %v582, 0
      %589 = vmatprep.subr.mxu0 0.0
      %590 = vmatpush1.msra.mxu0 %v587
      %591 = vmatprep.subr.mxu0 0.0
      %592 = vmatpush1.msra.mxu0 0.0
      %593 = vmatprep.subr.mxu0 0.0
      %594 = vmatpush1.msra.mxu0 0.0
      %595 = vmatprep.subr.mxu0 0.0
      %596 = vmatpush1.msra.mxu0 0.0
      %597 = vmatprep.subr.mxu0 0.0
      %598 = vmatpush1.msra.mxu0 0.0
      %599 = vmatprep.subr.mxu0 0.0
      %600 = vmatpush1.msra.mxu0 0.0
      %601 = vmatprep.subr.mxu0 0.0
      %602 = vmatpush1.msra.mxu0 0.0
      %603 = vmatprep.subr.mxu0 0.0
      %604 = vmatpush1.msra.mxu0 0.0
      %605 = vmatprep.subr.mxu0 0.0
      %606 = vmatpush1.msra.mxu0 0.0
      %607 = vmatprep.subr.mxu0 0.0
      %608 = vmatpush1.msra.mxu0 0.0
      %609 = vmatprep.subr.mxu0 0.0
      %610 = vmatpush1.msra.mxu0 0.0
      %611 = vmatprep.subr.mxu0 0.0
      %612 = vmatpush1.msra.mxu0 0.0
      %613 = vmatprep.subr.mxu0 0.0
      %614 = vmatpush1.msra.mxu0 0.0
      %615 = vmatprep.subr.mxu0 0.0
      %616 = vmatpush1.msra.mxu0 0.0
      %617 = vmatprep.subr.mxu0 0.0
      %618 = vmatpush1.msra.mxu0 0.0
      %619 = vmatprep.subr.mxu0 0.0
      %620 = vmatpush1.msra.mxu0 0.0
      %621 = vmatprep.subr.mxu0 0.0
      %622 = vmatpush1.msra.mxu0 0.0
      %623 = vmatprep.subr.mxu0 0.0
      %624 = vmatpush1.msra.mxu0 0.0
      %625 = vmatprep.subr.mxu0 0.0
      %626 = vmatpush1.msra.mxu0 0.0
      %627 = vmatprep.subr.mxu0 0.0
      %628 = vmatpush1.msra.mxu0 0.0
      %629 = vmatprep.subr.mxu0 0.0
      %630 = vmatpush1.msra.mxu0 0.0
      %631 = vmatprep.subr.mxu0 0.0
      %632 = vmatpush1.msra.mxu0 0.0
      %633 = vmatprep.subr.mxu0 0.0
      %634 = vmatpush1.msra.mxu0 0.0
      %635 = vmatprep.subr.mxu0 0.0
      %636 = vmatpush1.msra.mxu0 0.0
      %637 = vmatprep.subr.mxu0 0.0
      %638 = vmatpush1.msra.mxu0 0.0
      %639 = vmatprep.subr.mxu0 0.0
      %640 = vmatpush1.msra.mxu0 0.0
      %641 = vmatprep.subr.mxu0 0.0
      %642 = vmatpush1.msra.mxu0 0.0
      %643 = vmatprep.subr.mxu0 0.0
      %644 = vmatpush1.msra.mxu0 0.0
      %645 = vmatprep.subr.mxu0 0.0
      %646 = vmatpush1.msra.mxu0 0.0
      %647 = vmatprep.subr.mxu0 0.0
      %648 = vmatpush1.msra.mxu0 0.0
      %649 = vmatprep.subr.mxu0 0.0
      %650 = vmatpush1.msra.mxu0 0.0
      %651 = vmatprep.subr.mxu0 0.0
      %652 = vmatpush1.msra.mxu0 0.0
      %653 = vmatprep.mubr.f32.mxu0 0.0
      %654 = vmatmul.mubr.f32.gmra.mrb[0].mxu0 %v584
      %v655 = vpop.f32.mrb[0].mxu0
      %v656 = vadd.f32 0.0, %v655
      %v657 = vpop.f32.mrb[0].mxu0
      %658 = vdwg.mxu0
      %v659 = vadd.f32 %v577, %v656
      %v660 = vld [vmem:[%s422 + $0x1] sm:$0xf]
      %s661 = scalar_lea.vmem %s3, 12
      %v662 = vld [vmem:[%s661] sm:$0xf]
      %v664 = vsel %vm426, %v660, 0
      %v667 = vsel %vm430, %v662, 0
      %669 = vmatprep.subr.mxu0 0.0
      %670 = vmatpush1.msra.mxu0 %v667
      %671 = vmatprep.subr.mxu0 0.0
      %672 = vmatpush1.msra.mxu0 0.0
      %673 = vmatprep.subr.mxu0 0.0
      %674 = vmatpush1.msra.mxu0 0.0
      %675 = vmatprep.subr.mxu0 0.0
      %676 = vmatpush1.msra.mxu0 0.0
      %677 = vmatprep.subr.mxu0 0.0
      %678 = vmatpush1.msra.mxu0 0.0
      %679 = vmatprep.subr.mxu0 0.0
      %680 = vmatpush1.msra.mxu0 0.0
      %681 = vmatprep.subr.mxu0 0.0
      %682 = vmatpush1.msra.mxu0 0.0
      %683 = vmatprep.subr.mxu0 0.0
      %684 = vmatpush1.msra.mxu0 0.0
      %685 = vmatprep.subr.mxu0 0.0
      %686 = vmatpush1.msra.mxu0 0.0
      %687 = vmatprep.subr.mxu0 0.0
      %688 = vmatpush1.msra.mxu0 0.0
      %689 = vmatprep.subr.mxu0 0.0
      %690 = vmatpush1.msra.mxu0 0.0
      %691 = vmatprep.subr.mxu0 0.0
      %692 = vmatpush1.msra.mxu0 0.0
      %693 = vmatprep.subr.mxu0 0.0
      %694 = vmatpush1.msra.mxu0 0.0
      %695 = vmatprep.subr.mxu0 0.0
      %696 = vmatpush1.msra.mxu0 0.0
      %697 = vmatprep.subr.mxu0 0.0
      %698 = vmatpush1.msra.mxu0 0.0
      %699 = vmatprep.subr.mxu0 0.0
      %700 = vmatpush1.msra.mxu0 0.0
      %701 = vmatprep.subr.mxu0 0.0
      %702 = vmatpush1.msra.mxu0 0.0
      %703 = vmatprep.subr.mxu0 0.0
      %704 = vmatpush1.msra.mxu0 0.0
      %705 = vmatprep.subr.mxu0 0.0
      %706 = vmatpush1.msra.mxu0 0.0
      %707 = vmatprep.subr.mxu0 0.0
      %708 = vmatpush1.msra.mxu0 0.0
      %709 = vmatprep.subr.mxu0 0.0
      %710 = vmatpush1.msra.mxu0 0.0
      %711 = vmatprep.subr.mxu0 0.0
      %712 = vmatpush1.msra.mxu0 0.0
      %713 = vmatprep.subr.mxu0 0.0
      %714 = vmatpush1.msra.mxu0 0.0
      %715 = vmatprep.subr.mxu0 0.0
      %716 = vmatpush1.msra.mxu0 0.0
      %717 = vmatprep.subr.mxu0 0.0
      %718 = vmatpush1.msra.mxu0 0.0
      %719 = vmatprep.subr.mxu0 0.0
      %720 = vmatpush1.msra.mxu0 0.0
      %721 = vmatprep.subr.mxu0 0.0
      %722 = vmatpush1.msra.mxu0 0.0
      %723 = vmatprep.subr.mxu0 0.0
      %724 = vmatpush1.msra.mxu0 0.0
      %725 = vmatprep.subr.mxu0 0.0
      %726 = vmatpush1.msra.mxu0 0.0
      %727 = vmatprep.subr.mxu0 0.0
      %728 = vmatpush1.msra.mxu0 0.0
      %729 = vmatprep.subr.mxu0 0.0
      %730 = vmatpush1.msra.mxu0 0.0
      %731 = vmatprep.subr.mxu0 0.0
      %732 = vmatpush1.msra.mxu0 0.0
      %733 = vmatprep.mubr.f32.mxu0 0.0
      %734 = vmatmul.mubr.f32.gmra.mrb[0].mxu0 %v664
      %v735 = vpop.f32.mrb[0].mxu0
      %v736 = vadd.f32 0.0, %v735
      %v737 = vpop.f32.mrb[0].mxu0
      %738 = vdwg.mxu0
      %v739 = vadd.f32 %v659, %v736
      %v740 = vld [vmem:[%s368 + $0x2] sm:$0xf]
      %s741 = scalar_lea.vmem %s3, 16
      %v742 = vld [vmem:[%s741] sm:$0xf]
      %v744 = vsel %vm426, %v740, 0
      %v747 = vsel %vm430, %v742, 0
      %749 = vmatprep.subr.mxu0 0.0
      %750 = vmatpush1.msra.mxu0 %v747
      %751 = vmatprep.subr.mxu0 0.0
      %752 = vmatpush1.msra.mxu0 0.0
      %753 = vmatprep.subr.mxu0 0.0
      %754 = vmatpush1.msra.mxu0 0.0
      %755 = vmatprep.subr.mxu0 0.0
      %756 = vmatpush1.msra.mxu0 0.0
      %757 = vmatprep.subr.mxu0 0.0
      %758 = vmatpush1.msra.mxu0 0.0
      %759 = vmatprep.subr.mxu0 0.0
      %760 = vmatpush1.msra.mxu0 0.0
      %761 = vmatprep.subr.mxu0 0.0
      %762 = vmatpush1.msra.mxu0 0.0
      %763 = vmatprep.subr.mxu0 0.0
      %764 = vmatpush1.msra.mxu0 0.0
      %765 = vmatprep.subr.mxu0 0.0
      %766 = vmatpush1.msra.mxu0 0.0
      %767 = vmatprep.subr.mxu0 0.0
      %768 = vmatpush1.msra.mxu0 0.0
      %769 = vmatprep.subr.mxu0 0.0
      %770 = vmatpush1.msra.mxu0 0.0
      %771 = vmatprep.subr.mxu0 0.0
      %772 = vmatpush1.msra.mxu0 0.0
      %773 = vmatprep.subr.mxu0 0.0
      %774 = vmatpush1.msra.mxu0 0.0
      %775 = vmatprep.subr.mxu0 0.0
      %776 = vmatpush1.msra.mxu0 0.0
      %777 = vmatprep.subr.mxu0 0.0
      %778 = vmatpush1.msra.mxu0 0.0
      %779 = vmatprep.subr.mxu0 0.0
      %780 = vmatpush1.msra.mxu0 0.0
      %781 = vmatprep.subr.mxu0 0.0
      %782 = vmatpush1.msra.mxu0 0.0
      %783 = vmatprep.subr.mxu0 0.0
      %784 = vmatpush1.msra.mxu0 0.0
      %785 = vmatprep.subr.mxu0 0.0
      %786 = vmatpush1.msra.mxu0 0.0
      %787 = vmatprep.subr.mxu0 0.0
      %788 = vmatpush1.msra.mxu0 0.0
      %789 = vmatprep.subr.mxu0 0.0
      %790 = vmatpush1.msra.mxu0 0.0
      %791 = vmatprep.subr.mxu0 0.0
      %792 = vmatpush1.msra.mxu0 0.0
      %793 = vmatprep.subr.mxu0 0.0
      %794 = vmatpush1.msra.mxu0 0.0
      %795 = vmatprep.subr.mxu0 0.0
      %796 = vmatpush1.msra.mxu0 0.0
      %797 = vmatprep.subr.mxu0 0.0
      %798 = vmatpush1.msra.mxu0 0.0
      %799 = vmatprep.subr.mxu0 0.0
      %800 = vmatpush1.msra.mxu0 0.0
      %801 = vmatprep.subr.mxu0 0.0
      %802 = vmatpush1.msra.mxu0 0.0
      %803 = vmatprep.subr.mxu0 0.0
      %804 = vmatpush1.msra.mxu0 0.0
      %805 = vmatprep.subr.mxu0 0.0
      %806 = vmatpush1.msra.mxu0 0.0
      %807 = vmatprep.subr.mxu0 0.0
      %808 = vmatpush1.msra.mxu0 0.0
      %809 = vmatprep.subr.mxu0 0.0
      %810 = vmatpush1.msra.mxu0 0.0
      %811 = vmatprep.subr.mxu0 0.0
      %812 = vmatpush1.msra.mxu0 0.0
      %813 = vmatprep.mubr.f32.mxu0 0.0
      %814 = vmatmul.mubr.f32.gmra.mrb[0].mxu0 %v744
      %v815 = vpop.f32.mrb[0].mxu0
      %v816 = vadd.f32 0.0, %v815
      %v817 = vpop.f32.mrb[0].mxu0
      %818 = vdwg.mxu0
      %v819 = vadd.f32 %v739, %v816
      %s820 = scalar_lea.vmem %s368, 16
      %v821 = vld [vmem:[%s820] sm:$0xf]
      %s822 = scalar_lea.vmem %s3, 20
      %v823 = vld [vmem:[%s822] sm:$0xf]
      %v825 = vsel %vm426, %v821, 0
      %v828 = vsel %vm430, %v823, 0
      %830 = vmatprep.subr.mxu0 0.0
      %831 = vmatpush1.msra.mxu0 %v828
      %832 = vmatprep.subr.mxu0 0.0
      %833 = vmatpush1.msra.mxu0 0.0
      %834 = vmatprep.subr.mxu0 0.0
      %835 = vmatpush1.msra.mxu0 0.0
      %836 = vmatprep.subr.mxu0 0.0
      %837 = vmatpush1.msra.mxu0 0.0
      %838 = vmatprep.subr.mxu0 0.0
      %839 = vmatpush1.msra.mxu0 0.0
      %840 = vmatprep.subr.mxu0 0.0
      %841 = vmatpush1.msra.mxu0 0.0
      %842 = vmatprep.subr.mxu0 0.0
      %843 = vmatpush1.msra.mxu0 0.0
      %844 = vmatprep.subr.mxu0 0.0
      %845 = vmatpush1.msra.mxu0 0.0
      %846 = vmatprep.subr.mxu0 0.0
      %847 = vmatpush1.msra.mxu0 0.0
      %848 = vmatprep.subr.mxu0 0.0
      %849 = vmatpush1.msra.mxu0 0.0
      %850 = vmatprep.subr.mxu0 0.0
      %851 = vmatpush1.msra.mxu0 0.0
      %852 = vmatprep.subr.mxu0 0.0
      %853 = vmatpush1.msra.mxu0 0.0
      %854 = vmatprep.subr.mxu0 0.0
      %855 = vmatpush1.msra.mxu0 0.0
      %856 = vmatprep.subr.mxu0 0.0
      %857 = vmatpush1.msra.mxu0 0.0
      %858 = vmatprep.subr.mxu0 0.0
      %859 = vmatpush1.msra.mxu0 0.0
      %860 = vmatprep.subr.mxu0 0.0
      %861 = vmatpush1.msra.mxu0 0.0
      %862 = vmatprep.subr.mxu0 0.0
      %863 = vmatpush1.msra.mxu0 0.0
      %864 = vmatprep.subr.mxu0 0.0
      %865 = vmatpush1.msra.mxu0 0.0
      %866 = vmatprep.subr.mxu0 0.0
      %867 = vmatpush1.msra.mxu0 0.0
      %868 = vmatprep.subr.mxu0 0.0
      %869 = vmatpush1.msra.mxu0 0.0
      %870 = vmatprep.subr.mxu0 0.0
      %871 = vmatpush1.msra.mxu0 0.0
      %872 = vmatprep.subr.mxu0 0.0
      %873 = vmatpush1.msra.mxu0 0.0
      %874 = vmatprep.subr.mxu0 0.0
      %875 = vmatpush1.msra.mxu0 0.0
      %876 = vmatprep.subr.mxu0 0.0
      %877 = vmatpush1.msra.mxu0 0.0
      %878 = vmatprep.subr.mxu0 0.0
      %879 = vmatpush1.msra.mxu0 0.0
      %880 = vmatprep.subr.mxu0 0.0
      %881 = vmatpush1.msra.mxu0 0.0
      %882 = vmatprep.subr.mxu0 0.0
      %883 = vmatpush1.msra.mxu0 0.0
      %884 = vmatprep.subr.mxu0 0.0
      %885 = vmatpush1.msra.mxu0 0.0
      %886 = vmatprep.subr.mxu0 0.0
      %887 = vmatpush1.msra.mxu0 0.0
      %888 = vmatprep.subr.mxu0 0.0
      %889 = vmatpush1.msra.mxu0 0.0
      %890 = vmatprep.subr.mxu0 0.0
      %891 = vmatpush1.msra.mxu0 0.0
      %892 = vmatprep.subr.mxu0 0.0
      %893 = vmatpush1.msra.mxu0 0.0
      %894 = vmatprep.mubr.f32.mxu0 0.0
      %895 = vmatmul.mubr.f32.gmra.mrb[0].mxu0 %v825
      %v896 = vpop.f32.mrb[0].mxu0
      %v897 = vadd.f32 0.0, %v896
      %v898 = vpop.f32.mrb[0].mxu0
      %899 = vdwg.mxu0
      %v900 = vadd.f32 %v819, %v897
      %s901 = scalar_lea.vmem %s368, 24
      %v902 = vld [vmem:[%s901] sm:$0xf]
      %s903 = scalar_lea.vmem %s3, 24
      %v904 = vld [vmem:[%s903] sm:$0xf]
      %v906 = vsel %vm426, %v902, 0
      %v909 = vsel %vm430, %v904, 0
      %911 = vmatprep.subr.mxu0 0.0
      %912 = vmatpush1.msra.mxu0 %v909
      %913 = vmatprep.subr.mxu0 0.0
      %914 = vmatpush1.msra.mxu0 0.0
      %915 = vmatprep.subr.mxu0 0.0
      %916 = vmatpush1.msra.mxu0 0.0
      %917 = vmatprep.subr.mxu0 0.0
      %918 = vmatpush1.msra.mxu0 0.0
      %919 = vmatprep.subr.mxu0 0.0
      %920 = vmatpush1.msra.mxu0 0.0
      %921 = vmatprep.subr.mxu0 0.0
      %922 = vmatpush1.msra.mxu0 0.0
      %923 = vmatprep.subr.mxu0 0.0
      %924 = vmatpush1.msra.mxu0 0.0
      %925 = vmatprep.subr.mxu0 0.0
      %926 = vmatpush1.msra.mxu0 0.0
      %927 = vmatprep.subr.mxu0 0.0
      %928 = vmatpush1.msra.mxu0 0.0
      %929 = vmatprep.subr.mxu0 0.0
      %930 = vmatpush1.msra.mxu0 0.0
      %931 = vmatprep.subr.mxu0 0.0
      %932 = vmatpush1.msra.mxu0 0.0
      %933 = vmatprep.subr.mxu0 0.0
      %934 = vmatpush1.msra.mxu0 0.0
      %935 = vmatprep.subr.mxu0 0.0
      %936 = vmatpush1.msra.mxu0 0.0
      %937 = vmatprep.subr.mxu0 0.0
      %938 = vmatpush1.msra.mxu0 0.0
      %939 = vmatprep.subr.mxu0 0.0
      %940 = vmatpush1.msra.mxu0 0.0
      %941 = vmatprep.subr.mxu0 0.0
      %942 = vmatpush1.msra.mxu0 0.0
      %943 = vmatprep.subr.mxu0 0.0
      %944 = vmatpush1.msra.mxu0 0.0
      %945 = vmatprep.subr.mxu0 0.0
      %946 = vmatpush1.msra.mxu0 0.0
      %947 = vmatprep.subr.mxu0 0.0
      %948 = vmatpush1.msra.mxu0 0.0
      %949 = vmatprep.subr.mxu0 0.0
      %950 = vmatpush1.msra.mxu0 0.0
      %951 = vmatprep.subr.mxu0 0.0
      %952 = vmatpush1.msra.mxu0 0.0
      %953 = vmatprep.subr.mxu0 0.0
      %954 = vmatpush1.msra.mxu0 0.0
      %955 = vmatprep.subr.mxu0 0.0
      %956 = vmatpush1.msra.mxu0 0.0
      %957 = vmatprep.subr.mxu0 0.0
      %958 = vmatpush1.msra.mxu0 0.0
      %959 = vmatprep.subr.mxu0 0.0
      %960 = vmatpush1.msra.mxu0 0.0
      %961 = vmatprep.subr.mxu0 0.0
      %962 = vmatpush1.msra.mxu0 0.0
      %963 = vmatprep.subr.mxu0 0.0
      %964 = vmatpush1.msra.mxu0 0.0
      %965 = vmatprep.subr.mxu0 0.0
      %966 = vmatpush1.msra.mxu0 0.0
      %967 = vmatprep.subr.mxu0 0.0
      %968 = vmatpush1.msra.mxu0 0.0
      %969 = vmatprep.subr.mxu0 0.0
      %970 = vmatpush1.msra.mxu0 0.0
      %971 = vmatprep.subr.mxu0 0.0
      %972 = vmatpush1.msra.mxu0 0.0
      %973 = vmatprep.subr.mxu0 0.0
      %974 = vmatpush1.msra.mxu0 0.0
      %975 = vmatprep.mubr.f32.mxu0 0.0
      %976 = vmatmul.mubr.f32.gmra.mrb[0].mxu0 %v906
      %v977 = vpop.f32.mrb[0].mxu0
      %v978 = vadd.f32 0.0, %v977
      %v979 = vpop.f32.mrb[0].mxu0
      %980 = vdwg.mxu0
      %v981 = vadd.f32 %v900, %v978
      %v982 = vld [vmem:[%s820 + $0x1] sm:$0xf]
      %s983 = scalar_lea.vmem %s3, 28
      %v984 = vld [vmem:[%s983] sm:$0xf]
      %v986 = vsel %vm426, %v982, 0
      %v989 = vsel %vm430, %v984, 0
      %991 = vmatprep.subr.mxu0 0.0
      %992 = vmatpush1.msra.mxu0 %v989
      %993 = vmatprep.subr.mxu0 0.0
      %994 = vmatpush1.msra.mxu0 0.0
      %995 = vmatprep.subr.mxu0 0.0
      %996 = vmatpush1.msra.mxu0 0.0
      %997 = vmatprep.subr.mxu0 0.0
      %998 = vmatpush1.msra.mxu0 0.0
      %999 = vmatprep.subr.mxu0 0.0
      %1000 = vmatpush1.msra.mxu0 0.0
      %1001 = vmatprep.subr.mxu0 0.0
      %1002 = vmatpush1.msra.mxu0 0.0
      %1003 = vmatprep.subr.mxu0 0.0
      %1004 = vmatpush1.msra.mxu0 0.0
      %1005 = vmatprep.subr.mxu0 0.0
      %1006 = vmatpush1.msra.mxu0 0.0
      %1007 = vmatprep.subr.mxu0 0.0
      %1008 = vmatpush1.msra.mxu0 0.0
      %1009 = vmatprep.subr.mxu0 0.0
      %1010 = vmatpush1.msra.mxu0 0.0
      %1011 = vmatprep.subr.mxu0 0.0
      %1012 = vmatpush1.msra.mxu0 0.0
      %1013 = vmatprep.subr.mxu0 0.0
      %1014 = vmatpush1.msra.mxu0 0.0
      %1015 = vmatprep.subr.mxu0 0.0
      %1016 = vmatpush1.msra.mxu0 0.0
      %1017 = vmatprep.subr.mxu0 0.0
      %1018 = vmatpush1.msra.mxu0 0.0
      %1019 = vmatprep.subr.mxu0 0.0
      %1020 = vmatpush1.msra.mxu0 0.0
      %1021 = vmatprep.subr.mxu0 0.0
      %1022 = vmatpush1.msra.mxu0 0.0
      %1023 = vmatprep.subr.mxu0 0.0
      %1024 = vmatpush1.msra.mxu0 0.0
      %1025 = vmatprep.subr.mxu0 0.0
      %1026 = vmatpush1.msra.mxu0 0.0
      %1027 = vmatprep.subr.mxu0 0.0
      %1028 = vmatpush1.msra.mxu0 0.0
      %1029 = vmatprep.subr.mxu0 0.0
      %1030 = vmatpush1.msra.mxu0 0.0
      %1031 = vmatprep.subr.mxu0 0.0
      %1032 = vmatpush1.msra.mxu0 0.0
      %1033 = vmatprep.subr.mxu0 0.0
      %1034 = vmatpush1.msra.mxu0 0.0
      %1035 = vmatprep.subr.mxu0 0.0
      %1036 = vmatpush1.msra.mxu0 0.0
      %1037 = vmatprep.subr.mxu0 0.0
      %1038 = vmatpush1.msra.mxu0 0.0
      %1039 = vmatprep.subr.mxu0 0.0
      %1040 = vmatpush1.msra.mxu0 0.0
      %1041 = vmatprep.subr.mxu0 0.0
      %1042 = vmatpush1.msra.mxu0 0.0
      %1043 = vmatprep.subr.mxu0 0.0
      %1044 = vmatpush1.msra.mxu0 0.0
      %1045 = vmatprep.subr.mxu0 0.0
      %1046 = vmatpush1.msra.mxu0 0.0
      %1047 = vmatprep.subr.mxu0 0.0
      %1048 = vmatpush1.msra.mxu0 0.0
      %1049 = vmatprep.subr.mxu0 0.0
      %1050 = vmatpush1.msra.mxu0 0.0
      %1051 = vmatprep.subr.mxu0 0.0
      %1052 = vmatpush1.msra.mxu0 0.0
      %1053 = vmatprep.subr.mxu0 0.0
      %1054 = vmatpush1.msra.mxu0 0.0
      %1055 = vmatprep.mubr.f32.mxu0 0.0
      %1056 = vmatmul.mubr.f32.gmra.mrb[0].mxu0 %v986
      %v1057 = vpop.f32.mrb[0].mxu0
      %v1058 = vadd.f32 0.0, %v1057
      %v1059 = vpop.f32.mrb[0].mxu0
      %1060 = vdwg.mxu0
      %v1061 = vadd.f32 %v981, %v1058
      %v1062 = vld [vmem:[%s901 + $0x1] sm:$0xf]
      %s1063 = scalar_lea.vmem %s3, 32
      %v1064 = vld [vmem:[%s1063] sm:$0xf]
      %v1066 = vsel %vm426, %v1062, 0
      %v1069 = vsel %vm430, %v1064, 0
      %1071 = vmatprep.subr.mxu0 0.0
      %1072 = vmatpush1.msra.mxu0 %v1069
      %1073 = vmatprep.subr.mxu0 0.0
      %1074 = vmatpush1.msra.mxu0 0.0
      %1075 = vmatprep.subr.mxu0 0.0
      %1076 = vmatpush1.msra.mxu0 0.0
      %1077 = vmatprep.subr.mxu0 0.0
      %1078 = vmatpush1.msra.mxu0 0.0
      %1079 = vmatprep.subr.mxu0 0.0
      %1080 = vmatpush1.msra.mxu0 0.0
      %1081 = vmatprep.subr.mxu0 0.0
      %1082 = vmatpush1.msra.mxu0 0.0
      %1083 = vmatprep.subr.mxu0 0.0
      %1084 = vmatpush1.msra.mxu0 0.0
      %1085 = vmatprep.subr.mxu0 0.0
      %1086 = vmatpush1.msra.mxu0 0.0
      %1087 = vmatprep.subr.mxu0 0.0
      %1088 = vmatpush1.msra.mxu0 0.0
      %1089 = vmatprep.subr.mxu0 0.0
      %1090 = vmatpush1.msra.mxu0 0.0
      %1091 = vmatprep.subr.mxu0 0.0
      %1092 = vmatpush1.msra.mxu0 0.0
      %1093 = vmatprep.subr.mxu0 0.0
      %1094 = vmatpush1.msra.mxu0 0.0
      %1095 = vmatprep.subr.mxu0 0.0
      %1096 = vmatpush1.msra.mxu0 0.0
      %1097 = vmatprep.subr.mxu0 0.0
      %1098 = vmatpush1.msra.mxu0 0.0
      %1099 = vmatprep.subr.mxu0 0.0
      %1100 = vmatpush1.msra.mxu0 0.0
      %1101 = vmatprep.subr.mxu0 0.0
      %1102 = vmatpush1.msra.mxu0 0.0
      %1103 = vmatprep.subr.mxu0 0.0
      %1104 = vmatpush1.msra.mxu0 0.0
      %1105 = vmatprep.subr.mxu0 0.0
      %1106 = vmatpush1.msra.mxu0 0.0
      %1107 = vmatprep.subr.mxu0 0.0
      %1108 = vmatpush1.msra.mxu0 0.0
      %1109 = vmatprep.subr.mxu0 0.0
      %1110 = vmatpush1.msra.mxu0 0.0
      %1111 = vmatprep.subr.mxu0 0.0
      %1112 = vmatpush1.msra.mxu0 0.0
      %1113 = vmatprep.subr.mxu0 0.0
      %1114 = vmatpush1.msra.mxu0 0.0
      %1115 = vmatprep.subr.mxu0 0.0
      %1116 = vmatpush1.msra.mxu0 0.0
      %1117 = vmatprep.subr.mxu0 0.0
      %1118 = vmatpush1.msra.mxu0 0.0
      %1119 = vmatprep.subr.mxu0 0.0
      %1120 = vmatpush1.msra.mxu0 0.0
      %1121 = vmatprep.subr.mxu0 0.0
      %1122 = vmatpush1.msra.mxu0 0.0
      %1123 = vmatprep.subr.mxu0 0.0
      %1124 = vmatpush1.msra.mxu0 0.0
      %1125 = vmatprep.subr.mxu0 0.0
      %1126 = vmatpush1.msra.mxu0 0.0
      %1127 = vmatprep.subr.mxu0 0.0
      %1128 = vmatpush1.msra.mxu0 0.0
      %1129 = vmatprep.subr.mxu0 0.0
      %1130 = vmatpush1.msra.mxu0 0.0
      %1131 = vmatprep.subr.mxu0 0.0
      %1132 = vmatpush1.msra.mxu0 0.0
      %1133 = vmatprep.subr.mxu0 0.0
      %1134 = vmatpush1.msra.mxu0 0.0
      %1135 = vmatprep.mubr.f32.mxu0 0.0
      %1136 = vmatmul.mubr.f32.gmra.mrb[0].mxu0 %v1066
      %v1137 = vpop.f32.mrb[0].mxu0
      %v1138 = vadd.f32 0.0, %v1137
      %v1139 = vpop.f32.mrb[0].mxu0
      %1140 = vdwg.mxu0
      %v1141 = vadd.f32 %v1061, %v1138
      %v1142 = vld [vmem:[%s820 + $0x2] sm:$0xf]
      %s1143 = scalar_lea.vmem %s3, 36
      %v1144 = vld [vmem:[%s1143] sm:$0xf]
      %v1146 = vsel %vm426, %v1142, 0
      %v1149 = vsel %vm430, %v1144, 0
      %1151 = vmatprep.subr.mxu0 0.0
      %1152 = vmatpush1.msra.mxu0 %v1149
      %1153 = vmatprep.subr.mxu0 0.0
      %1154 = vmatpush1.msra.mxu0 0.0
      %1155 = vmatprep.subr.mxu0 0.0
      %1156 = vmatpush1.msra.mxu0 0.0
      %1157 = vmatprep.subr.mxu0 0.0
      %1158 = vmatpush1.msra.mxu0 0.0
      %1159 = vmatprep.subr.mxu0 0.0
      %1160 = vmatpush1.msra.mxu0 0.0
      %1161 = vmatprep.subr.mxu0 0.0
      %1162 = vmatpush1.msra.mxu0 0.0
      %1163 = vmatprep.subr.mxu0 0.0
      %1164 = vmatpush1.msra.mxu0 0.0
      %1165 = vmatprep.subr.mxu0 0.0
      %1166 = vmatpush1.msra.mxu0 0.0
      %1167 = vmatprep.subr.mxu0 0.0
      %1168 = vmatpush1.msra.mxu0 0.0
      %1169 = vmatprep.subr.mxu0 0.0
      %1170 = vmatpush1.msra.mxu0 0.0
      %1171 = vmatprep.subr.mxu0 0.0
      %1172 = vmatpush1.msra.mxu0 0.0
      %1173 = vmatprep.subr.mxu0 0.0
      %1174 = vmatpush1.msra.mxu0 0.0
      %1175 = vmatprep.subr.mxu0 0.0
      %1176 = vmatpush1.msra.mxu0 0.0
      %1177 = vmatprep.subr.mxu0 0.0
      %1178 = vmatpush1.msra.mxu0 0.0
      %1179 = vmatprep.subr.mxu0 0.0
      %1180 = vmatpush1.msra.mxu0 0.0
      %1181 = vmatprep.subr.mxu0 0.0
      %1182 = vmatpush1.msra.mxu0 0.0
      %1183 = vmatprep.subr.mxu0 0.0
      %1184 = vmatpush1.msra.mxu0 0.0
      %1185 = vmatprep.subr.mxu0 0.0
      %1186 = vmatpush1.msra.mxu0 0.0
      %1187 = vmatprep.subr.mxu0 0.0
      %1188 = vmatpush1.msra.mxu0 0.0
      %1189 = vmatprep.subr.mxu0 0.0
      %1190 = vmatpush1.msra.mxu0 0.0
      %1191 = vmatprep.subr.mxu0 0.0
      %1192 = vmatpush1.msra.mxu0 0.0
      %1193 = vmatprep.subr.mxu0 0.0
      %1194 = vmatpush1.msra.mxu0 0.0
      %1195 = vmatprep.subr.mxu0 0.0
      %1196 = vmatpush1.msra.mxu0 0.0
      %1197 = vmatprep.subr.mxu0 0.0
      %1198 = vmatpush1.msra.mxu0 0.0
      %1199 = vmatprep.subr.mxu0 0.0
      %1200 = vmatpush1.msra.mxu0 0.0
      %1201 = vmatprep.subr.mxu0 0.0
      %1202 = vmatpush1.msra.mxu0 0.0
      %1203 = vmatprep.subr.mxu0 0.0
      %1204 = vmatpush1.msra.mxu0 0.0
      %1205 = vmatprep.subr.mxu0 0.0
      %1206 = vmatpush1.msra.mxu0 0.0
      %1207 = vmatprep.subr.mxu0 0.0
      %1208 = vmatpush1.msra.mxu0 0.0
      %1209 = vmatprep.subr.mxu0 0.0
      %1210 = vmatpush1.msra.mxu0 0.0
      %1211 = vmatprep.subr.mxu0 0.0
      %1212 = vmatpush1.msra.mxu0 0.0
      %1213 = vmatprep.subr.mxu0 0.0
      %1214 = vmatpush1.msra.mxu0 0.0
      %1215 = vmatprep.mubr.f32.mxu0 0.0
      %1216 = vmatmul.mubr.f32.gmra.mrb[0].mxu0 %v1146
      %v1217 = vpop.f32.mrb[0].mxu0
      %v1218 = vadd.f32 0.0, %v1217
      %v1219 = vpop.f32.mrb[0].mxu0
      %1220 = vdwg.mxu0
      %v1221 = vadd.f32 %v1141, %v1218
      %v1222 = vld [vmem:[%s380] sm:$0xf]
      %s1223 = scalar_lea.vmem %s3, 40
      %v1224 = vld [vmem:[%s1223] sm:$0xf]
      %v1226 = vsel %vm426, %v1222, 0
      %v1229 = vsel %vm430, %v1224, 0
      %1231 = vmatprep.subr.mxu0 0.0
      %1232 = vmatpush1.msra.mxu0 %v1229
      %1233 = vmatprep.subr.mxu0 0.0
      %1234 = vmatpush1.msra.mxu0 0.0
      %1235 = vmatprep.subr.mxu0 0.0
      %1236 = vmatpush1.msra.mxu0 0.0
      %1237 = vmatprep.subr.mxu0 0.0
      %1238 = vmatpush1.msra.mxu0 0.0
      %1239 = vmatprep.subr.mxu0 0.0
      %1240 = vmatpush1.msra.mxu0 0.0
      %1241 = vmatprep.subr.mxu0 0.0
      %1242 = vmatpush1.msra.mxu0 0.0
      %1243 = vmatprep.subr.mxu0 0.0
      %1244 = vmatpush1.msra.mxu0 0.0
      %1245 = vmatprep.subr.mxu0 0.0
      %1246 = vmatpush1.msra.mxu0 0.0
      %1247 = vmatprep.subr.mxu0 0.0
      %1248 = vmatpush1.msra.mxu0 0.0
      %1249 = vmatprep.subr.mxu0 0.0
      %1250 = vmatpush1.msra.mxu0 0.0
      %1251 = vmatprep.subr.mxu0 0.0
      %1252 = vmatpush1.msra.mxu0 0.0
      %1253 = vmatprep.subr.mxu0 0.0
      %1254 = vmatpush1.msra.mxu0 0.0
      %1255 = vmatprep.subr.mxu0 0.0
      %1256 = vmatpush1.msra.mxu0 0.0
      %1257 = vmatprep.subr.mxu0 0.0
      %1258 = vmatpush1.msra.mxu0 0.0
      %1259 = vmatprep.subr.mxu0 0.0
      %1260 = vmatpush1.msra.mxu0 0.0
      %1261 = vmatprep.subr.mxu0 0.0
      %1262 = vmatpush1.msra.mxu0 0.0
      %1263 = vmatprep.subr.mxu0 0.0
      %1264 = vmatpush1.msra.mxu0 0.0
      %1265 = vmatprep.subr.mxu0 0.0
      %1266 = vmatpush1.msra.mxu0 0.0
      %1267 = vmatprep.subr.mxu0 0.0
      %1268 = vmatpush1.msra.mxu0 0.0
      %1269 = vmatprep.subr.mxu0 0.0
      %1270 = vmatpush1.msra.mxu0 0.0
      %1271 = vmatprep.subr.mxu0 0.0
      %1272 = vmatpush1.msra.mxu0 0.0
      %1273 = vmatprep.subr.mxu0 0.0
      %1274 = vmatpush1.msra.mxu0 0.0
      %1275 = vmatprep.subr.mxu0 0.0
      %1276 = vmatpush1.msra.mxu0 0.0
      %1277 = vmatprep.subr.mxu0 0.0
      %1278 = vmatpush1.msra.mxu0 0.0
      %1279 = vmatprep.subr.mxu0 0.0
      %1280 = vmatpush1.msra.mxu0 0.0
      %1281 = vmatprep.subr.mxu0 0.0
      %1282 = vmatpush1.msra.mxu0 0.0
      %1283 = vmatprep.subr.mxu0 0.0
      %1284 = vmatpush1.msra.mxu0 0.0
      %1285 = vmatprep.subr.mxu0 0.0
      %1286 = vmatpush1.msra.mxu0 0.0
      %1287 = vmatprep.subr.mxu0 0.0
      %1288 = vmatpush1.msra.mxu0 0.0
      %1289 = vmatprep.subr.mxu0 0.0
      %1290 = vmatpush1.msra.mxu0 0.0
      %1291 = vmatprep.subr.mxu0 0.0
      %1292 = vmatpush1.msra.mxu0 0.0
      %1293 = vmatprep.subr.mxu0 0.0
      %1294 = vmatpush1.msra.mxu0 0.0
      %1295 = vmatprep.mubr.f32.mxu0 0.0
      %1296 = vmatmul.mubr.f32.gmra.mrb[0].mxu0 %v1226
      %v1297 = vpop.f32.mrb[0].mxu0
      %v1298 = vadd.f32 0.0, %v1297
      %v1299 = vpop.f32.mrb[0].mxu0
      %1300 = vdwg.mxu0
      %v1301 = vadd.f32 %v1221, %v1298
      %s1302 = scalar_lea.vmem %s380, 8
      %v1303 = vld [vmem:[%s1302] sm:$0xf]
      %s1304 = scalar_lea.vmem %s3, 44
      %v1305 = vld [vmem:[%s1304] sm:$0xf]
      %v1307 = vsel %vm426, %v1303, 0
      %v1310 = vsel %vm430, %v1305, 0
      %1312 = vmatprep.subr.mxu0 0.0
      %1313 = vmatpush1.msra.mxu0 %v1310
      %1314 = vmatprep.subr.mxu0 0.0
      %1315 = vmatpush1.msra.mxu0 0.0
      %1316 = vmatprep.subr.mxu0 0.0
      %1317 = vmatpush1.msra.mxu0 0.0
      %1318 = vmatprep.subr.mxu0 0.0
      %1319 = vmatpush1.msra.mxu0 0.0
      %1320 = vmatprep.subr.mxu0 0.0
      %1321 = vmatpush1.msra.mxu0 0.0
      %1322 = vmatprep.subr.mxu0 0.0
      %1323 = vmatpush1.msra.mxu0 0.0
      %1324 = vmatprep.subr.mxu0 0.0
      %1325 = vmatpush1.msra.mxu0 0.0
      %1326 = vmatprep.subr.mxu0 0.0
      %1327 = vmatpush1.msra.mxu0 0.0
      %1328 = vmatprep.subr.mxu0 0.0
      %1329 = vmatpush1.msra.mxu0 0.0
      %1330 = vmatprep.subr.mxu0 0.0
      %1331 = vmatpush1.msra.mxu0 0.0
      %1332 = vmatprep.subr.mxu0 0.0
      %1333 = vmatpush1.msra.mxu0 0.0
      %1334 = vmatprep.subr.mxu0 0.0
      %1335 = vmatpush1.msra.mxu0 0.0
      %1336 = vmatprep.subr.mxu0 0.0
      %1337 = vmatpush1.msra.mxu0 0.0
      %1338 = vmatprep.subr.mxu0 0.0
      %1339 = vmatpush1.msra.mxu0 0.0
      %1340 = vmatprep.subr.mxu0 0.0
      %1341 = vmatpush1.msra.mxu0 0.0
      %1342 = vmatprep.subr.mxu0 0.0
      %1343 = vmatpush1.msra.mxu0 0.0
      %1344 = vmatprep.subr.mxu0 0.0
      %1345 = vmatpush1.msra.mxu0 0.0
      %1346 = vmatprep.subr.mxu0 0.0
      %1347 = vmatpush1.msra.mxu0 0.0
      %1348 = vmatprep.subr.mxu0 0.0
      %1349 = vmatpush1.msra.mxu0 0.0
      %1350 = vmatprep.subr.mxu0 0.0
      %1351 = vmatpush1.msra.mxu0 0.0
      %1352 = vmatprep.subr.mxu0 0.0
      %1353 = vmatpush1.msra.mxu0 0.0
      %1354 = vmatprep.subr.mxu0 0.0
      %1355 = vmatpush1.msra.mxu0 0.0
      %1356 = vmatprep.subr.mxu0 0.0
      %1357 = vmatpush1.msra.mxu0 0.0
      %1358 = vmatprep.subr.mxu0 0.0
      %1359 = vmatpush1.msra.mxu0 0.0
      %1360 = vmatprep.subr.mxu0 0.0
      %1361 = vmatpush1.msra.mxu0 0.0
      %1362 = vmatprep.subr.mxu0 0.0
      %1363 = vmatpush1.msra.mxu0 0.0
      %1364 = vmatprep.subr.mxu0 0.0
      %1365 = vmatpush1.msra.mxu0 0.0
      %1366 = vmatprep.subr.mxu0 0.0
      %1367 = vmatpush1.msra.mxu0 0.0
      %1368 = vmatprep.subr.mxu0 0.0
      %1369 = vmatpush1.msra.mxu0 0.0
      %1370 = vmatprep.subr.mxu0 0.0
      %1371 = vmatpush1.msra.mxu0 0.0
      %1372 = vmatprep.subr.mxu0 0.0
      %1373 = vmatpush1.msra.mxu0 0.0
      %1374 = vmatprep.subr.mxu0 0.0
      %1375 = vmatpush1.msra.mxu0 0.0
      %1376 = vmatprep.mubr.f32.mxu0 0.0
      %1377 = vmatmul.mubr.f32.gmra.mrb[0].mxu0 %v1307
      %v1378 = vpop.f32.mrb[0].mxu0
      %v1379 = vadd.f32 0.0, %v1378
      %v1380 = vpop.f32.mrb[0].mxu0
      %1381 = vdwg.mxu0
      %v1382 = vadd.f32 %v1301, %v1379
      %v1383 = vld [vmem:[%s380 + $0x1] sm:$0xf]
      %s1384 = scalar_lea.vmem %s3, 48
      %v1385 = vld [vmem:[%s1384] sm:$0xf]
      %v1387 = vsel %vm426, %v1383, 0
      %v1390 = vsel %vm430, %v1385, 0
      %1392 = vmatprep.subr.mxu0 0.0
      %1393 = vmatpush1.msra.mxu0 %v1390
      %1394 = vmatprep.subr.mxu0 0.0
      %1395 = vmatpush1.msra.mxu0 0.0
      %1396 = vmatprep.subr.mxu0 0.0
      %1397 = vmatpush1.msra.mxu0 0.0
      %1398 = vmatprep.subr.mxu0 0.0
      %1399 = vmatpush1.msra.mxu0 0.0
      %1400 = vmatprep.subr.mxu0 0.0
      %1401 = vmatpush1.msra.mxu0 0.0
      %1402 = vmatprep.subr.mxu0 0.0
      %1403 = vmatpush1.msra.mxu0 0.0
      %1404 = vmatprep.subr.mxu0 0.0
      %1405 = vmatpush1.msra.mxu0 0.0
      %1406 = vmatprep.subr.mxu0 0.0
      %1407 = vmatpush1.msra.mxu0 0.0
      %1408 = vmatprep.subr.mxu0 0.0
      %1409 = vmatpush1.msra.mxu0 0.0
      %1410 = vmatprep.subr.mxu0 0.0
      %1411 = vmatpush1.msra.mxu0 0.0
      %1412 = vmatprep.subr.mxu0 0.0
      %1413 = vmatpush1.msra.mxu0 0.0
      %1414 = vmatprep.subr.mxu0 0.0
      %1415 = vmatpush1.msra.mxu0 0.0
      %1416 = vmatprep.subr.mxu0 0.0
      %1417 = vmatpush1.msra.mxu0 0.0
      %1418 = vmatprep.subr.mxu0 0.0
      %1419 = vmatpush1.msra.mxu0 0.0
      %1420 = vmatprep.subr.mxu0 0.0
      %1421 = vmatpush1.msra.mxu0 0.0
      %1422 = vmatprep.subr.mxu0 0.0
      %1423 = vmatpush1.msra.mxu0 0.0
      %1424 = vmatprep.subr.mxu0 0.0
      %1425 = vmatpush1.msra.mxu0 0.0
      %1426 = vmatprep.subr.mxu0 0.0
      %1427 = vmatpush1.msra.mxu0 0.0
      %1428 = vmatprep.subr.mxu0 0.0
      %1429 = vmatpush1.msra.mxu0 0.0
      %1430 = vmatprep.subr.mxu0 0.0
      %1431 = vmatpush1.msra.mxu0 0.0
      %1432 = vmatprep.subr.mxu0 0.0
      %1433 = vmatpush1.msra.mxu0 0.0
      %1434 = vmatprep.subr.mxu0 0.0
      %1435 = vmatpush1.msra.mxu0 0.0
      %1436 = vmatprep.subr.mxu0 0.0
      %1437 = vmatpush1.msra.mxu0 0.0
      %1438 = vmatprep.subr.mxu0 0.0
      %1439 = vmatpush1.msra.mxu0 0.0
      %1440 = vmatprep.subr.mxu0 0.0
      %1441 = vmatpush1.msra.mxu0 0.0
      %1442 = vmatprep.subr.mxu0 0.0
      %1443 = vmatpush1.msra.mxu0 0.0
      %1444 = vmatprep.subr.mxu0 0.0
      %1445 = vmatpush1.msra.mxu0 0.0
      %1446 = vmatprep.subr.mxu0 0.0
      %1447 = vmatpush1.msra.mxu0 0.0
      %1448 = vmatprep.subr.mxu0 0.0
      %1449 = vmatpush1.msra.mxu0 0.0
      %1450 = vmatprep.subr.mxu0 0.0
      %1451 = vmatpush1.msra.mxu0 0.0
      %1452 = vmatprep.subr.mxu0 0.0
      %1453 = vmatpush1.msra.mxu0 0.0
      %1454 = vmatprep.subr.mxu0 0.0
      %1455 = vmatpush1.msra.mxu0 0.0
      %1456 = vmatprep.mubr.f32.mxu0 0.0
      %1457 = vmatmul.mubr.f32.gmra.mrb[0].mxu0 %v1387
      %v1458 = vpop.f32.mrb[0].mxu0
      %v1459 = vadd.f32 0.0, %v1458
      %v1460 = vpop.f32.mrb[0].mxu0
      %1461 = vdwg.mxu0
      %v1462 = vadd.f32 %v1382, %v1459
      %v1463 = vld [vmem:[%s1302 + $0x1] sm:$0xf]
      %s1464 = scalar_lea.vmem %s3, 52
      %v1465 = vld [vmem:[%s1464] sm:$0xf]
      %v1467 = vsel %vm426, %v1463, 0
      %v1470 = vsel %vm430, %v1465, 0
      %1472 = vmatprep.subr.mxu0 0.0
      %1473 = vmatpush1.msra.mxu0 %v1470
      %1474 = vmatprep.subr.mxu0 0.0
      %1475 = vmatpush1.msra.mxu0 0.0
      %1476 = vmatprep.subr.mxu0 0.0
      %1477 = vmatpush1.msra.mxu0 0.0
      %1478 = vmatprep.subr.mxu0 0.0
      %1479 = vmatpush1.msra.mxu0 0.0
      %1480 = vmatprep.subr.mxu0 0.0
      %1481 = vmatpush1.msra.mxu0 0.0
      %1482 = vmatprep.subr.mxu0 0.0
      %1483 = vmatpush1.msra.mxu0 0.0
      %1484 = vmatprep.subr.mxu0 0.0
      %1485 = vmatpush1.msra.mxu0 0.0
      %1486 = vmatprep.subr.mxu0 0.0
      %1487 = vmatpush1.msra.mxu0 0.0
      %1488 = vmatprep.subr.mxu0 0.0
      %1489 = vmatpush1.msra.mxu0 0.0
      %1490 = vmatprep.subr.mxu0 0.0
      %1491 = vmatpush1.msra.mxu0 0.0
      %1492 = vmatprep.subr.mxu0 0.0
      %1493 = vmatpush1.msra.mxu0 0.0
      %1494 = vmatprep.subr.mxu0 0.0
      %1495 = vmatpush1.msra.mxu0 0.0
      %1496 = vmatprep.subr.mxu0 0.0
      %1497 = vmatpush1.msra.mxu0 0.0
      %1498 = vmatprep.subr.mxu0 0.0
      %1499 = vmatpush1.msra.mxu0 0.0
      %1500 = vmatprep.subr.mxu0 0.0
      %1501 = vmatpush1.msra.mxu0 0.0
      %1502 = vmatprep.subr.mxu0 0.0
      %1503 = vmatpush1.msra.mxu0 0.0
      %1504 = vmatprep.subr.mxu0 0.0
      %1505 = vmatpush1.msra.mxu0 0.0
      %1506 = vmatprep.subr.mxu0 0.0
      %1507 = vmatpush1.msra.mxu0 0.0
      %1508 = vmatprep.subr.mxu0 0.0
      %1509 = vmatpush1.msra.mxu0 0.0
      %1510 = vmatprep.subr.mxu0 0.0
      %1511 = vmatpush1.msra.mxu0 0.0
      %1512 = vmatprep.subr.mxu0 0.0
      %1513 = vmatpush1.msra.mxu0 0.0
      %1514 = vmatprep.subr.mxu0 0.0
      %1515 = vmatpush1.msra.mxu0 0.0
      %1516 = vmatprep.subr.mxu0 0.0
      %1517 = vmatpush1.msra.mxu0 0.0
      %1518 = vmatprep.subr.mxu0 0.0
      %1519 = vmatpush1.msra.mxu0 0.0
      %1520 = vmatprep.subr.mxu0 0.0
      %1521 = vmatpush1.msra.mxu0 0.0
      %1522 = vmatprep.subr.mxu0 0.0
      %1523 = vmatpush1.msra.mxu0 0.0
      %1524 = vmatprep.subr.mxu0 0.0
      %1525 = vmatpush1.msra.mxu0 0.0
      %1526 = vmatprep.subr.mxu0 0.0
      %1527 = vmatpush1.msra.mxu0 0.0
      %1528 = vmatprep.subr.mxu0 0.0
      %1529 = vmatpush1.msra.mxu0 0.0
      %1530 = vmatprep.subr.mxu0 0.0
      %1531 = vmatpush1.msra.mxu0 0.0
      %1532 = vmatprep.subr.mxu0 0.0
      %1533 = vmatpush1.msra.mxu0 0.0
      %1534 = vmatprep.subr.mxu0 0.0
      %1535 = vmatpush1.msra.mxu0 0.0
      %1536 = vmatprep.mubr.f32.mxu0 0.0
      %1537 = vmatmul.mubr.f32.gmra.mrb[0].mxu0 %v1467
      %v1538 = vpop.f32.mrb[0].mxu0
      %v1539 = vadd.f32 0.0, %v1538
      %v1540 = vpop.f32.mrb[0].mxu0
      %1541 = vdwg.mxu0
      %v1542 = vadd.f32 %v1462, %v1539
      %v1543 = vld [vmem:[%s380 + $0x2] sm:$0xf]
      %s1544 = scalar_lea.vmem %s3, 56
      %v1545 = vld [vmem:[%s1544] sm:$0xf]
      %v1547 = vsel %vm426, %v1543, 0
      %v1550 = vsel %vm430, %v1545, 0
      %1552 = vmatprep.subr.mxu0 0.0
      %1553 = vmatpush1.msra.mxu0 %v1550
      %1554 = vmatprep.subr.mxu0 0.0
      %1555 = vmatpush1.msra.mxu0 0.0
      %1556 = vmatprep.subr.mxu0 0.0
      %1557 = vmatpush1.msra.mxu0 0.0
      %1558 = vmatprep.subr.mxu0 0.0
      %1559 = vmatpush1.msra.mxu0 0.0
      %1560 = vmatprep.subr.mxu0 0.0
      %1561 = vmatpush1.msra.mxu0 0.0
      %1562 = vmatprep.subr.mxu0 0.0
      %1563 = vmatpush1.msra.mxu0 0.0
      %1564 = vmatprep.subr.mxu0 0.0
      %1565 = vmatpush1.msra.mxu0 0.0
      %1566 = vmatprep.subr.mxu0 0.0
      %1567 = vmatpush1.msra.mxu0 0.0
      %1568 = vmatprep.subr.mxu0 0.0
      %1569 = vmatpush1.msra.mxu0 0.0
      %1570 = vmatprep.subr.mxu0 0.0
      %1571 = vmatpush1.msra.mxu0 0.0
      %1572 = vmatprep.subr.mxu0 0.0
      %1573 = vmatpush1.msra.mxu0 0.0
      %1574 = vmatprep.subr.mxu0 0.0
      %1575 = vmatpush1.msra.mxu0 0.0
      %1576 = vmatprep.subr.mxu0 0.0
      %1577 = vmatpush1.msra.mxu0 0.0
      %1578 = vmatprep.subr.mxu0 0.0
      %1579 = vmatpush1.msra.mxu0 0.0
      %1580 = vmatprep.subr.mxu0 0.0
      %1581 = vmatpush1.msra.mxu0 0.0
      %1582 = vmatprep.subr.mxu0 0.0
      %1583 = vmatpush1.msra.mxu0 0.0
      %1584 = vmatprep.subr.mxu0 0.0
      %1585 = vmatpush1.msra.mxu0 0.0
      %1586 = vmatprep.subr.mxu0 0.0
      %1587 = vmatpush1.msra.mxu0 0.0
      %1588 = vmatprep.subr.mxu0 0.0
      %1589 = vmatpush1.msra.mxu0 0.0
      %1590 = vmatprep.subr.mxu0 0.0
      %1591 = vmatpush1.msra.mxu0 0.0
      %1592 = vmatprep.subr.mxu0 0.0
      %1593 = vmatpush1.msra.mxu0 0.0
      %1594 = vmatprep.subr.mxu0 0.0
      %1595 = vmatpush1.msra.mxu0 0.0
      %1596 = vmatprep.subr.mxu0 0.0
      %1597 = vmatpush1.msra.mxu0 0.0
      %1598 = vmatprep.subr.mxu0 0.0
      %1599 = vmatpush1.msra.mxu0 0.0
      %1600 = vmatprep.subr.mxu0 0.0
      %1601 = vmatpush1.msra.mxu0 0.0
      %1602 = vmatprep.subr.mxu0 0.0
      %1603 = vmatpush1.msra.mxu0 0.0
      %1604 = vmatprep.subr.mxu0 0.0
      %1605 = vmatpush1.msra.mxu0 0.0
      %1606 = vmatprep.subr.mxu0 0.0
      %1607 = vmatpush1.msra.mxu0 0.0
      %1608 = vmatprep.subr.mxu0 0.0
      %1609 = vmatpush1.msra.mxu0 0.0
      %1610 = vmatprep.subr.mxu0 0.0
      %1611 = vmatpush1.msra.mxu0 0.0
      %1612 = vmatprep.subr.mxu0 0.0
      %1613 = vmatpush1.msra.mxu0 0.0
      %1614 = vmatprep.subr.mxu0 0.0
      %1615 = vmatpush1.msra.mxu0 0.0
      %1616 = vmatprep.mubr.f32.mxu0 0.0
      %1617 = vmatmul.mubr.f32.gmra.mrb[0].mxu0 %v1547
      %v1618 = vpop.f32.mrb[0].mxu0
      %v1619 = vadd.f32 0.0, %v1618
      %v1620 = vpop.f32.mrb[0].mxu0
      %1621 = vdwg.mxu0
      %v1622 = vadd.f32 %v1542, %v1619
      %s1623 = scalar_lea.vmem %s380, 16
      %v1624 = vld [vmem:[%s1623] sm:$0xf]
      %s1625 = scalar_lea.vmem %s3, 60
      %v1626 = vld [vmem:[%s1625] sm:$0xf]
      %v1628 = vsel %vm426, %v1624, 0
      %v1631 = vsel %vm430, %v1626, 0
      %1633 = vmatprep.subr.mxu0 0.0
      %1634 = vmatpush1.msra.mxu0 %v1631
      %1635 = vmatprep.subr.mxu0 0.0
      %1636 = vmatpush1.msra.mxu0 0.0
      %1637 = vmatprep.subr.mxu0 0.0
      %1638 = vmatpush1.msra.mxu0 0.0
      %1639 = vmatprep.subr.mxu0 0.0
      %1640 = vmatpush1.msra.mxu0 0.0
      %1641 = vmatprep.subr.mxu0 0.0
      %1642 = vmatpush1.msra.mxu0 0.0
      %1643 = vmatprep.subr.mxu0 0.0
      %1644 = vmatpush1.msra.mxu0 0.0
      %1645 = vmatprep.subr.mxu0 0.0
      %1646 = vmatpush1.msra.mxu0 0.0
      %1647 = vmatprep.subr.mxu0 0.0
      %1648 = vmatpush1.msra.mxu0 0.0
      %1649 = vmatprep.subr.mxu0 0.0
      %1650 = vmatpush1.msra.mxu0 0.0
      %1651 = vmatprep.subr.mxu0 0.0
      %1652 = vmatpush1.msra.mxu0 0.0
      %1653 = vmatprep.subr.mxu0 0.0
      %1654 = vmatpush1.msra.mxu0 0.0
      %1655 = vmatprep.subr.mxu0 0.0
      %1656 = vmatpush1.msra.mxu0 0.0
      %1657 = vmatprep.subr.mxu0 0.0
      %1658 = vmatpush1.msra.mxu0 0.0
      %1659 = vmatprep.subr.mxu0 0.0
      %1660 = vmatpush1.msra.mxu0 0.0
      %1661 = vmatprep.subr.mxu0 0.0
      %1662 = vmatpush1.msra.mxu0 0.0
      %1663 = vmatprep.subr.mxu0 0.0
      %1664 = vmatpush1.msra.mxu0 0.0
      %1665 = vmatprep.subr.mxu0 0.0
      %1666 = vmatpush1.msra.mxu0 0.0
      %1667 = vmatprep.subr.mxu0 0.0
      %1668 = vmatpush1.msra.mxu0 0.0
      %1669 = vmatprep.subr.mxu0 0.0
      %1670 = vmatpush1.msra.mxu0 0.0
      %1671 = vmatprep.subr.mxu0 0.0
      %1672 = vmatpush1.msra.mxu0 0.0
      %1673 = vmatprep.subr.mxu0 0.0
      %1674 = vmatpush1.msra.mxu0 0.0
      %1675 = vmatprep.subr.mxu0 0.0
      %1676 = vmatpush1.msra.mxu0 0.0
      %1677 = vmatprep.subr.mxu0 0.0
      %1678 = vmatpush1.msra.mxu0 0.0
      %1679 = vmatprep.subr.mxu0 0.0
      %1680 = vmatpush1.msra.mxu0 0.0
      %1681 = vmatprep.subr.mxu0 0.0
      %1682 = vmatpush1.msra.mxu0 0.0
      %1683 = vmatprep.subr.mxu0 0.0
      %1684 = vmatpush1.msra.mxu0 0.0
      %1685 = vmatprep.subr.mxu0 0.0
      %1686 = vmatpush1.msra.mxu0 0.0
      %1687 = vmatprep.subr.mxu0 0.0
      %1688 = vmatpush1.msra.mxu0 0.0
      %1689 = vmatprep.subr.mxu0 0.0
      %1690 = vmatpush1.msra.mxu0 0.0
      %1691 = vmatprep.subr.mxu0 0.0
      %1692 = vmatpush1.msra.mxu0 0.0
      %1693 = vmatprep.subr.mxu0 0.0
      %1694 = vmatpush1.msra.mxu0 0.0
      %1695 = vmatprep.subr.mxu0 0.0
      %1696 = vmatpush1.msra.mxu0 0.0
      %1697 = vmatprep.mubr.f32.mxu0 0.0
      %1698 = vmatmul.mubr.f32.gmra.mrb[0].mxu0 %v1628
      %v1699 = vpop.f32.mrb[0].mxu0
      %v1700 = vadd.f32 0.0, %v1699
      %v1701 = vpop.f32.mrb[0].mxu0
      %1702 = vdwg.mxu0
      %v1703 = vadd.f32 %v1622, %v1700
      %s1704 = scalar_lea.vmem %s380, 24
      %v1705 = vld [vmem:[%s1704] sm:$0xf]
      %s1706 = scalar_lea.vmem %s3, 64
      %v1707 = vld [vmem:[%s1706] sm:$0xf]
      %v1709 = vsel %vm426, %v1705, 0
      %v1712 = vsel %vm430, %v1707, 0
      %1714 = vmatprep.subr.mxu0 0.0
      %1715 = vmatpush1.msra.mxu0 %v1712
      %1716 = vmatprep.subr.mxu0 0.0
      %1717 = vmatpush1.msra.mxu0 0.0
      %1718 = vmatprep.subr.mxu0 0.0
      %1719 = vmatpush1.msra.mxu0 0.0
      %1720 = vmatprep.subr.mxu0 0.0
      %1721 = vmatpush1.msra.mxu0 0.0
      %1722 = vmatprep.subr.mxu0 0.0
      %1723 = vmatpush1.msra.mxu0 0.0
      %1724 = vmatprep.subr.mxu0 0.0
      %1725 = vmatpush1.msra.mxu0 0.0
      %1726 = vmatprep.subr.mxu0 0.0
      %1727 = vmatpush1.msra.mxu0 0.0
      %1728 = vmatprep.subr.mxu0 0.0
      %1729 = vmatpush1.msra.mxu0 0.0
      %1730 = vmatprep.subr.mxu0 0.0
      %1731 = vmatpush1.msra.mxu0 0.0
      %1732 = vmatprep.subr.mxu0 0.0
      %1733 = vmatpush1.msra.mxu0 0.0
      %1734 = vmatprep.subr.mxu0 0.0
      %1735 = vmatpush1.msra.mxu0 0.0
      %1736 = vmatprep.subr.mxu0 0.0
      %1737 = vmatpush1.msra.mxu0 0.0
      %1738 = vmatprep.subr.mxu0 0.0
      %1739 = vmatpush1.msra.mxu0 0.0
      %1740 = vmatprep.subr.mxu0 0.0
      %1741 = vmatpush1.msra.mxu0 0.0
      %1742 = vmatprep.subr.mxu0 0.0
      %1743 = vmatpush1.msra.mxu0 0.0
      %1744 = vmatprep.subr.mxu0 0.0
      %1745 = vmatpush1.msra.mxu0 0.0
      %1746 = vmatprep.subr.mxu0 0.0
      %1747 = vmatpush1.msra.mxu0 0.0
      %1748 = vmatprep.subr.mxu0 0.0
      %1749 = vmatpush1.msra.mxu0 0.0
      %1750 = vmatprep.subr.mxu0 0.0
      %1751 = vmatpush1.msra.mxu0 0.0
      %1752 = vmatprep.subr.mxu0 0.0
      %1753 = vmatpush1.msra.mxu0 0.0
      %1754 = vmatprep.subr.mxu0 0.0
      %1755 = vmatpush1.msra.mxu0 0.0
      %1756 = vmatprep.subr.mxu0 0.0
      %1757 = vmatpush1.msra.mxu0 0.0
      %1758 = vmatprep.subr.mxu0 0.0
      %1759 = vmatpush1.msra.mxu0 0.0
      %1760 = vmatprep.subr.mxu0 0.0
      %1761 = vmatpush1.msra.mxu0 0.0
      %1762 = vmatprep.subr.mxu0 0.0
      %1763 = vmatpush1.msra.mxu0 0.0
      %1764 = vmatprep.subr.mxu0 0.0
      %1765 = vmatpush1.msra.mxu0 0.0
      %1766 = vmatprep.subr.mxu0 0.0
      %1767 = vmatpush1.msra.mxu0 0.0
      %1768 = vmatprep.subr.mxu0 0.0
      %1769 = vmatpush1.msra.mxu0 0.0
      %1770 = vmatprep.subr.mxu0 0.0
      %1771 = vmatpush1.msra.mxu0 0.0
      %1772 = vmatprep.subr.mxu0 0.0
      %1773 = vmatpush1.msra.mxu0 0.0
      %1774 = vmatprep.subr.mxu0 0.0
      %1775 = vmatpush1.msra.mxu0 0.0
      %1776 = vmatprep.subr.mxu0 0.0
      %1777 = vmatpush1.msra.mxu0 0.0
      %1778 = vmatprep.mubr.f32.mxu0 0.0
      %1779 = vmatmul.mubr.f32.gmra.mrb[0].mxu0 %v1709
      %v1780 = vpop.f32.mrb[0].mxu0
      %v1781 = vadd.f32 0.0, %v1780
      %v1782 = vpop.f32.mrb[0].mxu0
      %1783 = vdwg.mxu0
      %v1784 = vadd.f32 %v1703, %v1781
      %v1785 = vld [vmem:[%s1623 + $0x1] sm:$0xf]
      %s1786 = scalar_lea.vmem %s3, 68
      %v1787 = vld [vmem:[%s1786] sm:$0xf]
      %v1789 = vsel %vm426, %v1785, 0
      %v1792 = vsel %vm430, %v1787, 0
      %1794 = vmatprep.subr.mxu0 0.0
      %1795 = vmatpush1.msra.mxu0 %v1792
      %1796 = vmatprep.subr.mxu0 0.0
      %1797 = vmatpush1.msra.mxu0 0.0
      %1798 = vmatprep.subr.mxu0 0.0
      %1799 = vmatpush1.msra.mxu0 0.0
      %1800 = vmatprep.subr.mxu0 0.0
      %1801 = vmatpush1.msra.mxu0 0.0
      %1802 = vmatprep.subr.mxu0 0.0
      %1803 = vmatpush1.msra.mxu0 0.0
      %1804 = vmatprep.subr.mxu0 0.0
      %1805 = vmatpush1.msra.mxu0 0.0
      %1806 = vmatprep.subr.mxu0 0.0
      %1807 = vmatpush1.msra.mxu0 0.0
      %1808 = vmatprep.subr.mxu0 0.0
      %1809 = vmatpush1.msra.mxu0 0.0
      %1810 = vmatprep.subr.mxu0 0.0
      %1811 = vmatpush1.msra.mxu0 0.0
      %1812 = vmatprep.subr.mxu0 0.0
      %1813 = vmatpush1.msra.mxu0 0.0
      %1814 = vmatprep.subr.mxu0 0.0
      %1815 = vmatpush1.msra.mxu0 0.0
      %1816 = vmatprep.subr.mxu0 0.0
      %1817 = vmatpush1.msra.mxu0 0.0
      %1818 = vmatprep.subr.mxu0 0.0
      %1819 = vmatpush1.msra.mxu0 0.0
      %1820 = vmatprep.subr.mxu0 0.0
      %1821 = vmatpush1.msra.mxu0 0.0
      %1822 = vmatprep.subr.mxu0 0.0
      %1823 = vmatpush1.msra.mxu0 0.0
      %1824 = vmatprep.subr.mxu0 0.0
      %1825 = vmatpush1.msra.mxu0 0.0
      %1826 = vmatprep.subr.mxu0 0.0
      %1827 = vmatpush1.msra.mxu0 0.0
      %1828 = vmatprep.subr.mxu0 0.0
      %1829 = vmatpush1.msra.mxu0 0.0
      %1830 = vmatprep.subr.mxu0 0.0
      %1831 = vmatpush1.msra.mxu0 0.0
      %1832 = vmatprep.subr.mxu0 0.0
      %1833 = vmatpush1.msra.mxu0 0.0
      %1834 = vmatprep.subr.mxu0 0.0
      %1835 = vmatpush1.msra.mxu0 0.0
      %1836 = vmatprep.subr.mxu0 0.0
      %1837 = vmatpush1.msra.mxu0 0.0
      %1838 = vmatprep.subr.mxu0 0.0
      %1839 = vmatpush1.msra.mxu0 0.0
      %1840 = vmatprep.subr.mxu0 0.0
      %1841 = vmatpush1.msra.mxu0 0.0
      %1842 = vmatprep.subr.mxu0 0.0
      %1843 = vmatpush1.msra.mxu0 0.0
      %1844 = vmatprep.subr.mxu0 0.0
      %1845 = vmatpush1.msra.mxu0 0.0
      %1846 = vmatprep.subr.mxu0 0.0
      %1847 = vmatpush1.msra.mxu0 0.0
      %1848 = vmatprep.subr.mxu0 0.0
      %1849 = vmatpush1.msra.mxu0 0.0
      %1850 = vmatprep.subr.mxu0 0.0
      %1851 = vmatpush1.msra.mxu0 0.0
      %1852 = vmatprep.subr.mxu0 0.0
      %1853 = vmatpush1.msra.mxu0 0.0
      %1854 = vmatprep.subr.mxu0 0.0
      %1855 = vmatpush1.msra.mxu0 0.0
      %1856 = vmatprep.subr.mxu0 0.0
      %1857 = vmatpush1.msra.mxu0 0.0
      %1858 = vmatprep.mubr.f32.mxu0 0.0
      %1859 = vmatmul.mubr.f32.gmra.mrb[0].mxu0 %v1789
      %v1860 = vpop.f32.mrb[0].mxu0
      %v1861 = vadd.f32 0.0, %v1860
      %v1862 = vpop.f32.mrb[0].mxu0
      %1863 = vdwg.mxu0
      %v1864 = vadd.f32 %v1784, %v1861
      %v1865 = vld [vmem:[%s1704 + $0x1] sm:$0xf]
      %s1866 = scalar_lea.vmem %s3, 72
      %v1867 = vld [vmem:[%s1866] sm:$0xf]
      %v1869 = vsel %vm426, %v1865, 0
      %v1872 = vsel %vm430, %v1867, 0
      %1874 = vmatprep.subr.mxu0 0.0
      %1875 = vmatpush1.msra.mxu0 %v1872
      %1876 = vmatprep.subr.mxu0 0.0
      %1877 = vmatpush1.msra.mxu0 0.0
      %1878 = vmatprep.subr.mxu0 0.0
      %1879 = vmatpush1.msra.mxu0 0.0
      %1880 = vmatprep.subr.mxu0 0.0
      %1881 = vmatpush1.msra.mxu0 0.0
      %1882 = vmatprep.subr.mxu0 0.0
      %1883 = vmatpush1.msra.mxu0 0.0
      %1884 = vmatprep.subr.mxu0 0.0
      %1885 = vmatpush1.msra.mxu0 0.0
      %1886 = vmatprep.subr.mxu0 0.0
      %1887 = vmatpush1.msra.mxu0 0.0
      %1888 = vmatprep.subr.mxu0 0.0
      %1889 = vmatpush1.msra.mxu0 0.0
      %1890 = vmatprep.subr.mxu0 0.0
      %1891 = vmatpush1.msra.mxu0 0.0
      %1892 = vmatprep.subr.mxu0 0.0
      %1893 = vmatpush1.msra.mxu0 0.0
      %1894 = vmatprep.subr.mxu0 0.0
      %1895 = vmatpush1.msra.mxu0 0.0
      %1896 = vmatprep.subr.mxu0 0.0
      %1897 = vmatpush1.msra.mxu0 0.0
      %1898 = vmatprep.subr.mxu0 0.0
      %1899 = vmatpush1.msra.mxu0 0.0
      %1900 = vmatprep.subr.mxu0 0.0
      %1901 = vmatpush1.msra.mxu0 0.0
      %1902 = vmatprep.subr.mxu0 0.0
      %1903 = vmatpush1.msra.mxu0 0.0
      %1904 = vmatprep.subr.mxu0 0.0
      %1905 = vmatpush1.msra.mxu0 0.0
      %1906 = vmatprep.subr.mxu0 0.0
      %1907 = vmatpush1.msra.mxu0 0.0
      %1908 = vmatprep.subr.mxu0 0.0
      %1909 = vmatpush1.msra.mxu0 0.0
      %1910 = vmatprep.subr.mxu0 0.0
      %1911 = vmatpush1.msra.mxu0 0.0
      %1912 = vmatprep.subr.mxu0 0.0
      %1913 = vmatpush1.msra.mxu0 0.0
      %1914 = vmatprep.subr.mxu0 0.0
      %1915 = vmatpush1.msra.mxu0 0.0
      %1916 = vmatprep.subr.mxu0 0.0
      %1917 = vmatpush1.msra.mxu0 0.0
      %1918 = vmatprep.subr.mxu0 0.0
      %1919 = vmatpush1.msra.mxu0 0.0
      %1920 = vmatprep.subr.mxu0 0.0
      %1921 = vmatpush1.msra.mxu0 0.0
      %1922 = vmatprep.subr.mxu0 0.0
      %1923 = vmatpush1.msra.mxu0 0.0
      %1924 = vmatprep.subr.mxu0 0.0
      %1925 = vmatpush1.msra.mxu0 0.0
      %1926 = vmatprep.subr.mxu0 0.0
      %1927 = vmatpush1.msra.mxu0 0.0
      %1928 = vmatprep.subr.mxu0 0.0
      %1929 = vmatpush1.msra.mxu0 0.0
      %1930 = vmatprep.subr.mxu0 0.0
      %1931 = vmatpush1.msra.mxu0 0.0
      %1932 = vmatprep.subr.mxu0 0.0
      %1933 = vmatpush1.msra.mxu0 0.0
      %1934 = vmatprep.subr.mxu0 0.0
      %1935 = vmatpush1.msra.mxu0 0.0
      %1936 = vmatprep.subr.mxu0 0.0
      %1937 = vmatpush1.msra.mxu0 0.0
      %1938 = vmatprep.mubr.f32.mxu0 0.0
      %1939 = vmatmul.mubr.f32.gmra.mrb[0].mxu0 %v1869
      %v1940 = vpop.f32.mrb[0].mxu0
      %v1941 = vadd.f32 0.0, %v1940
      %v1942 = vpop.f32.mrb[0].mxu0
      %1943 = vdwg.mxu0
      %v1944 = vadd.f32 %v1864, %v1941
      %v1945 = vld [vmem:[%s1623 + $0x2] sm:$0xf]
      %s1946 = scalar_lea.vmem %s3, 76
      %v1947 = vld [vmem:[%s1946] sm:$0xf]
      %v1949 = vsel %vm426, %v1945, 0
      %v1952 = vsel %vm430, %v1947, 0
      %1954 = vmatprep.subr.mxu0 0.0
      %1955 = vmatpush1.msra.mxu0 %v1952
      %1956 = vmatprep.subr.mxu0 0.0
      %1957 = vmatpush1.msra.mxu0 0.0
      %1958 = vmatprep.subr.mxu0 0.0
      %1959 = vmatpush1.msra.mxu0 0.0
      %1960 = vmatprep.subr.mxu0 0.0
      %1961 = vmatpush1.msra.mxu0 0.0
      %1962 = vmatprep.subr.mxu0 0.0
      %1963 = vmatpush1.msra.mxu0 0.0
      %1964 = vmatprep.subr.mxu0 0.0
      %1965 = vmatpush1.msra.mxu0 0.0
      %1966 = vmatprep.subr.mxu0 0.0
      %1967 = vmatpush1.msra.mxu0 0.0
      %1968 = vmatprep.subr.mxu0 0.0
      %1969 = vmatpush1.msra.mxu0 0.0
      %1970 = vmatprep.subr.mxu0 0.0
      %1971 = vmatpush1.msra.mxu0 0.0
      %1972 = vmatprep.subr.mxu0 0.0
      %1973 = vmatpush1.msra.mxu0 0.0
      %1974 = vmatprep.subr.mxu0 0.0
      %1975 = vmatpush1.msra.mxu0 0.0
      %1976 = vmatprep.subr.mxu0 0.0
      %1977 = vmatpush1.msra.mxu0 0.0
      %1978 = vmatprep.subr.mxu0 0.0
      %1979 = vmatpush1.msra.mxu0 0.0
      %1980 = vmatprep.subr.mxu0 0.0
      %1981 = vmatpush1.msra.mxu0 0.0
      %1982 = vmatprep.subr.mxu0 0.0
      %1983 = vmatpush1.msra.mxu0 0.0
      %1984 = vmatprep.subr.mxu0 0.0
      %1985 = vmatpush1.msra.mxu0 0.0
      %1986 = vmatprep.subr.mxu0 0.0
      %1987 = vmatpush1.msra.mxu0 0.0
      %1988 = vmatprep.subr.mxu0 0.0
      %1989 = vmatpush1.msra.mxu0 0.0
      %1990 = vmatprep.subr.mxu0 0.0
      %1991 = vmatpush1.msra.mxu0 0.0
      %1992 = vmatprep.subr.mxu0 0.0
      %1993 = vmatpush1.msra.mxu0 0.0
      %1994 = vmatprep.subr.mxu0 0.0
      %1995 = vmatpush1.msra.mxu0 0.0
      %1996 = vmatprep.subr.mxu0 0.0
      %1997 = vmatpush1.msra.mxu0 0.0
      %1998 = vmatprep.subr.mxu0 0.0
      %1999 = vmatpush1.msra.mxu0 0.0
      %2000 = vmatprep.subr.mxu0 0.0
      %2001 = vmatpush1.msra.mxu0 0.0
      %2002 = vmatprep.subr.mxu0 0.0
      %2003 = vmatpush1.msra.mxu0 0.0
      %2004 = vmatprep.subr.mxu0 0.0
      %2005 = vmatpush1.msra.mxu0 0.0
      %2006 = vmatprep.subr.mxu0 0.0
      %2007 = vmatpush1.msra.mxu0 0.0
      %2008 = vmatprep.subr.mxu0 0.0
      %2009 = vmatpush1.msra.mxu0 0.0
      %2010 = vmatprep.subr.mxu0 0.0
      %2011 = vmatpush1.msra.mxu0 0.0
      %2012 = vmatprep.subr.mxu0 0.0
      %2013 = vmatpush1.msra.mxu0 0.0
      %2014 = vmatprep.subr.mxu0 0.0
      %2015 = vmatpush1.msra.mxu0 0.0
      %2016 = vmatprep.subr.mxu0 0.0
      %2017 = vmatpush1.msra.mxu0 0.0
      %2018 = vmatprep.mubr.f32.mxu0 0.0
      %2019 = vmatmul.mubr.f32.gmra.mrb[0].mxu0 %v1949
      %v2020 = vpop.f32.mrb[0].mxu0
      %v2021 = vadd.f32 0.0, %v2020
      %v2022 = vpop.f32.mrb[0].mxu0
      %2023 = vdwg.mxu0
      %v2024 = vadd.f32 %v1944, %v2021
      %v2025 = vld [vmem:[%s393] sm:$0xf]
      %s2026 = scalar_lea.vmem %s3, 80
      %v2027 = vld [vmem:[%s2026] sm:$0xf]
      %v2029 = vsel %vm426, %v2025, 0
      %v2032 = vsel %vm430, %v2027, 0
      %2034 = vmatprep.subr.mxu0 0.0
      %2035 = vmatpush1.msra.mxu0 %v2032
      %2036 = vmatprep.subr.mxu0 0.0
      %2037 = vmatpush1.msra.mxu0 0.0
      %2038 = vmatprep.subr.mxu0 0.0
      %2039 = vmatpush1.msra.mxu0 0.0
      %2040 = vmatprep.subr.mxu0 0.0
      %2041 = vmatpush1.msra.mxu0 0.0
      %2042 = vmatprep.subr.mxu0 0.0
      %2043 = vmatpush1.msra.mxu0 0.0
      %2044 = vmatprep.subr.mxu0 0.0
      %2045 = vmatpush1.msra.mxu0 0.0
      %2046 = vmatprep.subr.mxu0 0.0
      %2047 = vmatpush1.msra.mxu0 0.0
      %2048 = vmatprep.subr.mxu0 0.0
      %2049 = vmatpush1.msra.mxu0 0.0
      %2050 = vmatprep.subr.mxu0 0.0
      %2051 = vmatpush1.msra.mxu0 0.0
      %2052 = vmatprep.subr.mxu0 0.0
      %2053 = vmatpush1.msra.mxu0 0.0
      %2054 = vmatprep.subr.mxu0 0.0
      %2055 = vmatpush1.msra.mxu0 0.0
      %2056 = vmatprep.subr.mxu0 0.0
      %2057 = vmatpush1.msra.mxu0 0.0
      %2058 = vmatprep.subr.mxu0 0.0
      %2059 = vmatpush1.msra.mxu0 0.0
      %2060 = vmatprep.subr.mxu0 0.0
      %2061 = vmatpush1.msra.mxu0 0.0
      %2062 = vmatprep.subr.mxu0 0.0
      %2063 = vmatpush1.msra.mxu0 0.0
      %2064 = vmatprep.subr.mxu0 0.0
      %2065 = vmatpush1.msra.mxu0 0.0
      %2066 = vmatprep.subr.mxu0 0.0
      %2067 = vmatpush1.msra.mxu0 0.0
      %2068 = vmatprep.subr.mxu0 0.0
      %2069 = vmatpush1.msra.mxu0 0.0
      %2070 = vmatprep.subr.mxu0 0.0
      %2071 = vmatpush1.msra.mxu0 0.0
      %2072 = vmatprep.subr.mxu0 0.0
      %2073 = vmatpush1.msra.mxu0 0.0
      %2074 = vmatprep.subr.mxu0 0.0
      %2075 = vmatpush1.msra.mxu0 0.0
      %2076 = vmatprep.subr.mxu0 0.0
      %2077 = vmatpush1.msra.mxu0 0.0
      %2078 = vmatprep.subr.mxu0 0.0
      %2079 = vmatpush1.msra.mxu0 0.0
      %2080 = vmatprep.subr.mxu0 0.0
      %2081 = vmatpush1.msra.mxu0 0.0
      %2082 = vmatprep.subr.mxu0 0.0
      %2083 = vmatpush1.msra.mxu0 0.0
      %2084 = vmatprep.subr.mxu0 0.0
      %2085 = vmatpush1.msra.mxu0 0.0
      %2086 = vmatprep.subr.mxu0 0.0
      %2087 = vmatpush1.msra.mxu0 0.0
      %2088 = vmatprep.subr.mxu0 0.0
      %2089 = vmatpush1.msra.mxu0 0.0
      %2090 = vmatprep.subr.mxu0 0.0
      %2091 = vmatpush1.msra.mxu0 0.0
      %2092 = vmatprep.subr.mxu0 0.0
      %2093 = vmatpush1.msra.mxu0 0.0
      %2094 = vmatprep.subr.mxu0 0.0
      %2095 = vmatpush1.msra.mxu0 0.0
      %2096 = vmatprep.subr.mxu0 0.0
      %2097 = vmatpush1.msra.mxu0 0.0
      %2098 = vmatprep.mubr.f32.mxu0 0.0
      %2099 = vmatmul.mubr.f32.gmra.mrb[0].mxu0 %v2029
      %v2100 = vpop.f32.mrb[0].mxu0
      %v2101 = vadd.f32 0.0, %v2100
      %v2102 = vpop.f32.mrb[0].mxu0
      %2103 = vdwg.mxu0
      %v2104 = vadd.f32 %v2024, %v2101
      %s2105 = scalar_lea.vmem %s393, 8
      %v2106 = vld [vmem:[%s2105] sm:$0xf]
      %s2107 = scalar_lea.vmem %s3, 84
      %v2108 = vld [vmem:[%s2107] sm:$0xf]
      %v2110 = vsel %vm426, %v2106, 0
      %v2113 = vsel %vm430, %v2108, 0
      %2115 = vmatprep.subr.mxu0 0.0
      %2116 = vmatpush1.msra.mxu0 %v2113
      %2117 = vmatprep.subr.mxu0 0.0
      %2118 = vmatpush1.msra.mxu0 0.0
      %2119 = vmatprep.subr.mxu0 0.0
      %2120 = vmatpush1.msra.mxu0 0.0
      %2121 = vmatprep.subr.mxu0 0.0
      %2122 = vmatpush1.msra.mxu0 0.0
      %2123 = vmatprep.subr.mxu0 0.0
      %2124 = vmatpush1.msra.mxu0 0.0
      %2125 = vmatprep.subr.mxu0 0.0
      %2126 = vmatpush1.msra.mxu0 0.0
      %2127 = vmatprep.subr.mxu0 0.0
      %2128 = vmatpush1.msra.mxu0 0.0
      %2129 = vmatprep.subr.mxu0 0.0
      %2130 = vmatpush1.msra.mxu0 0.0
      %2131 = vmatprep.subr.mxu0 0.0
      %2132 = vmatpush1.msra.mxu0 0.0
      %2133 = vmatprep.subr.mxu0 0.0
      %2134 = vmatpush1.msra.mxu0 0.0
      %2135 = vmatprep.subr.mxu0 0.0
      %2136 = vmatpush1.msra.mxu0 0.0
      %2137 = vmatprep.subr.mxu0 0.0
      %2138 = vmatpush1.msra.mxu0 0.0
      %2139 = vmatprep.subr.mxu0 0.0
      %2140 = vmatpush1.msra.mxu0 0.0
      %2141 = vmatprep.subr.mxu0 0.0
      %2142 = vmatpush1.msra.mxu0 0.0
      %2143 = vmatprep.subr.mxu0 0.0
      %2144 = vmatpush1.msra.mxu0 0.0
      %2145 = vmatprep.subr.mxu0 0.0
      %2146 = vmatpush1.msra.mxu0 0.0
      %2147 = vmatprep.subr.mxu0 0.0
      %2148 = vmatpush1.msra.mxu0 0.0
      %2149 = vmatprep.subr.mxu0 0.0
      %2150 = vmatpush1.msra.mxu0 0.0
      %2151 = vmatprep.subr.mxu0 0.0
      %2152 = vmatpush1.msra.mxu0 0.0
      %2153 = vmatprep.subr.mxu0 0.0
      %2154 = vmatpush1.msra.mxu0 0.0
      %2155 = vmatprep.subr.mxu0 0.0
      %2156 = vmatpush1.msra.mxu0 0.0
      %2157 = vmatprep.subr.mxu0 0.0
      %2158 = vmatpush1.msra.mxu0 0.0
      %2159 = vmatprep.subr.mxu0 0.0
      %2160 = vmatpush1.msra.mxu0 0.0
      %2161 = vmatprep.subr.mxu0 0.0
      %2162 = vmatpush1.msra.mxu0 0.0
      %2163 = vmatprep.subr.mxu0 0.0
      %2164 = vmatpush1.msra.mxu0 0.0
      %2165 = vmatprep.subr.mxu0 0.0
      %2166 = vmatpush1.msra.mxu0 0.0
      %2167 = vmatprep.subr.mxu0 0.0
      %2168 = vmatpush1.msra.mxu0 0.0
      %2169 = vmatprep.subr.mxu0 0.0
      %2170 = vmatpush1.msra.mxu0 0.0
      %2171 = vmatprep.subr.mxu0 0.0
      %2172 = vmatpush1.msra.mxu0 0.0
      %2173 = vmatprep.subr.mxu0 0.0
      %2174 = vmatpush1.msra.mxu0 0.0
      %2175 = vmatprep.subr.mxu0 0.0
      %2176 = vmatpush1.msra.mxu0 0.0
      %2177 = vmatprep.subr.mxu0 0.0
      %2178 = vmatpush1.msra.mxu0 0.0
      %2179 = vmatprep.mubr.f32.mxu0 0.0
      %2180 = vmatmul.mubr.f32.gmra.mrb[0].mxu0 %v2110
      %v2181 = vpop.f32.mrb[0].mxu0
      %v2182 = vadd.f32 0.0, %v2181
      %v2183 = vpop.f32.mrb[0].mxu0
      %2184 = vdwg.mxu0
      %v2185 = vadd.f32 %v2104, %v2182
      %v2186 = vld [vmem:[%s393 + $0x1] sm:$0xf]
      %s2187 = scalar_lea.vmem %s3, 88
      %v2188 = vld [vmem:[%s2187] sm:$0xf]
      %v2190 = vsel %vm426, %v2186, 0
      %v2193 = vsel %vm430, %v2188, 0
      %2195 = vmatprep.subr.mxu0 0.0
      %2196 = vmatpush1.msra.mxu0 %v2193
      %2197 = vmatprep.subr.mxu0 0.0
      %2198 = vmatpush1.msra.mxu0 0.0
      %2199 = vmatprep.subr.mxu0 0.0
      %2200 = vmatpush1.msra.mxu0 0.0
      %2201 = vmatprep.subr.mxu0 0.0
      %2202 = vmatpush1.msra.mxu0 0.0
      %2203 = vmatprep.subr.mxu0 0.0
      %2204 = vmatpush1.msra.mxu0 0.0
      %2205 = vmatprep.subr.mxu0 0.0
      %2206 = vmatpush1.msra.mxu0 0.0
      %2207 = vmatprep.subr.mxu0 0.0
      %2208 = vmatpush1.msra.mxu0 0.0
      %2209 = vmatprep.subr.mxu0 0.0
      %2210 = vmatpush1.msra.mxu0 0.0
      %2211 = vmatprep.subr.mxu0 0.0
      %2212 = vmatpush1.msra.mxu0 0.0
      %2213 = vmatprep.subr.mxu0 0.0
      %2214 = vmatpush1.msra.mxu0 0.0
      %2215 = vmatprep.subr.mxu0 0.0
      %2216 = vmatpush1.msra.mxu0 0.0
      %2217 = vmatprep.subr.mxu0 0.0
      %2218 = vmatpush1.msra.mxu0 0.0
      %2219 = vmatprep.subr.mxu0 0.0
      %2220 = vmatpush1.msra.mxu0 0.0
      %2221 = vmatprep.subr.mxu0 0.0
      %2222 = vmatpush1.msra.mxu0 0.0
      %2223 = vmatprep.subr.mxu0 0.0
      %2224 = vmatpush1.msra.mxu0 0.0
      %2225 = vmatprep.subr.mxu0 0.0
      %2226 = vmatpush1.msra.mxu0 0.0
      %2227 = vmatprep.subr.mxu0 0.0
      %2228 = vmatpush1.msra.mxu0 0.0
      %2229 = vmatprep.subr.mxu0 0.0
      %2230 = vmatpush1.msra.mxu0 0.0
      %2231 = vmatprep.subr.mxu0 0.0
      %2232 = vmatpush1.msra.mxu0 0.0
      %2233 = vmatprep.subr.mxu0 0.0
      %2234 = vmatpush1.msra.mxu0 0.0
      %2235 = vmatprep.subr.mxu0 0.0
      %2236 = vmatpush1.msra.mxu0 0.0
      %2237 = vmatprep.subr.mxu0 0.0
      %2238 = vmatpush1.msra.mxu0 0.0
      %2239 = vmatprep.subr.mxu0 0.0
      %2240 = vmatpush1.msra.mxu0 0.0
      %2241 = vmatprep.subr.mxu0 0.0
      %2242 = vmatpush1.msra.mxu0 0.0
      %2243 = vmatprep.subr.mxu0 0.0
      %2244 = vmatpush1.msra.mxu0 0.0
      %2245 = vmatprep.subr.mxu0 0.0
      %2246 = vmatpush1.msra.mxu0 0.0
      %2247 = vmatprep.subr.mxu0 0.0
      %2248 = vmatpush1.msra.mxu0 0.0
      %2249 = vmatprep.subr.mxu0 0.0
      %2250 = vmatpush1.msra.mxu0 0.0
      %2251 = vmatprep.subr.mxu0 0.0
      %2252 = vmatpush1.msra.mxu0 0.0
      %2253 = vmatprep.subr.mxu0 0.0
      %2254 = vmatpush1.msra.mxu0 0.0
      %2255 = vmatprep.subr.mxu0 0.0
      %2256 = vmatpush1.msra.mxu0 0.0
      %2257 = vmatprep.subr.mxu0 0.0
      %2258 = vmatpush1.msra.mxu0 0.0
      %2259 = vmatprep.mubr.f32.mxu0 0.0
      %2260 = vmatmul.mubr.f32.gmra.mrb[0].mxu0 %v2190
      %v2261 = vpop.f32.mrb[0].mxu0
      %v2262 = vadd.f32 0.0, %v2261
      %v2263 = vpop.f32.mrb[0].mxu0
      %2264 = vdwg.mxu0
      %v2265 = vadd.f32 %v2185, %v2262
      %v2266 = vld [vmem:[%s2105 + $0x1] sm:$0xf]
      %s2267 = scalar_lea.vmem %s3, 92
      %v2268 = vld [vmem:[%s2267] sm:$0xf]
      %v2270 = vsel %vm426, %v2266, 0
      %v2273 = vsel %vm430, %v2268, 0
      %2275 = vmatprep.subr.mxu0 0.0
      %2276 = vmatpush1.msra.mxu0 %v2273
      %2277 = vmatprep.subr.mxu0 0.0
      %2278 = vmatpush1.msra.mxu0 0.0
      %2279 = vmatprep.subr.mxu0 0.0
      %2280 = vmatpush1.msra.mxu0 0.0
      %2281 = vmatprep.subr.mxu0 0.0
      %2282 = vmatpush1.msra.mxu0 0.0
      %2283 = vmatprep.subr.mxu0 0.0
      %2284 = vmatpush1.msra.mxu0 0.0
      %2285 = vmatprep.subr.mxu0 0.0
      %2286 = vmatpush1.msra.mxu0 0.0
      %2287 = vmatprep.subr.mxu0 0.0
      %2288 = vmatpush1.msra.mxu0 0.0
      %2289 = vmatprep.subr.mxu0 0.0
      %2290 = vmatpush1.msra.mxu0 0.0
      %2291 = vmatprep.subr.mxu0 0.0
      %2292 = vmatpush1.msra.mxu0 0.0
      %2293 = vmatprep.subr.mxu0 0.0
      %2294 = vmatpush1.msra.mxu0 0.0
      %2295 = vmatprep.subr.mxu0 0.0
      %2296 = vmatpush1.msra.mxu0 0.0
      %2297 = vmatprep.subr.mxu0 0.0
      %2298 = vmatpush1.msra.mxu0 0.0
      %2299 = vmatprep.subr.mxu0 0.0
      %2300 = vmatpush1.msra.mxu0 0.0
      %2301 = vmatprep.subr.mxu0 0.0
      %2302 = vmatpush1.msra.mxu0 0.0
      %2303 = vmatprep.subr.mxu0 0.0
      %2304 = vmatpush1.msra.mxu0 0.0
      %2305 = vmatprep.subr.mxu0 0.0
      %2306 = vmatpush1.msra.mxu0 0.0
      %2307 = vmatprep.subr.mxu0 0.0
      %2308 = vmatpush1.msra.mxu0 0.0
      %2309 = vmatprep.subr.mxu0 0.0
      %2310 = vmatpush1.msra.mxu0 0.0
      %2311 = vmatprep.subr.mxu0 0.0
      %2312 = vmatpush1.msra.mxu0 0.0
      %2313 = vmatprep.subr.mxu0 0.0
      %2314 = vmatpush1.msra.mxu0 0.0
      %2315 = vmatprep.subr.mxu0 0.0
      %2316 = vmatpush1.msra.mxu0 0.0
      %2317 = vmatprep.subr.mxu0 0.0
      %2318 = vmatpush1.msra.mxu0 0.0
      %2319 = vmatprep.subr.mxu0 0.0
      %2320 = vmatpush1.msra.mxu0 0.0
      %2321 = vmatprep.subr.mxu0 0.0
      %2322 = vmatpush1.msra.mxu0 0.0
      %2323 = vmatprep.subr.mxu0 0.0
      %2324 = vmatpush1.msra.mxu0 0.0
      %2325 = vmatprep.subr.mxu0 0.0
      %2326 = vmatpush1.msra.mxu0 0.0
      %2327 = vmatprep.subr.mxu0 0.0
      %2328 = vmatpush1.msra.mxu0 0.0
      %2329 = vmatprep.subr.mxu0 0.0
      %2330 = vmatpush1.msra.mxu0 0.0
      %2331 = vmatprep.subr.mxu0 0.0
      %2332 = vmatpush1.msra.mxu0 0.0
      %2333 = vmatprep.subr.mxu0 0.0
      %2334 = vmatpush1.msra.mxu0 0.0
      %2335 = vmatprep.subr.mxu0 0.0
      %2336 = vmatpush1.msra.mxu0 0.0
      %2337 = vmatprep.subr.mxu0 0.0
      %2338 = vmatpush1.msra.mxu0 0.0
      %2339 = vmatprep.mubr.f32.mxu0 0.0
      %2340 = vmatmul.mubr.f32.gmra.mrb[0].mxu0 %v2270
      %v2341 = vpop.f32.mrb[0].mxu0
      %v2342 = vadd.f32 0.0, %v2341
      %v2343 = vpop.f32.mrb[0].mxu0
      %2344 = vdwg.mxu0
      %v2345 = vadd.f32 %v2265, %v2342
      %v2346 = vld [vmem:[%s393 + $0x2] sm:$0xf]
      %s2347 = scalar_lea.vmem %s3, 96
      %v2348 = vld [vmem:[%s2347] sm:$0xf]
      %v2350 = vsel %vm426, %v2346, 0
      %v2353 = vsel %vm430, %v2348, 0
      %2355 = vmatprep.subr.mxu0 0.0
      %2356 = vmatpush1.msra.mxu0 %v2353
      %2357 = vmatprep.subr.mxu0 0.0
      %2358 = vmatpush1.msra.mxu0 0.0
      %2359 = vmatprep.subr.mxu0 0.0
      %2360 = vmatpush1.msra.mxu0 0.0
      %2361 = vmatprep.subr.mxu0 0.0
      %2362 = vmatpush1.msra.mxu0 0.0
      %2363 = vmatprep.subr.mxu0 0.0
      %2364 = vmatpush1.msra.mxu0 0.0
      %2365 = vmatprep.subr.mxu0 0.0
      %2366 = vmatpush1.msra.mxu0 0.0
      %2367 = vmatprep.subr.mxu0 0.0
      %2368 = vmatpush1.msra.mxu0 0.0
      %2369 = vmatprep.subr.mxu0 0.0
      %2370 = vmatpush1.msra.mxu0 0.0
      %2371 = vmatprep.subr.mxu0 0.0
      %2372 = vmatpush1.msra.mxu0 0.0
      %2373 = vmatprep.subr.mxu0 0.0
      %2374 = vmatpush1.msra.mxu0 0.0
      %2375 = vmatprep.subr.mxu0 0.0
      %2376 = vmatpush1.msra.mxu0 0.0
      %2377 = vmatprep.subr.mxu0 0.0
      %2378 = vmatpush1.msra.mxu0 0.0
      %2379 = vmatprep.subr.mxu0 0.0
      %2380 = vmatpush1.msra.mxu0 0.0
      %2381 = vmatprep.subr.mxu0 0.0
      %2382 = vmatpush1.msra.mxu0 0.0
      %2383 = vmatprep.subr.mxu0 0.0
      %2384 = vmatpush1.msra.mxu0 0.0
      %2385 = vmatprep.subr.mxu0 0.0
      %2386 = vmatpush1.msra.mxu0 0.0
      %2387 = vmatprep.subr.mxu0 0.0
      %2388 = vmatpush1.msra.mxu0 0.0
      %2389 = vmatprep.subr.mxu0 0.0
      %2390 = vmatpush1.msra.mxu0 0.0
      %2391 = vmatprep.subr.mxu0 0.0
      %2392 = vmatpush1.msra.mxu0 0.0
      %2393 = vmatprep.subr.mxu0 0.0
      %2394 = vmatpush1.msra.mxu0 0.0
      %2395 = vmatprep.subr.mxu0 0.0
      %2396 = vmatpush1.msra.mxu0 0.0
      %2397 = vmatprep.subr.mxu0 0.0
      %2398 = vmatpush1.msra.mxu0 0.0
      %2399 = vmatprep.subr.mxu0 0.0
      %2400 = vmatpush1.msra.mxu0 0.0
      %2401 = vmatprep.subr.mxu0 0.0
      %2402 = vmatpush1.msra.mxu0 0.0
      %2403 = vmatprep.subr.mxu0 0.0
      %2404 = vmatpush1.msra.mxu0 0.0
      %2405 = vmatprep.subr.mxu0 0.0
      %2406 = vmatpush1.msra.mxu0 0.0
      %2407 = vmatprep.subr.mxu0 0.0
      %2408 = vmatpush1.msra.mxu0 0.0
      %2409 = vmatprep.subr.mxu0 0.0
      %2410 = vmatpush1.msra.mxu0 0.0
      %2411 = vmatprep.subr.mxu0 0.0
      %2412 = vmatpush1.msra.mxu0 0.0
      %2413 = vmatprep.subr.mxu0 0.0
      %2414 = vmatpush1.msra.mxu0 0.0
      %2415 = vmatprep.subr.mxu0 0.0
      %2416 = vmatpush1.msra.mxu0 0.0
      %2417 = vmatprep.subr.mxu0 0.0
      %2418 = vmatpush1.msra.mxu0 0.0
      %2419 = vmatprep.mubr.f32.mxu0 0.0
      %2420 = vmatmul.mubr.f32.gmra.mrb[0].mxu0 %v2350
      %v2421 = vpop.f32.mrb[0].mxu0
      %v2422 = vadd.f32 0.0, %v2421
      %v2423 = vpop.f32.mrb[0].mxu0
      %2424 = vdwg.mxu0
      %v2425 = vadd.f32 %v2345, %v2422
      %vm2426 = vcmask 60416
      %2427 = vst.msk [vmem:[%s403] sm:$0xf] %vm2426, %v2425
      %v2428 = vsel %vm2426, %v2425, 0.0
      %v2429 = vrot.slane %v2428, 4
      %v2430 = vadd.f32 %v2428, %v2429
      %v2431 = vrot.slane %v2430, 2
      %v2432 = vadd.f32 %v2430, %v2431
      %v2433 = vrot.slane %v2432, 1
      %v2434 = vadd.f32 %v2432, %v2433
      %vm2435 = vcmask 57344
      %2436 = vst.msk [vmem:[%s410] sm:$0x1] %vm2435, %v2434
      %v2437 = vmul.f32 %v2425, %v2425
      %v2438 = vsel %vm2426, %v2437, 0.0
      %v2439 = vrot.slane %v2438, 4
      %v2440 = vadd.f32 %v2438, %v2439
      %v2441 = vrot.slane %v2440, 2
      %v2442 = vadd.f32 %v2440, %v2441
      %v2443 = vrot.slane %v2442, 1
      %v2444 = vadd.f32 %v2442, %v2443
      %2445 = vst.msk [vmem:[%s417] sm:$0x1] %vm2435, %v2444
      %s2446 = smul.u32 %s22, 4
      %s2447 = sadd.s32 %s2446, %s23
      %p2448 = scmp.lt.s32.totalorder %s2447, 7
      %s2449 = scalar_select %p2448, %s2447, 7
      %s2450 = smul.addr %s2449, 4
      %s2451 = scalar_lea.vmem %s4, %s2450
      %s2452 = smul.u32 %s22, 4
      %s2453 = sadd.s32 %s2452, %s23
      %p2454 = scmp.lt.s32.totalorder %s2453, 7
      %s2455 = scalar_select %p2454, %s2453, 7
      %s2456 = scalar_lea.vmem %s5, %s2455
      %s2457 = smul.u32 %s22, 4
      %s2458 = sadd.s32 %s2457, %s23
      %p2459 = scmp.lt.s32.totalorder %s2458, 7
      %s2460 = scalar_select %p2459, %s2458, 7
      %s2461 = scalar_lea.vmem %s6, %s2460
      // Predicated region
      $region37: #{_lambda_.5} parent=35 // pred_check
        %p2462 = pneg %p167
      $region38: #{_lambda_.5} parent=35 // pred_check_branch
        %2464 = sbr.rel (%p2462) target = $region40
      $region39: #{_lambda_.5} parent=35 // pred_region
        %s2465 = smul.u32 %s22, 4
        %s2466 = sadd.s32 %s2465, %s23
      $region40: #{_lambda_.5} parent=35 // pred_fallthru
        _
      // Predicated region
      $region41: #{_lambda_.5} parent=35 // pred_check
        %p2467 = pneg %p197
      $region42: #{_lambda_.5} parent=35 // pred_check_branch
        %2469 = sbr.rel (%p2467) target = $region44
      $region43: #{_lambda_.5} parent=35 // pred_region
        %s2470 = smul.u32 %s22, 4
        %s2471 = sadd.s32 %s2470, %s23
      $region44: #{_lambda_.5} parent=35 // pred_fallthru
        _
      // Predicated region
      $region45: #{_lambda_.5} parent=35 // pred_check
        %p2472 = pneg %p227
      $region46: #{_lambda_.5} parent=35 // pred_check_branch
        %2474 = sbr.rel (%p2472) target = $region48
      $region47: #{_lambda_.5} parent=35 // pred_region
        %s2475 = smul.u32 %s22, 4
        %s2476 = sadd.s32 %s2475, %s23
      $region48: #{_lambda_.5} parent=35 // pred_fallthru
        _
    $region36: #{_lambda_.5} parent=5 // pred_fallthru
      _
    %p2477 = scmp.le.s32.totalorder 2, %s13
    // Predicated region
    $region49: #{_lambda_.5} parent=5 // pred_check
      %p2478 = pneg %p2477
    $region50: #{_lambda_.5} parent=5 // pred_check_branch
      %2480 = sbr.rel (%p2478) target = $region52
    $region51: #{_lambda_.5} parent=5 // pred_region
      %s2481 = ssub.s32 %s13, 2
      // Predicated region
      $region53: #{_lambda_.5} parent=51 // pred_check
        %p2482 = pneg %p173
      $region54: #{_lambda_.5} parent=51 // pred_check_branch
        %2484 = sbr.rel (%p2482) target = $region56
      $region55: #{_lambda_.5} parent=51 // pred_region
        %s2485 = smul.u32 %s24, 4
        %s2486 = sadd.s32 %s2485, %s25
        %p2487 = scmp.lt.s32.totalorder %s2486, 7
        %s2488 = scalar_select %p2487, %s2486, 7
        %s2489 = smul.addr %s2488, 4
        %s2490 = scalar_lea.vmem %s4, %s2489
      $region56: #{_lambda_.5} parent=51 // pred_fallthru
        _
      // Predicated region
      $region57: #{_lambda_.5} parent=51 // pred_check
        %p2491 = pneg %p203
      $region58: #{_lambda_.5} parent=51 // pred_check_branch
        %2493 = sbr.rel (%p2491) target = $region60
      $region59: #{_lambda_.5} parent=51 // pred_region
        %s2494 = smul.u32 %s24, 4
        %s2495 = sadd.s32 %s2494, %s25
        %p2496 = scmp.lt.s32.totalorder %s2495, 7
        %s2497 = scalar_select %p2496, %s2495, 7
        %s2498 = scalar_lea.vmem %s5, %s2497
      $region60: #{_lambda_.5} parent=51 // pred_fallthru
        _
      // Predicated region
      $region61: #{_lambda_.5} parent=51 // pred_check
        %p2499 = pneg %p233
      $region62: #{_lambda_.5} parent=51 // pred_check_branch
        %2501 = sbr.rel (%p2499) target = $region64
      $region63: #{_lambda_.5} parent=51 // pred_region
        %s2502 = smul.u32 %s24, 4
        %s2503 = sadd.s32 %s2502, %s25
        %p2504 = scmp.lt.s32.totalorder %s2503, 7
        %s2505 = scalar_select %p2504, %s2503, 7
        %s2506 = scalar_lea.vmem %s6, %s2505
      $region64: #{_lambda_.5} parent=51 // pred_fallthru
        _
    $region52: #{_lambda_.5} parent=5 // pred_fallthru
      _
  $region6: #{_lambda_.5} parent=0 // loop_footer
    %s17 = sadd.s32 1, %s13
  $region7: #{_lambda_.5} parent=0 // loop_footer_branch
    %12 = sbr.rel target = $region3
  $region8: #{_lambda_.5} parent=0 // loop_exit
    _

</llo_original>
